<compile_context>
chip_gen: v5e
topology: v5e:2x2
jax: 0.10.0
libtpu: 0.0.40
codegen_flags: <defaults>
</compile_context>

<pallas_src>
import functools

import jax
import jax.numpy as jnp
from jax.experimental import pallas as pl
from jax.experimental.pallas import tpu as pltpu

EPS = 1e-5
NUM_GROUPS = 32
NUM_LAYERS = 4

# v7x has 64 MiB physical VMEM (v5e/v6e: 128 MiB).  Keep the scoped limit and the
# per-tile budget conservative so the same tiling fits every generation.
VMEM_LIMIT_BYTES = 48 * 1024 * 1024
TILE_BUDGET_BYTES = 3 * 1024 * 1024


def _pick_hw_tile(num_frames, hw, channels, budget_bytes=TILE_BUDGET_BYTES):
    """Largest HW tile that (a) divides HW, (b) is a multiple of 8 sublanes, and
    (c) keeps one f32 (F, T, C) activation tile under budget_bytes, so the
    double-buffered in/out tiles plus the (F*T, 3C) staging scratch stay well inside
    the per-generation VMEM limit (including v7x's 64 MiB)."""
    if hw % 8 != 0:
        return hw                      # tiny / irregular spatial dims: single tile
    row_bytes = num_frames * channels * 4
    t = min(hw, max(8, (budget_bytes // row_bytes) // 8 * 8))
    while hw % t != 0:
        t -= 8
    return t


# ---------------------------------------------------------------------------
# Pass 1: GroupNorm statistics (per-batch, per-channel sum / sum-of-squares).
# ---------------------------------------------------------------------------
def gn_stats_kernel(h_ref, sums_ref):
    # h_ref   : (F, T, C)  one HW tile of one batch element (B squeezed)
    # sums_ref: (2, C)     resident accumulator across the HW-tile grid axis
    t = pl.program_id(1)

    @pl.when(t == 0)
    def _init():
        sums_ref[...] = jnp.zeros_like(sums_ref)

    h = h_ref[...].astype(jnp.float32)             # f32 accumulation (bf16 inputs ok)
    h2 = h.reshape(-1, h.shape[-1])                # (F*T, C)
    s = jnp.sum(h2, axis=0, keepdims=True)         # (1, C)
    ss = jnp.sum(h2 * h2, axis=0, keepdims=True)   # (1, C)
    sums_ref[...] += jnp.concatenate([s, ss], axis=0)


# ---------------------------------------------------------------------------
# Pass 2: fused GN affine -> bf16 SiLU -> temporal conv (one K=3C matmul) [-> +residual]
# ---------------------------------------------------------------------------
def gn_silu_conv_kernel(*refs, num_frames, hw_tile, channels, add_residual):
    if add_residual:
        h_ref, a_ref, c_ref, w_ref, b_ref, res_ref, o_ref, stage_ref = refs
    else:
        h_ref, a_ref, c_ref, w_ref, b_ref, o_ref, stage_ref = refs
        res_ref = None
    F, T, C = num_frames, hw_tile, channels

    h = h_ref[...].astype(jnp.float32)                        # (F, T, C)
    hn = (h * a_ref[...] + c_ref[...]).astype(jnp.bfloat16)   # fused GN affine (1 FMA)
    hs = hn * jax.nn.sigmoid(hn)                              # bf16 SiLU (bf16 EUP/VPU
                                                              # on v6e/v7x)
    hs2 = hs.reshape(F * T, C)                                # frame shift == T rows

    # Stage the three temporal taps side by side: stage[:, k*C:(k+1)*C] holds the SiLU
    # output of frame f + k - 1 (zeros in the temporal halo).  All row offsets are
    # static multiples of T (T % 8 == 0 -> sublane aligned, relayout-free stores).
    zero_rows = jnp.zeros((T, C), jnp.bfloat16)
    stage_ref[0:T, 0:C] = zero_rows                            # f-1 halo at f == 0
    stage_ref[(F - 1) * T:F * T, 2 * C:3 * C] = zero_rows      # f+1 halo at f == F-1
    if F > 1:
        stage_ref[T:F * T, 0:C] = hs2[0:(F - 1) * T]           # prev-frame tap
        stage_ref[0:(F - 1) * T, 2 * C:3 * C] = hs2[T:F * T]   # next-frame tap
    stage_ref[0:F * T, C:2 * C] = hs2                          # center tap

    out = jnp.dot(stage_ref[...], w_ref[...],                  # single K = 3C matmul
                  preferred_element_type=jnp.float32)
    out = (out + b_ref[...]).reshape(F, T, C)
    if add_residual:
        out = out + res_ref[...].astype(jnp.float32)
    o_ref[...] = out.astype(o_ref.dtype)


# ---------------------------------------------------------------------------
# Plain-JAX glue between the two passes (parameter-scale math only).
# ---------------------------------------------------------------------------
def _group_affine(sums, gamma, beta, count):
    """(sum, sumsq) -> per-channel fused GroupNorm scale/shift:  hn = h * a + c."""
    # TODO(synk): for production reduction sizes (F*HW*gsz ~ 1e6) switch to a 3-pass
    # GroupNorm (mean, then sum((x-mean)^2), then normalize) if the E[x^2]-mean^2
    # cancellation becomes visible; the max(., 0) clamp below only guards the sign.
    B, _, C = sums.shape
    gsz = C // NUM_GROUPS
    s = sums[:, 0, :].reshape(B, NUM_GROUPS, gsz)
    ss = sums[:, 1, :].reshape(B, NUM_GROUPS, gsz)
    mean = s.sum(-1, keepdims=True) / count
    var = jnp.maximum(ss.sum(-1, keepdims=True) / count - mean * mean, 0.0)
    inv = jax.lax.rsqrt(var + EPS)
    mean_c = jnp.broadcast_to(mean, (B, NUM_GROUPS, gsz)).reshape(B, C)
    inv_c = jnp.broadcast_to(inv, (B, NUM_GROUPS, gsz)).reshape(B, C)
    a = inv_c * gamma[None, :]
    c = beta[None, :] - mean_c * a
    return a[:, None, :], c[:, None, :]            # (B, 1, C) f32 each


# ---------------------------------------------------------------------------
# pallas_call wrappers.
# ---------------------------------------------------------------------------
def _gn_stats(h, *, F, T, n_tiles):
    B, _, _, C = h.shape
    return pl.pallas_call(
        gn_stats_kernel,
        out_shape=jax.ShapeDtypeStruct((B, 2, C), jnp.float32),
        grid=(B, n_tiles),
        in_specs=[pl.BlockSpec((pl.Squeezed(), F, T, C), lambda b, t: (b, 0, t, 0))],
        out_specs=pl.BlockSpec((pl.Squeezed(), 2, C), lambda b, t: (b, 0, 0)),
        compiler_params=pltpu.CompilerParams(
            dimension_semantics=("parallel", "arbitrary"),
            vmem_limit_bytes=VMEM_LIMIT_BYTES),
    )(h)


def _gn_silu_conv(h, a, c, w_fused, bias, residual, *, F, T, n_tiles, out_dtype):
    B, _, HW, C = h.shape
    kernel = functools.partial(gn_silu_conv_kernel, num_frames=F, hw_tile=T,
                               channels=C, add_residual=residual is not None)
    act_spec = pl.BlockSpec((pl.Squeezed(), F, T, C), lambda b, t: (b, 0, t, 0))
    vec_spec = pl.BlockSpec((pl.Squeezed(), 1, C), lambda b, t: (b, 0, 0))
    # TODO(synk): mark the constant w_fused / bias specs pipeline_mode=pl.Buffered(1)
    # once validated on the target jax build (their index_map is constant, so the
    # second pipeline buffer is pure VMEM waste).
    in_specs = [act_spec, vec_spec, vec_spec,
                pl.BlockSpec((3 * C, C), lambda b, t: (0, 0)),
                pl.BlockSpec((1, C), lambda b, t: (0, 0))]
    args = [h, a, c, w_fused, bias]
    if residual is not None:
        in_specs.append(act_spec)
        args.append(residual)
    return pl.pallas_call(
        kernel,
        out_shape=jax.ShapeDtypeStruct((B, F, HW, C), out_dtype),
        grid=(B, n_tiles),
        in_specs=in_specs,
        out_specs=act_spec,
        scratch_shapes=[pltpu.VMEM((F * T, 3 * C), jnp.bfloat16)],
        compiler_params=pltpu.CompilerParams(
            dimension_semantics=("parallel", "parallel"),
            vmem_limit_bytes=VMEM_LIMIT_BYTES),
    )(*args)


def temporal_conv_layer_cl(x_cl, layer_params, num_frames, hw_tile=None):
    """Channels-last forward: (B, F, HW, C) -> (B, F, HW, C).  Preferred entry point:
    keep the surrounding model in this layout to avoid extra HBM layout passes."""
    B, F, HW, C = x_cl.shape
    assert F == num_frames
    assert C % NUM_GROUPS == 0
    T = hw_tile if hw_tile is not None else _pick_hw_tile(F, HW, C)
    assert HW % T == 0, "hw_tile must divide H*W"
    if HW % 8 == 0:
        # Frame shift inside the staging scratch is T rows; keep it sublane aligned so
        # the shifted tap stores stay relayout-free.
        assert T % 8 == 0, "hw_tile must be a multiple of 8 sublanes"
    n_tiles = HW // T
    count = float(F * HW * (C // NUM_GROUPS))

    h = x_cl
    for l, (gamma, beta, w_fused, bias) in enumerate(layer_params):
        sums = _gn_stats(h, F=F, T=T, n_tiles=n_tiles)
        a, c = _group_affine(sums, gamma, beta, count)
        last = l == NUM_LAYERS - 1
        h = _gn_silu_conv(
            h, a, c, w_fused, bias,
            residual=x_cl if last else None,           # residual fused into layer 4
            F=F, T=T, n_tiles=n_tiles,
            out_dtype=x_cl.dtype if last else jnp.bfloat16)  # bf16 inter-layer carry
    return h


def temporal_conv_layer_nchw(x, layer_params, num_frames, hw_tile=None):
    """PyTorch-layout adapter: x (B*F, C, H, W) -> (B*F, C, H, W).  The two transposes
    here are pure layout plumbing (an extra HBM round trip each); a JAX model should
    keep activations channels-last and call temporal_conv_layer_cl directly."""
    BF, C, H, W = x.shape
    F = num_frames
    B = BF // F
    x_cl = x.reshape(B, F, C, H * W).transpose(0, 1, 3, 2)   # (B, F, HW, C)
    out = temporal_conv_layer_cl(x_cl, layer_params, num_frames=F, hw_tile=hw_tile)
    return out.transpose(0, 1, 3, 2).reshape(BF, C, H, W)


# ---------------------------------------------------------------------------
# Parameters and pure-JAX f32 reference.
# ---------------------------------------------------------------------------
def make_params(key, C):
    """Deterministic random params (PT-shaped and kernel-shaped).  conv4 uses a smaller
    scale (the module zero-inits it); weights are rounded to bf16-representable values
    so the kernel's bf16 MXU path sees exactly the reference parameters."""
    keys = jax.random.split(key, 4 * NUM_LAYERS)
    w_scales = (0.05, 0.05, 0.05, 0.02)
    pt_params, layer_params = [], []
    for i in range(NUM_LAYERS):
        gn_w = 1.0 + 0.1 * jax.random.normal(keys[4 * i + 0], (C,), jnp.float32)
        gn_b = 0.1 * jax.random.normal(keys[4 * i + 1], (C,), jnp.float32)
        cw = w_scales[i] * jax.random.normal(keys[4 * i + 2], (C, C, 3, 1, 1),
                                             jnp.float32)
        cw = cw.astype(jnp.bfloat16).astype(jnp.float32)
        cb = w_scales[i] * jax.random.normal(keys[4 * i + 3], (C,), jnp.float32)
        pt_params.append((gn_w, gn_b, cw, cb))
        # (C_out, C_in, 3, 1, 1) -> (3*C_in, C_out): row k*C + ci multiplies the SiLU
        # output of frame f + k - 1, matching the staging-buffer column layout.
        w_fused = (cw[:, :, :, 0, 0].transpose(2, 1, 0)
                   .reshape(3 * C, C).astype(jnp.bfloat16))
        layer_params.append((gn_w, gn_b, w_fused, cb.reshape(1, C)))
    return pt_params, layer_params


def reference_forward(x, pt_params, num_frames):
    """Pure-JAX f32 replica of the PyTorch forward (for verification)."""
    BF, C, H, W = x.shape
    B = BF // num_frames
    h = x.reshape(B, num_frames, C, H, W).transpose(0, 2, 1, 3, 4)   # (B,C,F,H,W)
    identity = h
    for gn_w, gn_b, cw, cb in pt_params:
        Bn, Cn, Fn, Hn, Wn = h.shape
        hg = h.reshape(Bn, NUM_GROUPS, Cn // NUM_GROUPS, Fn, Hn, Wn)
        mean = hg.mean(axis=(2, 3, 4, 5), keepdims=True)
        var = hg.var(axis=(2, 3, 4, 5), keepdims=True)
        hg = (hg - mean) / jnp.sqrt(var + EPS)
        h = hg.reshape(Bn, Cn, Fn, Hn, Wn)
        h = h * gn_w[None, :, None, None, None] + gn_b[None, :, None, None, None]
        h = h * jax.nn.sigmoid(h)
        hp = jnp.pad(h, ((0, 0), (0, 0), (1, 1), (0, 0), (0, 0)))
        stacked = jnp.stack([hp[:, :, k:k + Fn] for k in range(3)], axis=0)
        h = jnp.einsum('oik,kbifhw->bofhw', cw[:, :, :, 0, 0], stacked,
                       precision=jax.lax.Precision.HIGHEST)
        h = h + cb[None, :, None, None, None]
    h = identity + h
    return h.transpose(0, 2, 1, 3, 4).reshape(BF, C, H, W)


if __name__ == "__main__":
    fwd = jax.jit(temporal_conv_layer_nchw, static_argnames=("num_frames", "hw_tile"))
    key = jax.random.PRNGKey(0)
    configs = [
        # (B, F, C, H, W, hw_tile)
        (2, 4, 128, 8, 8, 16),    # lane-dense C, 4 HW tiles: exercises the tiled path
        (2, 4, 32, 8, 8, None),   # minimal C for GroupNorm(32): correctness only
                                  # (lane-sparse; do not use for perf tuning)
        (2, 1, 32, 8, 8, None),   # num_frames == 1 (module default): halo-only conv
    ]
    for (B, F, C, H, W, hw_tile) in configs:
        kx, kp, key = jax.random.split(key, 3)
        x = jax.random.normal(kx, (B * F, C, H, W), jnp.float32)
        pt_params, layer_params = make_params(kp, C)

        out = jax.block_until_ready(
            fwd(x, layer_params, num_frames=F, hw_tile=hw_tile))
        ref = reference_forward(x, pt_params, num_frames=F)

        assert out.shape == (B * F, C, H, W)
        # Tolerance accounts for bf16 MXU operands + bf16 inter-layer activations +
        # bf16 SiLU across 4 stacked GN->SiLU->conv blocks (f32 stats / accumulation).
        assert jnp.allclose(out, ref, atol=4e-2, rtol=4e-2), (
            (B, F, C), float(jnp.max(jnp.abs(out - ref))))
    print("KERNEL_OK")
</pallas_src>

<mosaic_0001>
module attributes {stable_mosaic.version = 11 : i64} {
  func.func @gn_stats_kernel(%arg0: i32, %arg1: i32, %arg2: memref<1x4x16x128xf32, #tpu.memory_space<vmem>>, %arg3: memref<1x2x128xf32, #tpu.memory_space<vmem>>) attributes {dimension_semantics = [#tpu.dimension_semantics<parallel>, #tpu.dimension_semantics<arbitrary>], iteration_bounds = array<i64: 2, 4>, scalar_prefetch = 0 : i64, scratch_operands = 0 : i64, tpu.core_type = #tpu.core_type<tc>, window_params = [{transform_indices = @transform_0, window_bounds = array<i64: 1, 4, 16, 128>}, {transform_indices = @transform_1, window_bounds = array<i64: 1, 2, 128>}]} {
    %c0_i32 = arith.constant 0 : i32
    %0 = arith.cmpi eq, %arg1, %c0_i32 : i32
    %1 = arith.extui %0 : i1 to i32
    %c0_i32_0 = arith.constant 0 : i32
    %2 = arith.cmpi ne, %1, %c0_i32_0 : i32
    scf.if %2 {
      %cst_11 = arith.constant 0.000000e+00 : f32
      %18 = vector.broadcast %cst_11 : f32 to vector<2x128xf32>
      %c0_12 = arith.constant 0 : index
      %c0_13 = arith.constant 0 : index
      %c0_14 = arith.constant 0 : index
      %19 = vector.load %arg3[%c0_12, %c0_13, %c0_14] : memref<1x2x128xf32, #tpu.memory_space<vmem>>, vector<1x2x128xf32>
      %20 = vector.shape_cast %19 : vector<1x2x128xf32> to vector<2x128xf32>
      %21 = vector.shape_cast %18 : vector<2x128xf32> to vector<1x2x128xf32>
      tpu.vector_store %arg3[%c0_12, %c0_13, %c0_14], %21 {strides = array<i32>} : memref<1x2x128xf32, #tpu.memory_space<vmem>>, vector<1x2x128xf32>,
    } else {
    }
    %c0 = arith.constant 0 : index
    %c0_1 = arith.constant 0 : index
    %c0_2 = arith.constant 0 : index
    %c0_3 = arith.constant 0 : index
    %3 = vector.load %arg2[%c0, %c0_1, %c0_2, %c0_3] : memref<1x4x16x128xf32, #tpu.memory_space<vmem>>, vector<1x4x16x128xf32>
    %4 = vector.shape_cast %3 : vector<1x4x16x128xf32> to vector<4x16x128xf32>
    %5 = vector.shape_cast %4 : vector<4x16x128xf32> to vector<64x128xf32>
    %cst = arith.constant dense<0.000000e+00> : vector<128xf32>
    %6 = vector.multi_reduction <add>, %5, %cst [0] : vector<64x128xf32> to vector<128xf32>
    %7 = vector.shape_cast %6 : vector<128xf32> to vector<1x128xf32>
    %8 = arith.mulf %5, %5 : vector<64x128xf32>
    %cst_4 = arith.constant dense<0.000000e+00> : vector<128xf32>
    %9 = vector.multi_reduction <add>, %8, %cst_4 [0] : vector<64x128xf32> to vector<128xf32>
    %10 = vector.shape_cast %9 : vector<128xf32> to vector<1x128xf32>
    %c0_5 = arith.constant 0 : index
    %c0_6 = arith.constant 0 : index
    %c0_7 = arith.constant 0 : index
    %11 = vector.load %arg3[%c0_5, %c0_6, %c0_7] : memref<1x2x128xf32, #tpu.memory_space<vmem>>, vector<1x2x128xf32>
    %12 = vector.shape_cast %11 : vector<1x2x128xf32> to vector<2x128xf32>
    %13 = tpu.concatenate %7, %10 in 0 : vector<1x128xf32>, vector<1x128xf32> -> vector<2x128xf32>
    %14 = arith.addf %12, %13 : vector<2x128xf32>
    %c0_8 = arith.constant 0 : index
    %c0_9 = arith.constant 0 : index
    %c0_10 = arith.constant 0 : index
    %15 = vector.load %arg3[%c0_8, %c0_9, %c0_10] : memref<1x2x128xf32, #tpu.memory_space<vmem>>, vector<1x2x128xf32>
    %16 = vector.shape_cast %15 : vector<1x2x128xf32> to vector<2x128xf32>
    %17 = vector.shape_cast %14 : vector<2x128xf32> to vector<1x2x128xf32>
    tpu.vector_store %arg3[%c0_8, %c0_9, %c0_10], %17 {strides = array<i32>} : memref<1x2x128xf32, #tpu.memory_space<vmem>>, vector<1x2x128xf32>,
    return
  }
  func.func @transform_0(%arg0: i32, %arg1: i32) -> (i32, i32, i32, i32) {
    %c0_i32 = arith.constant 0 : i32
    %c0_i32_0 = arith.constant 0 : i32
    %c0_i32_1 = arith.constant 0 : i32
    return %arg0, %c0_i32, %arg1, %c0_i32_0 : i32, i32, i32, i32
  }
  func.func @transform_1(%arg0: i32, %arg1: i32) -> (i32, i32, i32) {
    %c0_i32 = arith.constant 0 : i32
    %c0_i32_0 = arith.constant 0 : i32
    %c0_i32_1 = arith.constant 0 : i32
    return %arg0, %c0_i32, %c0_i32_0 : i32, i32, i32
  }
}

module attributes {stable_mosaic.version = 11 : i64} {
  func.func @gn_silu_conv_kernel(%arg0: i32, %arg1: i32, %arg2: memref<1x4x16x128xf32, #tpu.memory_space<vmem>>, %arg3: memref<1x1x128xf32, #tpu.memory_space<vmem>>, %arg4: memref<1x1x128xf32, #tpu.memory_space<vmem>>, %arg5: memref<384x128xbf16, #tpu.memory_space<vmem>>, %arg6: memref<1x128xf32, #tpu.memory_space<vmem>>, %arg7: memref<1x4x16x128xbf16, #tpu.memory_space<vmem>>, %arg8: memref<64x384xbf16, #tpu.memory_space<vmem>>) attributes {dimension_semantics = [#tpu.dimension_semantics<parallel>, #tpu.dimension_semantics<parallel>], iteration_bounds = array<i64: 2, 4>, scalar_prefetch = 0 : i64, scratch_operands = 1 : i64, tpu.core_type = #tpu.core_type<tc>, window_params = [{transform_indices = @transform_0, window_bounds = array<i64: 1, 4, 16, 128>}, {transform_indices = @transform_1, window_bounds = array<i64: 1, 1, 128>}, {transform_indices = @transform_2, window_bounds = array<i64: 1, 1, 128>}, {pipeline_mode = #tpu.pipeline_mode<synchronous>, transform_indices = @transform_3, window_bounds = array<i64: 384, 128>}, {pipeline_mode = #tpu.pipeline_mode<synchronous>, transform_indices = @transform_4, window_bounds = array<i64: 1, 128>}, {transform_indices = @transform_5, window_bounds = array<i64: 1, 4, 16, 128>}]} {
    %c0 = arith.constant 0 : index
    %c0_0 = arith.constant 0 : index
    %c0_1 = arith.constant 0 : index
    %c0_2 = arith.constant 0 : index
    %0 = vector.load %arg2[%c0, %c0_0, %c0_1, %c0_2] : memref<1x4x16x128xf32, #tpu.memory_space<vmem>>, vector<1x4x16x128xf32>
    %1 = vector.shape_cast %0 : vector<1x4x16x128xf32> to vector<4x16x128xf32>
    %c0_3 = arith.constant 0 : index
    %c0_4 = arith.constant 0 : index
    %c0_5 = arith.constant 0 : index
    %2 = vector.load %arg3[%c0_3, %c0_4, %c0_5] : memref<1x1x128xf32, #tpu.memory_space<vmem>>, vector<1x1x128xf32>
    %3 = vector.shape_cast %2 : vector<1x1x128xf32> to vector<1x128xf32>
    %4 = vector.shape_cast %3 : vector<1x128xf32> to vector<1x1x128xf32>
    %5 = vector.broadcast %4 : vector<1x1x128xf32> to vector<4x16x128xf32>
    %6 = arith.mulf %1, %5 : vector<4x16x128xf32>
    %c0_6 = arith.constant 0 : index
    %c0_7 = arith.constant 0 : index
    %c0_8 = arith.constant 0 : index
    %7 = vector.load %arg4[%c0_6, %c0_7, %c0_8] : memref<1x1x128xf32, #tpu.memory_space<vmem>>, vector<1x1x128xf32>
    %8 = vector.shape_cast %7 : vector<1x1x128xf32> to vector<1x128xf32>
    %9 = vector.shape_cast %8 : vector<1x128xf32> to vector<1x1x128xf32>
    %10 = vector.broadcast %9 : vector<1x1x128xf32> to vector<4x16x128xf32>
    %11 = arith.addf %6, %10 : vector<4x16x128xf32>
    %12 = arith.truncf %11 : vector<4x16x128xf32> to vector<4x16x128xbf16>
    %13 = arith.negf %12 : vector<4x16x128xbf16>
    %14 = math.exp %13 : vector<4x16x128xbf16>
    %cst = arith.constant 1.000000e+00 : bf16
    %15 = vector.broadcast %cst : bf16 to vector<4x16x128xbf16>
    %16 = arith.addf %15, %14 : vector<4x16x128xbf16>
    %17 = arith.divf %15, %16 : vector<4x16x128xbf16>
    %18 = arith.mulf %12, %17 : vector<4x16x128xbf16>
    %19 = vector.shape_cast %18 : vector<4x16x128xbf16> to vector<64x128xbf16>
    %cst_9 = arith.constant 0.000000e+00 : bf16
    %20 = vector.broadcast %cst_9 : bf16 to vector<16x128xbf16>
    %c0_10 = arith.constant 0 : index
    %c0_11 = arith.constant 0 : index
    %21 = vector.load %arg8[%c0_10, %c0_11] : memref<64x384xbf16, #tpu.memory_space<vmem>>, vector<16x128xbf16>
    tpu.vector_store %arg8[%c0_10, %c0_11], %20 {strides = array<i32>} : memref<64x384xbf16, #tpu.memory_space<vmem>>, vector<16x128xbf16>,
    %c48 = arith.constant 48 : index
    %c256 = arith.constant 256 : index
    %22 = vector.load %arg8[%c48, %c256] : memref<64x384xbf16, #tpu.memory_space<vmem>>, vector<16x128xbf16>
    tpu.vector_store %arg8[%c48, %c256], %20 {strides = array<i32>} : memref<64x384xbf16, #tpu.memory_space<vmem>>, vector<16x128xbf16>,
    %23 = vector.extract_strided_slice %19 {offsets = [0, 0], sizes = [48, 128], strides = [1, 1]} : vector<64x128xbf16> to vector<48x128xbf16>
    %c16 = arith.constant 16 : index
    %c0_12 = arith.constant 0 : index
    %24 = vector.load %arg8[%c16, %c0_12] : memref<64x384xbf16, #tpu.memory_space<vmem>>, vector<48x128xbf16>
    tpu.vector_store %arg8[%c16, %c0_12], %23 {strides = array<i32>} : memref<64x384xbf16, #tpu.memory_space<vmem>>, vector<48x128xbf16>,
    %25 = vector.extract_strided_slice %19 {offsets = [16, 0], sizes = [48, 128], strides = [1, 1]} : vector<64x128xbf16> to vector<48x128xbf16>
    %c0_13 = arith.constant 0 : index
    %c256_14 = arith.constant 256 : index
    %26 = vector.load %arg8[%c0_13, %c256_14] : memref<64x384xbf16, #tpu.memory_space<vmem>>, vector<48x128xbf16>
    tpu.vector_store %arg8[%c0_13, %c256_14], %25 {strides = array<i32>} : memref<64x384xbf16, #tpu.memory_space<vmem>>, vector<48x128xbf16>,
    %c0_15 = arith.constant 0 : index
    %c128 = arith.constant 128 : index
    %27 = vector.load %arg8[%c0_15, %c128] : memref<64x384xbf16, #tpu.memory_space<vmem>>, vector<64x128xbf16>
    tpu.vector_store %arg8[%c0_15, %c128], %19 {strides = array<i32>} : memref<64x384xbf16, #tpu.memory_space<vmem>>, vector<64x128xbf16>,
    %c0_16 = arith.constant 0 : index
    %c0_17 = arith.constant 0 : index
    %28 = vector.load %arg8[%c0_16, %c0_17] : memref<64x384xbf16, #tpu.memory_space<vmem>>, vector<64x384xbf16>
    %c0_18 = arith.constant 0 : index
    %c0_19 = arith.constant 0 : index
    %29 = vector.load %arg5[%c0_18, %c0_19] : memref<384x128xbf16, #tpu.memory_space<vmem>>, vector<384x128xbf16>
    %cst_20 = arith.constant dense<0.000000e+00> : vector<64x128xf32>
    %30 = tpu.matmul %28, %29, %cst_20 {dimension_numbers = #tpu.dot_dimension_numbers<[1], [0], [0], [1], [0, 0, 1, 1], [], []>} : vector<64x384xbf16>, vector<384x128xbf16>, vector<64x128xf32> -> vector<64x128xf32>
    %c0_21 = arith.constant 0 : index
    %c0_22 = arith.constant 0 : index
    %31 = vector.load %arg6[%c0_21, %c0_22] : memref<1x128xf32, #tpu.memory_space<vmem>>, vector<1x128xf32>
    %32 = vector.broadcast %31 : vector<1x128xf32> to vector<64x128xf32>
    %33 = arith.addf %30, %32 : vector<64x128xf32>
    %34 = vector.shape_cast %33 : vector<64x128xf32> to vector<4x16x128xf32>
    %35 = arith.truncf %34 : vector<4x16x128xf32> to vector<4x16x128xbf16>
    %c0_23 = arith.constant 0 : index
    %c0_24 = arith.constant 0 : index
    %c0_25 = arith.constant 0 : index
    %c0_26 = arith.constant 0 : index
    %36 = vector.load %arg7[%c0_23, %c0_24, %c0_25, %c0_26] : memref<1x4x16x128xbf16, #tpu.memory_space<vmem>>, vector<1x4x16x128xbf16>
    %37 = vector.shape_cast %36 : vector<1x4x16x128xbf16> to vector<4x16x128xbf16>
    %38 = vector.shape_cast %35 : vector<4x16x128xbf16> to vector<1x4x16x128xbf16>
    tpu.vector_store %arg7[%c0_23, %c0_24, %c0_25, %c0_26], %38 {strides = array<i32>} : memref<1x4x16x128xbf16, #tpu.memory_space<vmem>>, vector<1x4x16x128xbf16>,
    return
  }
  func.func @transform_0(%arg0: i32, %arg1: i32) -> (i32, i32, i32, i32) {
    %c0_i32 = arith.constant 0 : i32
    %c0_i32_0 = arith.constant 0 : i32
    %c0_i32_1 = arith.constant 0 : i32
    return %arg0, %c0_i32, %arg1, %c0_i32_0 : i32, i32, i32, i32
  }
  func.func @transform_1(%arg0: i32, %arg1: i32) -> (i32, i32, i32) {
    %c0_i32 = arith.constant 0 : i32
    %c0_i32_0 = arith.constant 0 : i32
    %c0_i32_1 = arith.constant 0 : i32
    return %arg0, %c0_i32, %c0_i32_0 : i32, i32, i32
  }
  func.func @transform_2(%arg0: i32, %arg1: i32) -> (i32, i32, i32) {
    %c0_i32 = arith.constant 0 : i32
    %c0_i32_0 = arith.constant 0 : i32
    %c0_i32_1 = arith.constant 0 : i32
    return %arg0, %c0_i32, %c0_i32_0 : i32, i32, i32
  }
  func.func @transform_3(%arg0: i32, %arg1: i32) -> (i32, i32) {
    %c0_i32 = arith.constant 0 : i32
    %c0_i32_0 = arith.constant 0 : i32
    %c0_i32_1 = arith.constant 0 : i32
    return %c0_i32, %c0_i32_0 : i32, i32
  }
  func.func @transform_4(%arg0: i32, %arg1: i32) -> (i32, i32) {
    %c0_i32 = arith.constant 0 : i32
    %c0_i32_0 = arith.constant 0 : i32
    %c0_i32_1 = arith.constant 0 : i32
    return %c0_i32, %c0_i32_0 : i32, i32
  }
  func.func @transform_5(%arg0: i32, %arg1: i32) -> (i32, i32, i32, i32) {
    %c0_i32 = arith.constant 0 : i32
    %c0_i32_0 = arith.constant 0 : i32
    %c0_i32_1 = arith.constant 0 : i32
    return %arg0, %c0_i32, %arg1, %c0_i32_0 : i32, i32, i32, i32
  }
}

module attributes {stable_mosaic.version = 11 : i64} {
  func.func @gn_silu_conv_kernel(%arg0: i32, %arg1: i32, %arg2: memref<1x4x16x128xbf16, #tpu.memory_space<vmem>>, %arg3: memref<1x1x128xf32, #tpu.memory_space<vmem>>, %arg4: memref<1x1x128xf32, #tpu.memory_space<vmem>>, %arg5: memref<384x128xbf16, #tpu.memory_space<vmem>>, %arg6: memref<1x128xf32, #tpu.memory_space<vmem>>, %arg7: memref<1x4x16x128xbf16, #tpu.memory_space<vmem>>, %arg8: memref<64x384xbf16, #tpu.memory_space<vmem>>) attributes {dimension_semantics = [#tpu.dimension_semantics<parallel>, #tpu.dimension_semantics<parallel>], iteration_bounds = array<i64: 2, 4>, scalar_prefetch = 0 : i64, scratch_operands = 1 : i64, tpu.core_type = #tpu.core_type<tc>, window_params = [{transform_indices = @transform_0, window_bounds = array<i64: 1, 4, 16, 128>}, {transform_indices = @transform_1, window_bounds = array<i64: 1, 1, 128>}, {transform_indices = @transform_2, window_bounds = array<i64: 1, 1, 128>}, {pipeline_mode = #tpu.pipeline_mode<synchronous>, transform_indices = @transform_3, window_bounds = array<i64: 384, 128>}, {pipeline_mode = #tpu.pipeline_mode<synchronous>, transform_indices = @transform_4, window_bounds = array<i64: 1, 128>}, {transform_indices = @transform_5, window_bounds = array<i64: 1, 4, 16, 128>}]} {
    %c0 = arith.constant 0 : index
    %c0_0 = arith.constant 0 : index
    %c0_1 = arith.constant 0 : index
    %c0_2 = arith.constant 0 : index
    %0 = vector.load %arg2[%c0, %c0_0, %c0_1, %c0_2] : memref<1x4x16x128xbf16, #tpu.memory_space<vmem>>, vector<1x4x16x128xbf16>
    %1 = vector.shape_cast %0 : vector<1x4x16x128xbf16> to vector<4x16x128xbf16>
    %2 = arith.extf %1 : vector<4x16x128xbf16> to vector<4x16x128xf32>
    %c0_3 = arith.constant 0 : index
    %c0_4 = arith.constant 0 : index
    %c0_5 = arith.constant 0 : index
    %3 = vector.load %arg3[%c0_3, %c0_4, %c0_5] : memref<1x1x128xf32, #tpu.memory_space<vmem>>, vector<1x1x128xf32>
    %4 = vector.shape_cast %3 : vector<1x1x128xf32> to vector<1x128xf32>
    %5 = vector.shape_cast %4 : vector<1x128xf32> to vector<1x1x128xf32>
    %6 = vector.broadcast %5 : vector<1x1x128xf32> to vector<4x16x128xf32>
    %7 = arith.mulf %2, %6 : vector<4x16x128xf32>
    %c0_6 = arith.constant 0 : index
    %c0_7 = arith.constant 0 : index
    %c0_8 = arith.constant 0 : index
    %8 = vector.load %arg4[%c0_6, %c0_7, %c0_8] : memref<1x1x128xf32, #tpu.memory_space<vmem>>, vector<1x1x128xf32>
    %9 = vector.shape_cast %8 : vector<1x1x128xf32> to vector<1x128xf32>
    %10 = vector.shape_cast %9 : vector<1x128xf32> to vector<1x1x128xf32>
    %11 = vector.broadcast %10 : vector<1x1x128xf32> to vector<4x16x128xf32>
    %12 = arith.addf %7, %11 : vector<4x16x128xf32>
    %13 = arith.truncf %12 : vector<4x16x128xf32> to vector<4x16x128xbf16>
    %14 = arith.negf %13 : vector<4x16x128xbf16>
    %15 = math.exp %14 : vector<4x16x128xbf16>
    %cst = arith.constant 1.000000e+00 : bf16
    %16 = vector.broadcast %cst : bf16 to vector<4x16x128xbf16>
    %17 = arith.addf %16, %15 : vector<4x16x128xbf16>
    %18 = arith.divf %16, %17 : vector<4x16x128xbf16>
    %19 = arith.mulf %13, %18 : vector<4x16x128xbf16>
    %20 = vector.shape_cast %19 : vector<4x16x128xbf16> to vector<64x128xbf16>
    %cst_9 = arith.constant 0.000000e+00 : bf16
    %21 = vector.broadcast %cst_9 : bf16 to vector<16x128xbf16>
    %c0_10 = arith.constant 0 : index
    %c0_11 = arith.constant 0 : index
    %22 = vector.load %arg8[%c0_10, %c0_11] : memref<64x384xbf16, #tpu.memory_space<vmem>>, vector<16x128xbf16>
    tpu.vector_store %arg8[%c0_10, %c0_11], %21 {strides = array<i32>} : memref<64x384xbf16, #tpu.memory_space<vmem>>, vector<16x128xbf16>,
    %c48 = arith.constant 48 : index
    %c256 = arith.constant 256 : index
    %23 = vector.load %arg8[%c48, %c256] : memref<64x384xbf16, #tpu.memory_space<vmem>>, vector<16x128xbf16>
    tpu.vector_store %arg8[%c48, %c256], %21 {strides = array<i32>} : memref<64x384xbf16, #tpu.memory_space<vmem>>, vector<16x128xbf16>,
    %24 = vector.extract_strided_slice %20 {offsets = [0, 0], sizes = [48, 128], strides = [1, 1]} : vector<64x128xbf16> to vector<48x128xbf16>
    %c16 = arith.constant 16 : index
    %c0_12 = arith.constant 0 : index
    %25 = vector.load %arg8[%c16, %c0_12] : memref<64x384xbf16, #tpu.memory_space<vmem>>, vector<48x128xbf16>
    tpu.vector_store %arg8[%c16, %c0_12], %24 {strides = array<i32>} : memref<64x384xbf16, #tpu.memory_space<vmem>>, vector<48x128xbf16>,
    %26 = vector.extract_strided_slice %20 {offsets = [16, 0], sizes = [48, 128], strides = [1, 1]} : vector<64x128xbf16> to vector<48x128xbf16>
    %c0_13 = arith.constant 0 : index
    %c256_14 = arith.constant 256 : index
    %27 = vector.load %arg8[%c0_13, %c256_14] : memref<64x384xbf16, #tpu.memory_space<vmem>>, vector<48x128xbf16>
    tpu.vector_store %arg8[%c0_13, %c256_14], %26 {strides = array<i32>} : memref<64x384xbf16, #tpu.memory_space<vmem>>, vector<48x128xbf16>,
    %c0_15 = arith.constant 0 : index
    %c128 = arith.constant 128 : index
    %28 = vector.load %arg8[%c0_15, %c128] : memref<64x384xbf16, #tpu.memory_space<vmem>>, vector<64x128xbf16>
    tpu.vector_store %arg8[%c0_15, %c128], %20 {strides = array<i32>} : memref<64x384xbf16, #tpu.memory_space<vmem>>, vector<64x128xbf16>,
    %c0_16 = arith.constant 0 : index
    %c0_17 = arith.constant 0 : index
    %29 = vector.load %arg8[%c0_16, %c0_17] : memref<64x384xbf16, #tpu.memory_space<vmem>>, vector<64x384xbf16>
    %c0_18 = arith.constant 0 : index
    %c0_19 = arith.constant 0 : index
    %30 = vector.load %arg5[%c0_18, %c0_19] : memref<384x128xbf16, #tpu.memory_space<vmem>>, vector<384x128xbf16>
    %cst_20 = arith.constant dense<0.000000e+00> : vector<64x128xf32>
    %31 = tpu.matmul %29, %30, %cst_20 {dimension_numbers = #tpu.dot_dimension_numbers<[1], [0], [0], [1], [0, 0, 1, 1], [], []>} : vector<64x384xbf16>, vector<384x128xbf16>, vector<64x128xf32> -> vector<64x128xf32>
    %c0_21 = arith.constant 0 : index
    %c0_22 = arith.constant 0 : index
    %32 = vector.load %arg6[%c0_21, %c0_22] : memref<1x128xf32, #tpu.memory_space<vmem>>, vector<1x128xf32>
    %33 = vector.broadcast %32 : vector<1x128xf32> to vector<64x128xf32>
    %34 = arith.addf %31, %33 : vector<64x128xf32>
    %35 = vector.shape_cast %34 : vector<64x128xf32> to vector<4x16x128xf32>
    %36 = arith.truncf %35 : vector<4x16x128xf32> to vector<4x16x128xbf16>
    %c0_23 = arith.constant 0 : index
    %c0_24 = arith.constant 0 : index
    %c0_25 = arith.constant 0 : index
    %c0_26 = arith.constant 0 : index
    %37 = vector.load %arg7[%c0_23, %c0_24, %c0_25, %c0_26] : memref<1x4x16x128xbf16, #tpu.memory_space<vmem>>, vector<1x4x16x128xbf16>
    %38 = vector.shape_cast %37 : vector<1x4x16x128xbf16> to vector<4x16x128xbf16>
    %39 = vector.shape_cast %36 : vector<4x16x128xbf16> to vector<1x4x16x128xbf16>
    tpu.vector_store %arg7[%c0_23, %c0_24, %c0_25, %c0_26], %39 {strides = array<i32>} : memref<1x4x16x128xbf16, #tpu.memory_space<vmem>>, vector<1x4x16x128xbf16>,
    return
  }
  func.func @transform_0(%arg0: i32, %arg1: i32) -> (i32, i32, i32, i32) {
    %c0_i32 = arith.constant 0 : i32
    %c0_i32_0 = arith.constant 0 : i32
    %c0_i32_1 = arith.constant 0 : i32
    return %arg0, %c0_i32, %arg1, %c0_i32_0 : i32, i32, i32, i32
  }
  func.func @transform_1(%arg0: i32, %arg1: i32) -> (i32, i32, i32) {
    %c0_i32 = arith.constant 0 : i32
    %c0_i32_0 = arith.constant 0 : i32
    %c0_i32_1 = arith.constant 0 : i32
    return %arg0, %c0_i32, %c0_i32_0 : i32, i32, i32
  }
  func.func @transform_2(%arg0: i32, %arg1: i32) -> (i32, i32, i32) {
    %c0_i32 = arith.constant 0 : i32
    %c0_i32_0 = arith.constant 0 : i32
    %c0_i32_1 = arith.constant 0 : i32
    return %arg0, %c0_i32, %c0_i32_0 : i32, i32, i32
  }
  func.func @transform_3(%arg0: i32, %arg1: i32) -> (i32, i32) {
    %c0_i32 = arith.constant 0 : i32
    %c0_i32_0 = arith.constant 0 : i32
    %c0_i32_1 = arith.constant 0 : i32
    return %c0_i32, %c0_i32_0 : i32, i32
  }
  func.func @transform_4(%arg0: i32, %arg1: i32) -> (i32, i32) {
    %c0_i32 = arith.constant 0 : i32
    %c0_i32_0 = arith.constant 0 : i32
    %c0_i32_1 = arith.constant 0 : i32
    return %c0_i32, %c0_i32_0 : i32, i32
  }
  func.func @transform_5(%arg0: i32, %arg1: i32) -> (i32, i32, i32, i32) {
    %c0_i32 = arith.constant 0 : i32
    %c0_i32_0 = arith.constant 0 : i32
    %c0_i32_1 = arith.constant 0 : i32
    return %arg0, %c0_i32, %arg1, %c0_i32_0 : i32, i32, i32, i32
  }
}

module attributes {stable_mosaic.version = 11 : i64} {
  func.func @gn_stats_kernel(%arg0: i32, %arg1: i32, %arg2: memref<1x4x16x128xbf16, #tpu.memory_space<vmem>>, %arg3: memref<1x2x128xf32, #tpu.memory_space<vmem>>) attributes {dimension_semantics = [#tpu.dimension_semantics<parallel>, #tpu.dimension_semantics<arbitrary>], iteration_bounds = array<i64: 2, 4>, scalar_prefetch = 0 : i64, scratch_operands = 0 : i64, tpu.core_type = #tpu.core_type<tc>, window_params = [{transform_indices = @transform_0, window_bounds = array<i64: 1, 4, 16, 128>}, {transform_indices = @transform_1, window_bounds = array<i64: 1, 2, 128>}]} {
    %c0_i32 = arith.constant 0 : i32
    %0 = arith.cmpi eq, %arg1, %c0_i32 : i32
    %1 = arith.extui %0 : i1 to i32
    %c0_i32_0 = arith.constant 0 : i32
    %2 = arith.cmpi ne, %1, %c0_i32_0 : i32
    scf.if %2 {
      %cst_11 = arith.constant 0.000000e+00 : f32
      %19 = vector.broadcast %cst_11 : f32 to vector<2x128xf32>
      %c0_12 = arith.constant 0 : index
      %c0_13 = arith.constant 0 : index
      %c0_14 = arith.constant 0 : index
      %20 = vector.load %arg3[%c0_12, %c0_13, %c0_14] : memref<1x2x128xf32, #tpu.memory_space<vmem>>, vector<1x2x128xf32>
      %21 = vector.shape_cast %20 : vector<1x2x128xf32> to vector<2x128xf32>
      %22 = vector.shape_cast %19 : vector<2x128xf32> to vector<1x2x128xf32>
      tpu.vector_store %arg3[%c0_12, %c0_13, %c0_14], %22 {strides = array<i32>} : memref<1x2x128xf32, #tpu.memory_space<vmem>>, vector<1x2x128xf32>,
    } else {
    }
    %c0 = arith.constant 0 : index
    %c0_1 = arith.constant 0 : index
    %c0_2 = arith.constant 0 : index
    %c0_3 = arith.constant 0 : index
    %3 = vector.load %arg2[%c0, %c0_1, %c0_2, %c0_3] : memref<1x4x16x128xbf16, #tpu.memory_space<vmem>>, vector<1x4x16x128xbf16>
    %4 = vector.shape_cast %3 : vector<1x4x16x128xbf16> to vector<4x16x128xbf16>
    %5 = arith.extf %4 : vector<4x16x128xbf16> to vector<4x16x128xf32>
    %6 = vector.shape_cast %5 : vector<4x16x128xf32> to vector<64x128xf32>
    %cst = arith.constant dense<0.000000e+00> : vector<128xf32>
    %7 = vector.multi_reduction <add>, %6, %cst [0] : vector<64x128xf32> to vector<128xf32>
    %8 = vector.shape_cast %7 : vector<128xf32> to vector<1x128xf32>
    %9 = arith.mulf %6, %6 : vector<64x128xf32>
    %cst_4 = arith.constant dense<0.000000e+00> : vector<128xf32>
    %10 = vector.multi_reduction <add>, %9, %cst_4 [0] : vector<64x128xf32> to vector<128xf32>
    %11 = vector.shape_cast %10 : vector<128xf32> to vector<1x128xf32>
    %c0_5 = arith.constant 0 : index
    %c0_6 = arith.constant 0 : index
    %c0_7 = arith.constant 0 : index
    %12 = vector.load %arg3[%c0_5, %c0_6, %c0_7] : memref<1x2x128xf32, #tpu.memory_space<vmem>>, vector<1x2x128xf32>
    %13 = vector.shape_cast %12 : vector<1x2x128xf32> to vector<2x128xf32>
    %14 = tpu.concatenate %8, %11 in 0 : vector<1x128xf32>, vector<1x128xf32> -> vector<2x128xf32>
    %15 = arith.addf %13, %14 : vector<2x128xf32>
    %c0_8 = arith.constant 0 : index
    %c0_9 = arith.constant 0 : index
    %c0_10 = arith.constant 0 : index
    %16 = vector.load %arg3[%c0_8, %c0_9, %c0_10] : memref<1x2x128xf32, #tpu.memory_space<vmem>>, vector<1x2x128xf32>
    %17 = vector.shape_cast %16 : vector<1x2x128xf32> to vector<2x128xf32>
    %18 = vector.shape_cast %15 : vector<2x128xf32> to vector<1x2x128xf32>
    tpu.vector_store %arg3[%c0_8, %c0_9, %c0_10], %18 {strides = array<i32>} : memref<1x2x128xf32, #tpu.memory_space<vmem>>, vector<1x2x128xf32>,
    return
  }
  func.func @transform_0(%arg0: i32, %arg1: i32) -> (i32, i32, i32, i32) {
    %c0_i32 = arith.constant 0 : i32
    %c0_i32_0 = arith.constant 0 : i32
    %c0_i32_1 = arith.constant 0 : i32
    return %arg0, %c0_i32, %arg1, %c0_i32_0 : i32, i32, i32, i32
  }
  func.func @transform_1(%arg0: i32, %arg1: i32) -> (i32, i32, i32) {
    %c0_i32 = arith.constant 0 : i32
    %c0_i32_0 = arith.constant 0 : i32
    %c0_i32_1 = arith.constant 0 : i32
    return %arg0, %c0_i32, %c0_i32_0 : i32, i32, i32
  }
}

module attributes {stable_mosaic.version = 11 : i64} {
  func.func @gn_silu_conv_kernel(%arg0: i32, %arg1: i32, %arg2: memref<1x4x16x128xbf16, #tpu.memory_space<vmem>>, %arg3: memref<1x1x128xf32, #tpu.memory_space<vmem>>, %arg4: memref<1x1x128xf32, #tpu.memory_space<vmem>>, %arg5: memref<384x128xbf16, #tpu.memory_space<vmem>>, %arg6: memref<1x128xf32, #tpu.memory_space<vmem>>, %arg7: memref<1x4x16x128xf32, #tpu.memory_space<vmem>>, %arg8: memref<1x4x16x128xf32, #tpu.memory_space<vmem>>, %arg9: memref<64x384xbf16, #tpu.memory_space<vmem>>) attributes {dimension_semantics = [#tpu.dimension_semantics<parallel>, #tpu.dimension_semantics<parallel>], iteration_bounds = array<i64: 2, 4>, scalar_prefetch = 0 : i64, scratch_operands = 1 : i64, tpu.core_type = #tpu.core_type<tc>, window_params = [{transform_indices = @transform_0, window_bounds = array<i64: 1, 4, 16, 128>}, {transform_indices = @transform_1, window_bounds = array<i64: 1, 1, 128>}, {transform_indices = @transform_2, window_bounds = array<i64: 1, 1, 128>}, {pipeline_mode = #tpu.pipeline_mode<synchronous>, transform_indices = @transform_3, window_bounds = array<i64: 384, 128>}, {pipeline_mode = #tpu.pipeline_mode<synchronous>, transform_indices = @transform_4, window_bounds = array<i64: 1, 128>}, {transform_indices = @transform_5, window_bounds = array<i64: 1, 4, 16, 128>}, {transform_indices = @transform_6, window_bounds = array<i64: 1, 4, 16, 128>}]} {
    %c0 = arith.constant 0 : index
    %c0_0 = arith.constant 0 : index
    %c0_1 = arith.constant 0 : index
    %c0_2 = arith.constant 0 : index
    %0 = vector.load %arg2[%c0, %c0_0, %c0_1, %c0_2] : memref<1x4x16x128xbf16, #tpu.memory_space<vmem>>, vector<1x4x16x128xbf16>
    %1 = vector.shape_cast %0 : vector<1x4x16x128xbf16> to vector<4x16x128xbf16>
    %2 = arith.extf %1 : vector<4x16x128xbf16> to vector<4x16x128xf32>
    %c0_3 = arith.constant 0 : index
    %c0_4 = arith.constant 0 : index
    %c0_5 = arith.constant 0 : index
    %3 = vector.load %arg3[%c0_3, %c0_4, %c0_5] : memref<1x1x128xf32, #tpu.memory_space<vmem>>, vector<1x1x128xf32>
    %4 = vector.shape_cast %3 : vector<1x1x128xf32> to vector<1x128xf32>
    %5 = vector.shape_cast %4 : vector<1x128xf32> to vector<1x1x128xf32>
    %6 = vector.broadcast %5 : vector<1x1x128xf32> to vector<4x16x128xf32>
    %7 = arith.mulf %2, %6 : vector<4x16x128xf32>
    %c0_6 = arith.constant 0 : index
    %c0_7 = arith.constant 0 : index
    %c0_8 = arith.constant 0 : index
    %8 = vector.load %arg4[%c0_6, %c0_7, %c0_8] : memref<1x1x128xf32, #tpu.memory_space<vmem>>, vector<1x1x128xf32>
    %9 = vector.shape_cast %8 : vector<1x1x128xf32> to vector<1x128xf32>
    %10 = vector.shape_cast %9 : vector<1x128xf32> to vector<1x1x128xf32>
    %11 = vector.broadcast %10 : vector<1x1x128xf32> to vector<4x16x128xf32>
    %12 = arith.addf %7, %11 : vector<4x16x128xf32>
    %13 = arith.truncf %12 : vector<4x16x128xf32> to vector<4x16x128xbf16>
    %14 = arith.negf %13 : vector<4x16x128xbf16>
    %15 = math.exp %14 : vector<4x16x128xbf16>
    %cst = arith.constant 1.000000e+00 : bf16
    %16 = vector.broadcast %cst : bf16 to vector<4x16x128xbf16>
    %17 = arith.addf %16, %15 : vector<4x16x128xbf16>
    %18 = arith.divf %16, %17 : vector<4x16x128xbf16>
    %19 = arith.mulf %13, %18 : vector<4x16x128xbf16>
    %20 = vector.shape_cast %19 : vector<4x16x128xbf16> to vector<64x128xbf16>
    %cst_9 = arith.constant 0.000000e+00 : bf16
    %21 = vector.broadcast %cst_9 : bf16 to vector<16x128xbf16>
    %c0_10 = arith.constant 0 : index
    %c0_11 = arith.constant 0 : index
    %22 = vector.load %arg9[%c0_10, %c0_11] : memref<64x384xbf16, #tpu.memory_space<vmem>>, vector<16x128xbf16>
    tpu.vector_store %arg9[%c0_10, %c0_11], %21 {strides = array<i32>} : memref<64x384xbf16, #tpu.memory_space<vmem>>, vector<16x128xbf16>,
    %c48 = arith.constant 48 : index
    %c256 = arith.constant 256 : index
    %23 = vector.load %arg9[%c48, %c256] : memref<64x384xbf16, #tpu.memory_space<vmem>>, vector<16x128xbf16>
    tpu.vector_store %arg9[%c48, %c256], %21 {strides = array<i32>} : memref<64x384xbf16, #tpu.memory_space<vmem>>, vector<16x128xbf16>,
    %24 = vector.extract_strided_slice %20 {offsets = [0, 0], sizes = [48, 128], strides = [1, 1]} : vector<64x128xbf16> to vector<48x128xbf16>
    %c16 = arith.constant 16 : index
    %c0_12 = arith.constant 0 : index
    %25 = vector.load %arg9[%c16, %c0_12] : memref<64x384xbf16, #tpu.memory_space<vmem>>, vector<48x128xbf16>
    tpu.vector_store %arg9[%c16, %c0_12], %24 {strides = array<i32>} : memref<64x384xbf16, #tpu.memory_space<vmem>>, vector<48x128xbf16>,
    %26 = vector.extract_strided_slice %20 {offsets = [16, 0], sizes = [48, 128], strides = [1, 1]} : vector<64x128xbf16> to vector<48x128xbf16>
    %c0_13 = arith.constant 0 : index
    %c256_14 = arith.constant 256 : index
    %27 = vector.load %arg9[%c0_13, %c256_14] : memref<64x384xbf16, #tpu.memory_space<vmem>>, vector<48x128xbf16>
    tpu.vector_store %arg9[%c0_13, %c256_14], %26 {strides = array<i32>} : memref<64x384xbf16, #tpu.memory_space<vmem>>, vector<48x128xbf16>,
    %c0_15 = arith.constant 0 : index
    %c128 = arith.constant 128 : index
    %28 = vector.load %arg9[%c0_15, %c128] : memref<64x384xbf16, #tpu.memory_space<vmem>>, vector<64x128xbf16>
    tpu.vector_store %arg9[%c0_15, %c128], %20 {strides = array<i32>} : memref<64x384xbf16, #tpu.memory_space<vmem>>, vector<64x128xbf16>,
    %c0_16 = arith.constant 0 : index
    %c0_17 = arith.constant 0 : index
    %29 = vector.load %arg9[%c0_16, %c0_17] : memref<64x384xbf16, #tpu.memory_space<vmem>>, vector<64x384xbf16>
    %c0_18 = arith.constant 0 : index
    %c0_19 = arith.constant 0 : index
    %30 = vector.load %arg5[%c0_18, %c0_19] : memref<384x128xbf16, #tpu.memory_space<vmem>>, vector<384x128xbf16>
    %cst_20 = arith.constant dense<0.000000e+00> : vector<64x128xf32>
    %31 = tpu.matmul %29, %30, %cst_20 {dimension_numbers = #tpu.dot_dimension_numbers<[1], [0], [0], [1], [0, 0, 1, 1], [], []>} : vector<64x384xbf16>, vector<384x128xbf16>, vector<64x128xf32> -> vector<64x128xf32>
    %c0_21 = arith.constant 0 : index
    %c0_22 = arith.constant 0 : index
    %32 = vector.load %arg6[%c0_21, %c0_22] : memref<1x128xf32, #tpu.memory_space<vmem>>, vector<1x128xf32>
    %33 = vector.broadcast %32 : vector<1x128xf32> to vector<64x128xf32>
    %34 = arith.addf %31, %33 : vector<64x128xf32>
    %35 = vector.shape_cast %34 : vector<64x128xf32> to vector<4x16x128xf32>
    %c0_23 = arith.constant 0 : index
    %c0_24 = arith.constant 0 : index
    %c0_25 = arith.constant 0 : index
    %c0_26 = arith.constant 0 : index
    %36 = vector.load %arg7[%c0_23, %c0_24, %c0_25, %c0_26] : memref<1x4x16x128xf32, #tpu.memory_space<vmem>>, vector<1x4x16x128xf32>
    %37 = vector.shape_cast %36 : vector<1x4x16x128xf32> to vector<4x16x128xf32>
    %38 = arith.addf %35, %37 : vector<4x16x128xf32>
    %c0_27 = arith.constant 0 : index
    %c0_28 = arith.constant 0 : index
    %c0_29 = arith.constant 0 : index
    %c0_30 = arith.constant 0 : index
    %39 = vector.load %arg8[%c0_27, %c0_28, %c0_29, %c0_30] : memref<1x4x16x128xf32, #tpu.memory_space<vmem>>, vector<1x4x16x128xf32>
    %40 = vector.shape_cast %39 : vector<1x4x16x128xf32> to vector<4x16x128xf32>
    %41 = vector.shape_cast %38 : vector<4x16x128xf32> to vector<1x4x16x128xf32>
    tpu.vector_store %arg8[%c0_27, %c0_28, %c0_29, %c0_30], %41 {strides = array<i32>} : memref<1x4x16x128xf32, #tpu.memory_space<vmem>>, vector<1x4x16x128xf32>,
    return
  }
  func.func @transform_0(%arg0: i32, %arg1: i32) -> (i32, i32, i32, i32) {
    %c0_i32 = arith.constant 0 : i32
    %c0_i32_0 = arith.constant 0 : i32
    %c0_i32_1 = arith.constant 0 : i32
    return %arg0, %c0_i32, %arg1, %c0_i32_0 : i32, i32, i32, i32
  }
  func.func @transform_1(%arg0: i32, %arg1: i32) -> (i32, i32, i32) {
    %c0_i32 = arith.constant 0 : i32
    %c0_i32_0 = arith.constant 0 : i32
    %c0_i32_1 = arith.constant 0 : i32
    return %arg0, %c0_i32, %c0_i32_0 : i32, i32, i32
  }
  func.func @transform_2(%arg0: i32, %arg1: i32) -> (i32, i32, i32) {
    %c0_i32 = arith.constant 0 : i32
    %c0_i32_0 = arith.constant 0 : i32
    %c0_i32_1 = arith.constant 0 : i32
    return %arg0, %c0_i32, %c0_i32_0 : i32, i32, i32
  }
  func.func @transform_3(%arg0: i32, %arg1: i32) -> (i32, i32) {
    %c0_i32 = arith.constant 0 : i32
    %c0_i32_0 = arith.constant 0 : i32
    %c0_i32_1 = arith.constant 0 : i32
    return %c0_i32, %c0_i32_0 : i32, i32
  }
  func.func @transform_4(%arg0: i32, %arg1: i32) -> (i32, i32) {
    %c0_i32 = arith.constant 0 : i32
    %c0_i32_0 = arith.constant 0 : i32
    %c0_i32_1 = arith.constant 0 : i32
    return %c0_i32, %c0_i32_0 : i32, i32
  }
  func.func @transform_5(%arg0: i32, %arg1: i32) -> (i32, i32, i32, i32) {
    %c0_i32 = arith.constant 0 : i32
    %c0_i32_0 = arith.constant 0 : i32
    %c0_i32_1 = arith.constant 0 : i32
    return %arg0, %c0_i32, %arg1, %c0_i32_0 : i32, i32, i32, i32
  }
  func.func @transform_6(%arg0: i32, %arg1: i32) -> (i32, i32, i32, i32) {
    %c0_i32 = arith.constant 0 : i32
    %c0_i32_0 = arith.constant 0 : i32
    %c0_i32_1 = arith.constant 0 : i32
    return %arg0, %c0_i32, %arg1, %c0_i32_0 : i32, i32, i32, i32
  }
}

</mosaic_0001>

<llo_original>
// kernel: squeeze.8
$region0: #{squeeze.8}
  %s0 = inlined_call_operand.vmem [shape: f32[2,128], index: 0, kind: input, shape index: {}]
  %s1 = inlined_call_operand.vmem [shape: f32[2,32,4], index: 1, kind: output, shape index: {}]
  $region1: #{squeeze.8} parent=0
    #allocation0 [shape = 'u8[4096]{0}', space=vmem, size = 0x1000, scoped, tag = 'scoped mem for input reshape']
    %s3 = ssub.s32 4, 1
    %v4 = vld [vmem:[%s0] sm:%s3]
    %5 = vst [vmem:[#allocation0] sm:%s3] %v4
    %v6 = vld [vmem:[#allocation0] sm:$0x3]
    %vm7 = vcmask 31744
    %8 = vst.msk [vmem:[%s1] sm:$0x1] %vm7, %v6
    %s9 = scalar_lea.vmem %s1, 31
    %10 = vst.msk [vmem:[%s9] sm:$0x2] %vm7, %v6
    %v11 = vld [vmem:[#allocation0] sm:$0x3]
    %12 = vrot.lane.b32.xlu0 %v11, 124
    %v13 = vpop.permute.xlu0 %12
    %vm14 = vcmask 31744
    %s15 = scalar_lea.vmem %s1, 1
    %16 = vst.msk [vmem:[%s15] sm:$0x1] %vm14, %v13
    %s17 = scalar_lea.vmem %s1, 32
    %18 = vst.msk [vmem:[%s17] sm:$0x2] %vm14, %v13
    %v19 = vld [vmem:[#allocation0] sm:$0x3]
    %20 = vrot.lane.b32.xlu0 %v19, 120
    %v21 = vpop.permute.xlu0 %20
    %vm22 = vcmask 31744
    %s23 = scalar_lea.vmem %s1, 2
    %24 = vst.msk [vmem:[%s23] sm:$0x1] %vm22, %v21
    %s25 = scalar_lea.vmem %s1, 33
    %26 = vst.msk [vmem:[%s25] sm:$0x2] %vm22, %v21
    %v27 = vld [vmem:[#allocation0] sm:$0x3]
    %28 = vrot.lane.b32.xlu0 %v27, 116
    %v29 = vpop.permute.xlu0 %28
    %vm30 = vcmask 31744
    %s31 = scalar_lea.vmem %s1, 3
    %32 = vst.msk [vmem:[%s31] sm:$0x1] %vm30, %v29
    %s33 = scalar_lea.vmem %s1, 34
    %34 = vst.msk [vmem:[%s33] sm:$0x2] %vm30, %v29
    %v35 = vld [vmem:[#allocation0] sm:$0x3]
    %36 = vrot.lane.b32.xlu0 %v35, 112
    %v37 = vpop.permute.xlu0 %36
    %vm38 = vcmask 31744
    %s39 = scalar_lea.vmem %s1, 4
    %40 = vst.msk [vmem:[%s39] sm:$0x1] %vm38, %v37
    %s41 = scalar_lea.vmem %s1, 35
    %42 = vst.msk [vmem:[%s41] sm:$0x2] %vm38, %v37
    %v43 = vld [vmem:[#allocation0] sm:$0x3]
    %44 = vrot.lane.b32.xlu0 %v43, 108
    %v45 = vpop.permute.xlu0 %44
    %vm46 = vcmask 31744
    %s47 = scalar_lea.vmem %s1, 5
    %48 = vst.msk [vmem:[%s47] sm:$0x1] %vm46, %v45
    %s49 = scalar_lea.vmem %s1, 36
    %50 = vst.msk [vmem:[%s49] sm:$0x2] %vm46, %v45
    %v51 = vld [vmem:[#allocation0] sm:$0x3]
    %52 = vrot.lane.b32.xlu0 %v51, 104
    %v53 = vpop.permute.xlu0 %52
    %vm54 = vcmask 31744
    %s55 = scalar_lea.vmem %s1, 6
    %56 = vst.msk [vmem:[%s55] sm:$0x1] %vm54, %v53
    %s57 = scalar_lea.vmem %s1, 37
    %58 = vst.msk [vmem:[%s57] sm:$0x2] %vm54, %v53
    %v59 = vld [vmem:[#allocation0] sm:$0x3]
    %60 = vrot.lane.b32.xlu0 %v59, 100
    %v61 = vpop.permute.xlu0 %60
    %vm62 = vcmask 31744
    %s63 = scalar_lea.vmem %s1, 7
    %64 = vst.msk [vmem:[%s63] sm:$0x1] %vm62, %v61
    %s65 = scalar_lea.vmem %s1, 38
    %66 = vst.msk [vmem:[%s65] sm:$0x2] %vm62, %v61
    %v67 = vld [vmem:[#allocation0] sm:$0x3]
    %68 = vrot.lane.b32.xlu0 %v67, 96
    %v69 = vpop.permute.xlu0 %68
    %vm70 = vcmask 31744
    %s71 = scalar_lea.vmem %s1, 8
    %72 = vst.msk [vmem:[%s71] sm:$0x1] %vm70, %v69
    %s73 = scalar_lea.vmem %s1, 39
    %74 = vst.msk [vmem:[%s73] sm:$0x2] %vm70, %v69
    %v75 = vld [vmem:[#allocation0] sm:$0x3]
    %76 = vrot.lane.b32.xlu0 %v75, 92
    %v77 = vpop.permute.xlu0 %76
    %vm78 = vcmask 31744
    %s79 = scalar_lea.vmem %s1, 9
    %80 = vst.msk [vmem:[%s79] sm:$0x1] %vm78, %v77
    %s81 = scalar_lea.vmem %s1, 40
    %82 = vst.msk [vmem:[%s81] sm:$0x2] %vm78, %v77
    %v83 = vld [vmem:[#allocation0] sm:$0x3]
    %84 = vrot.lane.b32.xlu0 %v83, 88
    %v85 = vpop.permute.xlu0 %84
    %vm86 = vcmask 31744
    %s87 = scalar_lea.vmem %s1, 10
    %88 = vst.msk [vmem:[%s87] sm:$0x1] %vm86, %v85
    %s89 = scalar_lea.vmem %s1, 41
    %90 = vst.msk [vmem:[%s89] sm:$0x2] %vm86, %v85
    %v91 = vld [vmem:[#allocation0] sm:$0x3]
    %92 = vrot.lane.b32.xlu0 %v91, 84
    %v93 = vpop.permute.xlu0 %92
    %vm94 = vcmask 31744
    %s95 = scalar_lea.vmem %s1, 11
    %96 = vst.msk [vmem:[%s95] sm:$0x1] %vm94, %v93
    %s97 = scalar_lea.vmem %s1, 42
    %98 = vst.msk [vmem:[%s97] sm:$0x2] %vm94, %v93
    %v99 = vld [vmem:[#allocation0] sm:$0x3]
    %100 = vrot.lane.b32.xlu0 %v99, 80
    %v101 = vpop.permute.xlu0 %100
    %vm102 = vcmask 31744
    %s103 = scalar_lea.vmem %s1, 12
    %104 = vst.msk [vmem:[%s103] sm:$0x1] %vm102, %v101
    %s105 = scalar_lea.vmem %s1, 43
    %106 = vst.msk [vmem:[%s105] sm:$0x2] %vm102, %v101
    %v107 = vld [vmem:[#allocation0] sm:$0x3]
    %108 = vrot.lane.b32.xlu0 %v107, 76
    %v109 = vpop.permute.xlu0 %108
    %vm110 = vcmask 31744
    %s111 = scalar_lea.vmem %s1, 13
    %112 = vst.msk [vmem:[%s111] sm:$0x1] %vm110, %v109
    %s113 = scalar_lea.vmem %s1, 44
    %114 = vst.msk [vmem:[%s113] sm:$0x2] %vm110, %v109
    %v115 = vld [vmem:[#allocation0] sm:$0x3]
    %116 = vrot.lane.b32.xlu0 %v115, 72
    %v117 = vpop.permute.xlu0 %116
    %vm118 = vcmask 31744
    %s119 = scalar_lea.vmem %s1, 14
    %120 = vst.msk [vmem:[%s119] sm:$0x1] %vm118, %v117
    %s121 = scalar_lea.vmem %s1, 45
    %122 = vst.msk [vmem:[%s121] sm:$0x2] %vm118, %v117
    %v123 = vld [vmem:[#allocation0] sm:$0x3]
    %124 = vrot.lane.b32.xlu0 %v123, 68
    %v125 = vpop.permute.xlu0 %124
    %vm126 = vcmask 31744
    %s127 = scalar_lea.vmem %s1, 15
    %128 = vst.msk [vmem:[%s127] sm:$0x1] %vm126, %v125
    %s129 = scalar_lea.vmem %s1, 46
    %130 = vst.msk [vmem:[%s129] sm:$0x2] %vm126, %v125
    %v131 = vld [vmem:[#allocation0] sm:$0x3]
    %132 = vrot.lane.b32.xlu0 %v131, 64
    %v133 = vpop.permute.xlu0 %132
    %vm134 = vcmask 31744
    %s135 = scalar_lea.vmem %s1, 16
    %136 = vst.msk [vmem:[%s135] sm:$0x1] %vm134, %v133
    %s137 = scalar_lea.vmem %s1, 47
    %138 = vst.msk [vmem:[%s137] sm:$0x2] %vm134, %v133
    %v139 = vld [vmem:[#allocation0] sm:$0x3]
    %140 = vrot.lane.b32.xlu0 %v139, 60
    %v141 = vpop.permute.xlu0 %140
    %vm142 = vcmask 31744
    %s143 = scalar_lea.vmem %s1, 17
    %144 = vst.msk [vmem:[%s143] sm:$0x1] %vm142, %v141
    %s145 = scalar_lea.vmem %s1, 48
    %146 = vst.msk [vmem:[%s145] sm:$0x2] %vm142, %v141
    %v147 = vld [vmem:[#allocation0] sm:$0x3]
    %148 = vrot.lane.b32.xlu0 %v147, 56
    %v149 = vpop.permute.xlu0 %148
    %vm150 = vcmask 31744
    %s151 = scalar_lea.vmem %s1, 18
    %152 = vst.msk [vmem:[%s151] sm:$0x1] %vm150, %v149
    %s153 = scalar_lea.vmem %s1, 49
    %154 = vst.msk [vmem:[%s153] sm:$0x2] %vm150, %v149
    %v155 = vld [vmem:[#allocation0] sm:$0x3]
    %156 = vrot.lane.b32.xlu0 %v155, 52
    %v157 = vpop.permute.xlu0 %156
    %vm158 = vcmask 31744
    %s159 = scalar_lea.vmem %s1, 19
    %160 = vst.msk [vmem:[%s159] sm:$0x1] %vm158, %v157
    %s161 = scalar_lea.vmem %s1, 50
    %162 = vst.msk [vmem:[%s161] sm:$0x2] %vm158, %v157
    %v163 = vld [vmem:[#allocation0] sm:$0x3]
    %164 = vrot.lane.b32.xlu0 %v163, 48
    %v165 = vpop.permute.xlu0 %164
    %vm166 = vcmask 31744
    %s167 = scalar_lea.vmem %s1, 20
    %168 = vst.msk [vmem:[%s167] sm:$0x1] %vm166, %v165
    %s169 = scalar_lea.vmem %s1, 51
    %170 = vst.msk [vmem:[%s169] sm:$0x2] %vm166, %v165
    %v171 = vld [vmem:[#allocation0] sm:$0x3]
    %172 = vrot.lane.b32.xlu0 %v171, 44
    %v173 = vpop.permute.xlu0 %172
    %vm174 = vcmask 31744
    %s175 = scalar_lea.vmem %s1, 21
    %176 = vst.msk [vmem:[%s175] sm:$0x1] %vm174, %v173
    %s177 = scalar_lea.vmem %s1, 52
    %178 = vst.msk [vmem:[%s177] sm:$0x2] %vm174, %v173
    %v179 = vld [vmem:[#allocation0] sm:$0x3]
    %180 = vrot.lane.b32.xlu0 %v179, 40
    %v181 = vpop.permute.xlu0 %180
    %vm182 = vcmask 31744
    %s183 = scalar_lea.vmem %s1, 22
    %184 = vst.msk [vmem:[%s183] sm:$0x1] %vm182, %v181
    %s185 = scalar_lea.vmem %s1, 53
    %186 = vst.msk [vmem:[%s185] sm:$0x2] %vm182, %v181
    %v187 = vld [vmem:[#allocation0] sm:$0x3]
    %188 = vrot.lane.b32.xlu0 %v187, 36
    %v189 = vpop.permute.xlu0 %188
    %vm190 = vcmask 31744
    %s191 = scalar_lea.vmem %s1, 23
    %192 = vst.msk [vmem:[%s191] sm:$0x1] %vm190, %v189
    %s193 = scalar_lea.vmem %s1, 54
    %194 = vst.msk [vmem:[%s193] sm:$0x2] %vm190, %v189
    %v195 = vld [vmem:[#allocation0] sm:$0x3]
    %196 = vrot.lane.b32.xlu0 %v195, 32
    %v197 = vpop.permute.xlu0 %196
    %vm198 = vcmask 31744
    %s199 = scalar_lea.vmem %s1, 24
    %200 = vst.msk [vmem:[%s199] sm:$0x1] %vm198, %v197
    %s201 = scalar_lea.vmem %s1, 55
    %202 = vst.msk [vmem:[%s201] sm:$0x2] %vm198, %v197
    %v203 = vld [vmem:[#allocation0] sm:$0x3]
    %204 = vrot.lane.b32.xlu0 %v203, 28
    %v205 = vpop.permute.xlu0 %204
    %vm206 = vcmask 31744
    %s207 = scalar_lea.vmem %s1, 25
    %208 = vst.msk [vmem:[%s207] sm:$0x1] %vm206, %v205
    %s209 = scalar_lea.vmem %s1, 56
    %210 = vst.msk [vmem:[%s209] sm:$0x2] %vm206, %v205
    %v211 = vld [vmem:[#allocation0] sm:$0x3]
    %212 = vrot.lane.b32.xlu0 %v211, 24
    %v213 = vpop.permute.xlu0 %212
    %vm214 = vcmask 31744
    %s215 = scalar_lea.vmem %s1, 26
    %216 = vst.msk [vmem:[%s215] sm:$0x1] %vm214, %v213
    %s217 = scalar_lea.vmem %s1, 57
    %218 = vst.msk [vmem:[%s217] sm:$0x2] %vm214, %v213
    %v219 = vld [vmem:[#allocation0] sm:$0x3]
    %220 = vrot.lane.b32.xlu0 %v219, 20
    %v221 = vpop.permute.xlu0 %220
    %vm222 = vcmask 31744
    %s223 = scalar_lea.vmem %s1, 27
    %224 = vst.msk [vmem:[%s223] sm:$0x1] %vm222, %v221
    %s225 = scalar_lea.vmem %s1, 58
    %226 = vst.msk [vmem:[%s225] sm:$0x2] %vm222, %v221
    %v227 = vld [vmem:[#allocation0] sm:$0x3]
    %228 = vrot.lane.b32.xlu0 %v227, 16
    %v229 = vpop.permute.xlu0 %228
    %vm230 = vcmask 31744
    %s231 = scalar_lea.vmem %s1, 28
    %232 = vst.msk [vmem:[%s231] sm:$0x1] %vm230, %v229
    %s233 = scalar_lea.vmem %s1, 59
    %234 = vst.msk [vmem:[%s233] sm:$0x2] %vm230, %v229
    %v235 = vld [vmem:[#allocation0] sm:$0x3]
    %236 = vrot.lane.b32.xlu0 %v235, 12
    %v237 = vpop.permute.xlu0 %236
    %vm238 = vcmask 31744
    %s239 = scalar_lea.vmem %s1, 29
    %240 = vst.msk [vmem:[%s239] sm:$0x1] %vm238, %v237
    %s241 = scalar_lea.vmem %s1, 60
    %242 = vst.msk [vmem:[%s241] sm:$0x2] %vm238, %v237
    %v243 = vld [vmem:[#allocation0] sm:$0x3]
    %244 = vrot.lane.b32.xlu0 %v243, 8
    %v245 = vpop.permute.xlu0 %244
    %vm246 = vcmask 31744
    %s247 = scalar_lea.vmem %s1, 30
    %248 = vst.msk [vmem:[%s247] sm:$0x1] %vm246, %v245
    %s249 = scalar_lea.vmem %s1, 61
    %250 = vst.msk [vmem:[%s249] sm:$0x2] %vm246, %v245
    %v251 = vld [vmem:[#allocation0] sm:$0x3]
    %252 = vrot.lane.b32.xlu0 %v251, 4
    %v253 = vpop.permute.xlu0 %252
    %vm254 = vcmask 31744
    %s255 = scalar_lea.vmem %s1, 31
    %256 = vst.msk [vmem:[%s255] sm:$0x1] %vm254, %v253
    %s257 = scalar_lea.vmem %s1, 62
    %258 = vst.msk [vmem:[%s257] sm:$0x2] %vm254, %v253

// kernel: temporal_conv_layer_nchw.8
$region0: #{temporal_conv_layer_nchw.8}
  #allocation0 [shape = 'u32[]', space=smem, size = 0x4, offset = 0x4, fixed_abs, tag = 'smem constant byte address 0x4 - core index']
  #allocation1 [shape = 'u32[72,128]{1,0:T(1,128)}', space=vmem, size = 0x9000, scoped, tag = 'internal scratch']
  #allocation4 [shape = 's32[]', space=sflag, size = 0x4, offset = 0, fixed_abs, tag = 'sflag constant byte address 0x0 - dummy sync flag']
  %s0 = inlined_call_operand.hbm [shape: f32[2,4,64,128], index: 0, kind: input, shape index: {}]
  %s1 = inlined_call_operand.vmem [shape: f32[2,2,128], index: 1, kind: output, shape index: {}]
  %s2 = sld [smem:[#allocation0]]
  $region45: #{temporal_conv_layer_nchw.8} parent=0
    _
  %s4 = ssub.s32 1, %s2
  %s5 = scalar_select 0, %s4, %s2
  $region1: #{temporal_conv_layer_nchw.8} parent=0
    #allocation2 [shape = 'u8[65536]{0}', space=vmem, size = 0x10000, scoped, tag = 'input window, operand 0']
    #allocation3 [shape = 's32[2]{0}', space=sflag, size = 0x8, scoped, tag = 'scoped memory for temporal_conv_layer_nchw.8']
    %6 = vsyncpa [#allocation3], 0
    %s7 = scalar_lea.sflag [#allocation3], 1
    %8 = vsyncpa %s7, 0
    loop: start=0, step=1, limit=10
    $region2: #{temporal_conv_layer_nchw.8} parent=1 // loop_pre_header
      _
    $region3: #{temporal_conv_layer_nchw.8} parent=1 // loop_header
      %s10 = sphi 0, %s14
      %p11 = scmp.ge.s32.totalorder %s10, 10
      %s17 = sphi 0, %s29
      %s18 = sphi 0, %s25
      %s19 = sphi 0, %s17
      %s20 = sphi 0, %s18
      %s21 = sphi 0, %s19
      %s22 = sphi 0, %s20
      %s34 = sphi 0, %s36
      %s37 = sphi 0, %s34
      %s38 = sphi 0, %s37
      %s54 = sphi 0, %s38
      %s60 = sphi 0, %s62
      %s63 = sphi 0, %s60
      %s64 = sphi 0, %s63
      %s80 = sphi 0, %s64
    $region4: #{temporal_conv_layer_nchw.8} parent=1 // loop_header_branch
      %13 = sbr.rel (%p11) target = $region8
    $region5: #{temporal_conv_layer_nchw.8} parent=1 // loop_body
      %s15 = ssub.s32 %s10, 1
      %s16 = ssub.s32 %s10, 2
      %s23 = sadd.s32 1, %s18
      %p24 = scmp.ge.s32.totalorder %s23, 4
      %s25 = scalar_select %p24, 0, %s23
      %s26 = sadd.s32 1, %s17
      %s27 = scalar_select %p24, %s26, %s17
      %p28 = scmp.ge.s32.totalorder %s27, 2
      %s29 = scalar_select %p28, 0, %s27
      %s30 = ssub.s32 %s17, %s29
      %s31 = ssub.s32 %s18, %s25
      %s32 = sor.u32 %s30, %s31
      %p33 = scmp.eq.s32.totalorder %s32, 0
      %s35 = sadd.s32 %s34, 1
      %s36 = scalar_select %p33, %s34, %s35
      %p39 = pneg %p33
      %p40 = scmp.eq.s32.totalorder %s10, 7
      %p41 = por %p39, %p40
      %p42 = scmp.ne.s32.totalorder %s34, %s37
      %p43 = scmp.eq.s32.totalorder %s10, 0
      %p44 = por %p42, %p43
      %p45 = scmp.ne.s32.totalorder %s34, %s37
      %p46 = scmp.eq.s32.totalorder %s15, 7
      %p47 = por %p45, %p46
      %p48 = scmp.ne.s32.totalorder %s37, %s38
      %p49 = scmp.eq.s32.totalorder %s15, 0
      %p50 = por %p48, %p49
      %p51 = scmp.ne.s32.totalorder %s37, %s38
      %p52 = scmp.eq.s32.totalorder %s16, 7
      %p53 = por %p51, %p52
      %p55 = scmp.ne.s32.totalorder %s38, %s54
      %p56 = scmp.eq.s32.totalorder %s16, 0
      %p57 = por %p55, %p56
      %s58 = ssub.s32 %s17, %s29
      %p59 = scmp.eq.s32.totalorder %s58, 0
      %s61 = sadd.s32 %s60, 1
      %s62 = scalar_select %p59, %s60, %s61
      %p65 = pneg %p59
      %p66 = scmp.eq.s32.totalorder %s10, 7
      %p67 = por %p65, %p66
      %p68 = scmp.ne.s32.totalorder %s60, %s63
      %p69 = scmp.eq.s32.totalorder %s10, 0
      %p70 = por %p68, %p69
      %p71 = scmp.ne.s32.totalorder %s60, %s63
      %p72 = scmp.eq.s32.totalorder %s15, 7
      %p73 = por %p71, %p72
      %p74 = scmp.ne.s32.totalorder %s63, %s64
      %p75 = scmp.eq.s32.totalorder %s15, 0
      %p76 = por %p74, %p75
      %p77 = scmp.ne.s32.totalorder %s63, %s64
      %p78 = scmp.eq.s32.totalorder %s16, 7
      %p79 = por %p77, %p78
      %p81 = scmp.ne.s32.totalorder %s64, %s80
      %p82 = scmp.eq.s32.totalorder %s16, 0
      %p83 = por %p81, %p82
      %p84 = scmp.le.s32.totalorder 1, %s10
      %p85 = scmp.lt.s32.totalorder %s10, 9
      %p86 = pnand %p84, %p85
      %p87 = pneg %p86
      // Predicated region
      $region9: #{temporal_conv_layer_nchw.8} parent=5 // pred_check
        _
      $region10: #{temporal_conv_layer_nchw.8} parent=5 // pred_check_branch
        %89 = sbr.rel (%p86) target = $region12
      $region11: #{temporal_conv_layer_nchw.8} parent=5 // pred_region
        %s90 = ssub.s32 %s10, 1
      $region12: #{temporal_conv_layer_nchw.8} parent=5 // pred_fallthru
        _
      %p91 = scmp.lt.s32.totalorder %s10, 8
      // Predicated region
      $region13: #{temporal_conv_layer_nchw.8} parent=5 // pred_check
        %p92 = pneg %p91
      $region14: #{temporal_conv_layer_nchw.8} parent=5 // pred_check_branch
        %94 = sbr.rel (%p92) target = $region16
      $region15: #{temporal_conv_layer_nchw.8} parent=5 // pred_region
        // Predicated region
        $region17: #{temporal_conv_layer_nchw.8} parent=15 // pred_check
          %p95 = pneg %p44
        $region18: #{temporal_conv_layer_nchw.8} parent=15 // pred_check_branch
          %97 = sbr.rel (%p95) target = $region20
        $region19: #{temporal_conv_layer_nchw.8} parent=15 // pred_region
          #allocation5 [shape = 'u32[6]{0}', space=smem, size = 0x18, scoped, tag = 'DMA stride descriptor']
          %s98 = sand.u32 %s34, 1
          %s99 = scalar_lea.sflag [#allocation3], %s98
          %s100 = sand.u32 %s34, 1
          %s101 = smul.addr %s100, 64
          %s102 = scalar_lea.vmem [#allocation2], %s101
          %s103 = smul.u32 2, %s18
          %105 = vsyncadd %s99, 0
          %s106 = smul.addr %s17, 32
          %s107 = sadd.s32 %s103, %s106
          %s108 = smul.addr %s107, 8
          %s109 = scalar_lea.hbm %s0, %s108
          %s111 = sshll.u32 1, 14
          %s112 = sxor.u32 4294967295, %s111
          %s114 = sld [smem:[#allocation0]]
          %s115 = sadd.s32 2, %s114
          %s117 = sshll.u32 7, 26
          %s118 = sxor.u32 4294967295, %s117
          %s119 = sand.u32 0, %s118
          %s120 = sshll.u32 %s115, 26
          %s121 = sor.u32 %s119, %s120
          %s122 = sshll.u32 %s109, 4
          %s123 = int_to_ptr.hbm [resolvable:$true] %s122
          %s124 = sshll.u32 %s102, 4
          %s125 = int_to_ptr.vmem [resolvable:$true] %s124
          %131 = sst [smem:[#allocation5]] 1024
          %s132 = scalar_lea.smem [#allocation5], 1
          %133 = sst [smem:[%s132]] 256
          %s134 = scalar_lea.smem [#allocation5], 2
          %135 = sst [smem:[%s134]] 2
          %s136 = scalar_lea.smem [#allocation5], 3
          %137 = sst [smem:[%s136]] 128
          %s138 = scalar_lea.smem [#allocation5], 4
          %139 = sst [smem:[%s138]] 128
          %s140 = scalar_lea.smem [#allocation5], 5
          %141 = sst [smem:[%s140]] 8
          %143 = dma.general %s123, 1024, %s125, %s99, [#allocation4], [#allocation5], %s121, 0
        $region20: #{temporal_conv_layer_nchw.8} parent=15 // pred_fallthru
          _
      $region16: #{temporal_conv_layer_nchw.8} parent=5 // pred_fallthru
        _
      %p144 = scmp.le.s32.totalorder 1, %s10
      %p145 = scmp.lt.s32.totalorder %s10, 9
      %p146 = pnand %p144, %p145
      %p147 = pneg %p146
      // Predicated region
      $region21: #{temporal_conv_layer_nchw.8} parent=5 // pred_check
        _
      $region22: #{temporal_conv_layer_nchw.8} parent=5 // pred_check_branch
        %149 = sbr.rel (%p146) target = $region24
      $region23: #{temporal_conv_layer_nchw.8} parent=5 // pred_region
        %s150 = ssub.s32 %s10, 1
        %s151 = sand.u32 %s37, 1
        %s152 = scalar_lea.sflag [#allocation3], %s151
        %s153 = sand.u32 %s37, 1
        %s154 = smul.addr %s153, 64
        %s155 = scalar_lea.vmem [#allocation2], %s154
        // Predicated region
        $region25: #{temporal_conv_layer_nchw.8} parent=23 // pred_check
          %p156 = pneg %p50
        $region26: #{temporal_conv_layer_nchw.8} parent=23 // pred_check_branch
          %158 = sbr.rel (%p156) target = $region28
        $region27: #{temporal_conv_layer_nchw.8} parent=23 // pred_region
          %160 = dma.done %s152, 1024
        $region28: #{temporal_conv_layer_nchw.8} parent=23 // pred_fallthru
          _
        %s161 = sand.u32 %s37, 1
        %s162 = scalar_lea.sflag [#allocation3], %s161
        %s163 = sand.u32 %s37, 1
        %s164 = smul.addr %s163, 64
        %s165 = scalar_lea.vmem [#allocation2], %s164
        %p166 = pneg %p50
        %p167 = pneg %p47
        %p168 = pneg %p76
        %p169 = pneg %p73
        %p170 = scmp.lt.s32.totalorder %s19, 1
        %s171 = scalar_select %p170, %s19, 1
        %s172 = smul.addr %s171, 2
        %s173 = scalar_lea.vmem %s1, %s172
        %s174 = smul.u32 2, %s20
        %p175 = scmp.lt.s32.totalorder %s19, 1
        %s176 = scalar_select %p175, %s19, 1
        %s177 = smul.addr %s176, 2
        %s178 = scalar_lea.vmem %s1, %s177
        %p179 = scmp.eq.s32.totalorder %s20, 0
        // Predicated region
        $region29: #{temporal_conv_layer_nchw.8} parent=23 // pred_check
          %p180 = pneg %p179
        $region30: #{temporal_conv_layer_nchw.8} parent=23 // pred_check_branch
          %182 = sbr.rel (%p180) target = $region32
        $region31: #{temporal_conv_layer_nchw.8} parent=23 // pred_region
          %183 = vst [vmem:[%s178] sm:$0x3] 0.0
        $region32: #{temporal_conv_layer_nchw.8} parent=23 // pred_fallthru
          _
        %v184 = vld [vmem:[%s155] sm:$0xff]
        %v185 = vld [vmem:[%s155 + $0x8] sm:$0xff]
        %v186 = vld [vmem:[%s155 + $0x10] sm:$0xff]
        %v187 = vld [vmem:[%s155 + $0x18] sm:$0xff]
        %v188 = vld [vmem:[%s155 + $0x20] sm:$0xff]
        %v189 = vld [vmem:[%s155 + $0x28] sm:$0xff]
        %v190 = vld [vmem:[%s155 + $0x30] sm:$0xff]
        %v191 = vld [vmem:[%s155 + $0x38] sm:$0xff]
        %v192 = vadd.f32 %v184, %v185
        %v193 = vadd.f32 %v192, %v186
        %v194 = vadd.f32 %v193, %v187
        %v195 = vadd.f32 %v194, %v188
        %v196 = vadd.f32 %v195, %v189
        %v197 = vadd.f32 %v196, %v190
        %v198 = vadd.f32 %v197, %v191
        %v199 = vrot.slane %v198, 4
        %v200 = vadd.f32 %v198, %v199
        %v201 = vrot.slane %v200, 2
        %v202 = vadd.f32 %v200, %v201
        %v203 = vrot.slane %v202, 1
        %v204 = vadd.f32 %v202, %v203
        %v205 = vmul.f32 %v184, %v184
        %v206 = vmul.f32 %v185, %v185
        %v207 = vmul.f32 %v186, %v186
        %v208 = vmul.f32 %v187, %v187
        %v209 = vmul.f32 %v188, %v188
        %v210 = vmul.f32 %v189, %v189
        %v211 = vmul.f32 %v190, %v190
        %v212 = vmul.f32 %v191, %v191
        %v213 = vadd.f32 %v205, %v206
        %v214 = vadd.f32 %v213, %v207
        %v215 = vadd.f32 %v214, %v208
        %v216 = vadd.f32 %v215, %v209
        %v217 = vadd.f32 %v216, %v210
        %v218 = vadd.f32 %v217, %v211
        %v219 = vadd.f32 %v218, %v212
        %v220 = vrot.slane %v219, 4
        %v221 = vadd.f32 %v219, %v220
        %v222 = vrot.slane %v221, 2
        %v223 = vadd.f32 %v221, %v222
        %v224 = vrot.slane %v223, 1
        %v225 = vadd.f32 %v223, %v224
        %v226 = vld [vmem:[%s178] sm:$0x3]
        %vm227 = vcmask 1040384
        %v228 = vsel %vm227, %v204, %v225
        %v229 = vadd.f32 %v226, %v228
        %230 = vst [vmem:[%s178] sm:$0x3] %v229
        %p231 = scmp.lt.s32.totalorder %s19, 1
        %s232 = scalar_select %p231, %s19, 1
        %s233 = smul.addr %s232, 2
        %s234 = scalar_lea.vmem %s1, %s233
        // Predicated region
        $region33: #{temporal_conv_layer_nchw.8} parent=23 // pred_check
          %p235 = pneg %p73
        $region34: #{temporal_conv_layer_nchw.8} parent=23 // pred_check_branch
          %237 = sbr.rel (%p235) target = $region36
        $region35: #{temporal_conv_layer_nchw.8} parent=23 // pred_region
          _
        $region36: #{temporal_conv_layer_nchw.8} parent=23 // pred_fallthru
          _
      $region24: #{temporal_conv_layer_nchw.8} parent=5 // pred_fallthru
        _
      %p238 = scmp.le.s32.totalorder 2, %s10
      // Predicated region
      $region37: #{temporal_conv_layer_nchw.8} parent=5 // pred_check
        %p239 = pneg %p238
      $region38: #{temporal_conv_layer_nchw.8} parent=5 // pred_check_branch
        %241 = sbr.rel (%p239) target = $region40
      $region39: #{temporal_conv_layer_nchw.8} parent=5 // pred_region
        %s242 = ssub.s32 %s10, 2
        // Predicated region
        $region41: #{temporal_conv_layer_nchw.8} parent=39 // pred_check
          %p243 = pneg %p79
        $region42: #{temporal_conv_layer_nchw.8} parent=39 // pred_check_branch
          %245 = sbr.rel (%p243) target = $region44
        $region43: #{temporal_conv_layer_nchw.8} parent=39 // pred_region
          %p246 = scmp.lt.s32.totalorder %s21, 1
          %s247 = scalar_select %p246, %s21, 1
          %s248 = smul.addr %s247, 2
          %s249 = scalar_lea.vmem %s1, %s248
        $region44: #{temporal_conv_layer_nchw.8} parent=39 // pred_fallthru
          _
      $region40: #{temporal_conv_layer_nchw.8} parent=5 // pred_fallthru
        _
    $region6: #{temporal_conv_layer_nchw.8} parent=1 // loop_footer
      %s14 = sadd.s32 1, %s10
    $region7: #{temporal_conv_layer_nchw.8} parent=1 // loop_footer_branch
      %9 = sbr.rel target = $region3
    $region8: #{temporal_conv_layer_nchw.8} parent=1 // loop_exit
      _
    %250 = vsyncpa [#allocation3], 1
    %s251 = scalar_lea.sflag [#allocation3], 1
    %252 = vsyncpa %s251, 1

// kernel: temporal_conv_layer_nchw.10
$region0: #{temporal_conv_layer_nchw.10}
  #allocation0 [shape = 'u32[]', space=smem, size = 0x4, offset = 0x4, fixed_abs, tag = 'smem constant byte address 0x4 - core index']
  #allocation1 [shape = 'u32[72,128]{1,0:T(1,128)}', space=vmem, size = 0x9000, scoped, tag = 'internal scratch']
  %s0 = inlined_call_operand.vmem [shape: bf16[2,4,64,128], index: 0, kind: input, shape index: {}]
  %s1 = inlined_call_operand.vmem [shape: f32[2,2,128], index: 1, kind: output, shape index: {}]
  %s2 = sld [smem:[#allocation0]]
  $region82: #{temporal_conv_layer_nchw.10} parent=0
    _
  %s4 = ssub.s32 1, %s2
  %s5 = scalar_select 0, %s4, %s2
  $region1: #{temporal_conv_layer_nchw.10} parent=0
    #allocation2 [shape = 'u8[32768]{0}', space=vmem, size = 0x8000, scoped, tag = 'input window, operand 0']
    loop: start=0, step=1, limit=10
    $region2: #{temporal_conv_layer_nchw.10} parent=1 // loop_pre_header
      _
    $region3: #{temporal_conv_layer_nchw.10} parent=1 // loop_header
      %s7 = sphi 0, %s11
      %p8 = scmp.ge.s32.totalorder %s7, 10
      %s14 = sphi 0, %s26
      %s15 = sphi 0, %s22
      %s16 = sphi 0, %s14
      %s17 = sphi 0, %s15
      %s18 = sphi 0, %s16
      %s19 = sphi 0, %s17
      %s31 = sphi 0, %s33
      %s34 = sphi 0, %s31
      %s35 = sphi 0, %s34
      %s51 = sphi 0, %s35
      %s57 = sphi 0, %s59
      %s60 = sphi 0, %s57
      %s61 = sphi 0, %s60
      %s77 = sphi 0, %s61
    $region4: #{temporal_conv_layer_nchw.10} parent=1 // loop_header_branch
      %10 = sbr.rel (%p8) target = $region8
    $region5: #{temporal_conv_layer_nchw.10} parent=1 // loop_body
      %s12 = ssub.s32 %s7, 1
      %s13 = ssub.s32 %s7, 2
      %s20 = sadd.s32 1, %s15
      %p21 = scmp.ge.s32.totalorder %s20, 4
      %s22 = scalar_select %p21, 0, %s20
      %s23 = sadd.s32 1, %s14
      %s24 = scalar_select %p21, %s23, %s14
      %p25 = scmp.ge.s32.totalorder %s24, 2
      %s26 = scalar_select %p25, 0, %s24
      %s27 = ssub.s32 %s14, %s26
      %s28 = ssub.s32 %s15, %s22
      %s29 = sor.u32 %s27, %s28
      %p30 = scmp.eq.s32.totalorder %s29, 0
      %s32 = sadd.s32 %s31, 1
      %s33 = scalar_select %p30, %s31, %s32
      %p36 = pneg %p30
      %p37 = scmp.eq.s32.totalorder %s7, 7
      %p38 = por %p36, %p37
      %p39 = scmp.ne.s32.totalorder %s31, %s34
      %p40 = scmp.eq.s32.totalorder %s7, 0
      %p41 = por %p39, %p40
      %p42 = scmp.ne.s32.totalorder %s31, %s34
      %p43 = scmp.eq.s32.totalorder %s12, 7
      %p44 = por %p42, %p43
      %p45 = scmp.ne.s32.totalorder %s34, %s35
      %p46 = scmp.eq.s32.totalorder %s12, 0
      %p47 = por %p45, %p46
      %p48 = scmp.ne.s32.totalorder %s34, %s35
      %p49 = scmp.eq.s32.totalorder %s13, 7
      %p50 = por %p48, %p49
      %p52 = scmp.ne.s32.totalorder %s35, %s51
      %p53 = scmp.eq.s32.totalorder %s13, 0
      %p54 = por %p52, %p53
      %s55 = ssub.s32 %s14, %s26
      %p56 = scmp.eq.s32.totalorder %s55, 0
      %s58 = sadd.s32 %s57, 1
      %s59 = scalar_select %p56, %s57, %s58
      %p62 = pneg %p56
      %p63 = scmp.eq.s32.totalorder %s7, 7
      %p64 = por %p62, %p63
      %p65 = scmp.ne.s32.totalorder %s57, %s60
      %p66 = scmp.eq.s32.totalorder %s7, 0
      %p67 = por %p65, %p66
      %p68 = scmp.ne.s32.totalorder %s57, %s60
      %p69 = scmp.eq.s32.totalorder %s12, 7
      %p70 = por %p68, %p69
      %p71 = scmp.ne.s32.totalorder %s60, %s61
      %p72 = scmp.eq.s32.totalorder %s12, 0
      %p73 = por %p71, %p72
      %p74 = scmp.ne.s32.totalorder %s60, %s61
      %p75 = scmp.eq.s32.totalorder %s13, 7
      %p76 = por %p74, %p75
      %p78 = scmp.ne.s32.totalorder %s61, %s77
      %p79 = scmp.eq.s32.totalorder %s13, 0
      %p80 = por %p78, %p79
      %p81 = scmp.le.s32.totalorder 1, %s7
      %p82 = scmp.lt.s32.totalorder %s7, 9
      %p83 = pnand %p81, %p82
      %p84 = pneg %p83
      // Predicated region
      $region9: #{temporal_conv_layer_nchw.10} parent=5 // pred_check
        _
      $region10: #{temporal_conv_layer_nchw.10} parent=5 // pred_check_branch
        %86 = sbr.rel (%p83) target = $region12
      $region11: #{temporal_conv_layer_nchw.10} parent=5 // pred_region
        %s87 = ssub.s32 %s7, 1
      $region12: #{temporal_conv_layer_nchw.10} parent=5 // pred_fallthru
        _
      %p88 = scmp.lt.s32.totalorder %s7, 8
      // Predicated region
      $region13: #{temporal_conv_layer_nchw.10} parent=5 // pred_check
        %p89 = pneg %p88
      $region14: #{temporal_conv_layer_nchw.10} parent=5 // pred_check_branch
        %91 = sbr.rel (%p89) target = $region16
      $region15: #{temporal_conv_layer_nchw.10} parent=5 // pred_region
        // Predicated region
        $region17: #{temporal_conv_layer_nchw.10} parent=15 // pred_check
          %p92 = pneg %p41
        $region18: #{temporal_conv_layer_nchw.10} parent=15 // pred_check_branch
          %94 = sbr.rel (%p92) target = $region20
        $region19: #{temporal_conv_layer_nchw.10} parent=15 // pred_region
          %s95 = sand.u32 %s31, 1
          %s96 = sand.u32 %s31, 1
          %s97 = smul.addr %s96, 32
          %s98 = scalar_lea.vmem [#allocation2], %s97
          %s99 = smul.u32 2, %s15
          %s100 = smul.addr %s14, 32
          %s101 = sadd.s32 %s99, %s100
          %s102 = smul.addr %s101, 4
          %s103 = scalar_lea.vmem %s0, %s102
          // Predicated region
          $region21: #{temporal_conv_layer_nchw.10} parent=19 // pred_check
            _
          $region22: #{temporal_conv_layer_nchw.10} parent=19 // pred_check_branch
            %105 = sbr.rel (0) target = $region24
          $region23: #{temporal_conv_layer_nchw.10} parent=19 // pred_region
            // Predicated region
            $region25: #{temporal_conv_layer_nchw.10} parent=23 // pred_check
              _
            $region26: #{temporal_conv_layer_nchw.10} parent=23 // pred_check_branch
              %107 = sbr.rel target = $region28
            $region27: #{temporal_conv_layer_nchw.10} parent=23 // pred_region
              // Predicated region
              $region40: #{temporal_conv_layer_nchw.10} parent=27 // pred_check
                _
              $region41: #{temporal_conv_layer_nchw.10} parent=27 // pred_check_branch
                %137 = sbr.rel (0) target = $region43
              $region42: #{temporal_conv_layer_nchw.10} parent=27 // pred_region
                loop: start=0, step=1, limit=1
                $region44: #{temporal_conv_layer_nchw.10} parent=42 // loop_pre_header
                  _
                $region45: #{temporal_conv_layer_nchw.10} parent=42 // loop_header
                  %s139 = sphi 0, %s143
                  %p140 = scmp.ge.s32.totalorder %s139, 1
                  %s144 = sphi %s103, %s103
                  %s145 = sphi %s98, %s98
                $region46: #{temporal_conv_layer_nchw.10} parent=42 // loop_header_branch
                  %142 = sbr.rel (%p140) target = $region50
                $region47: #{temporal_conv_layer_nchw.10} parent=42 // loop_body
                  _
                $region48: #{temporal_conv_layer_nchw.10} parent=42 // loop_footer
                  %s143 = sadd.s32 1, %s139
                $region49: #{temporal_conv_layer_nchw.10} parent=42 // loop_footer_branch
                  %138 = sbr.rel target = $region45
                $region50: #{temporal_conv_layer_nchw.10} parent=42 // loop_exit
                  _
                %s147 = ssub.s32 16, 1
                loop: start=0, step=1, limit=1
                $region51: #{temporal_conv_layer_nchw.10} parent=42 // loop_pre_header
                  _
                $region52: #{temporal_conv_layer_nchw.10} parent=42 // loop_header
                  %s149 = sphi 0, %s153
                  %p150 = scmp.ge.s32.totalorder %s149, 1
                  %s154 = sphi %s103, %s103
                  %s155 = sphi %s98, %s98
                $region53: #{temporal_conv_layer_nchw.10} parent=42 // loop_header_branch
                  %152 = sbr.rel (%p150) target = $region57
                $region54: #{temporal_conv_layer_nchw.10} parent=42 // loop_body
                  %v156 = vld [vmem:[%s154] sm:%s147]
                  %157 = vst [vmem:[%s155] sm:%s147] %v156
                  %v158 = vld [vmem:[%s154 + $0x4] sm:%s147]
                  %159 = vst [vmem:[%s155 + $0x4] sm:%s147] %v158
                  %v160 = vld [vmem:[%s154 + $0x20] sm:%s147]
                  %161 = vst [vmem:[%s155 + $0x8] sm:%s147] %v160
                  %v162 = vld [vmem:[%s154 + $0x24] sm:%s147]
                  %163 = vst [vmem:[%s155 + $0xc] sm:%s147] %v162
                  %v164 = vld [vmem:[%s154 + $0x40] sm:%s147]
                  %165 = vst [vmem:[%s155 + $0x10] sm:%s147] %v164
                  %v166 = vld [vmem:[%s154 + $0x44] sm:%s147]
                  %167 = vst [vmem:[%s155 + $0x14] sm:%s147] %v166
                  %v168 = vld [vmem:[%s154 + $0x60] sm:%s147]
                  %169 = vst [vmem:[%s155 + $0x18] sm:%s147] %v168
                  %v170 = vld [vmem:[%s154 + $0x64] sm:%s147]
                  %171 = vst [vmem:[%s155 + $0x1c] sm:%s147] %v170
                $region55: #{temporal_conv_layer_nchw.10} parent=42 // loop_footer
                  %s153 = sadd.s32 1, %s149
                $region56: #{temporal_conv_layer_nchw.10} parent=42 // loop_footer_branch
                  %148 = sbr.rel target = $region52
                $region57: #{temporal_conv_layer_nchw.10} parent=42 // loop_exit
                  _
              $region43: #{temporal_conv_layer_nchw.10} parent=27 // pred_fallthru
                _
            $region28: #{temporal_conv_layer_nchw.10} parent=23 // pred_fallthru
              _
            // Predicated region
            $region29: #{temporal_conv_layer_nchw.10} parent=23 // pred_check
              _
            $region30: #{temporal_conv_layer_nchw.10} parent=23 // pred_check_branch
              %109 = sbr.rel (0) target = $region32
            $region31: #{temporal_conv_layer_nchw.10} parent=23 // pred_region
              %s111 = ssub.s32 16, 1
              loop: start=0, step=1, limit=1
              $region33: #{temporal_conv_layer_nchw.10} parent=31 // loop_pre_header
                _
              $region34: #{temporal_conv_layer_nchw.10} parent=31 // loop_header
                %s113 = sphi 0, %s117
                %p114 = scmp.ge.s32.totalorder %s113, 1
                %s118 = sphi %s103, %s103
                %s119 = sphi %s98, %s98
              $region35: #{temporal_conv_layer_nchw.10} parent=31 // loop_header_branch
                %116 = sbr.rel (%p114) target = $region39
              $region36: #{temporal_conv_layer_nchw.10} parent=31 // loop_body
                %v120 = vld [vmem:[%s118] sm:%s111]
                %121 = vst [vmem:[%s119] sm:%s111] %v120
                %v122 = vld [vmem:[%s118 + $0x4] sm:%s111]
                %123 = vst [vmem:[%s119 + $0x4] sm:%s111] %v122
                %v124 = vld [vmem:[%s118 + $0x20] sm:%s111]
                %125 = vst [vmem:[%s119 + $0x8] sm:%s111] %v124
                %v126 = vld [vmem:[%s118 + $0x24] sm:%s111]
                %127 = vst [vmem:[%s119 + $0xc] sm:%s111] %v126
                %v128 = vld [vmem:[%s118 + $0x40] sm:%s111]
                %129 = vst [vmem:[%s119 + $0x10] sm:%s111] %v128
                %v130 = vld [vmem:[%s118 + $0x44] sm:%s111]
                %131 = vst [vmem:[%s119 + $0x14] sm:%s111] %v130
                %v132 = vld [vmem:[%s118 + $0x60] sm:%s111]
                %133 = vst [vmem:[%s119 + $0x18] sm:%s111] %v132
                %v134 = vld [vmem:[%s118 + $0x64] sm:%s111]
                %135 = vst [vmem:[%s119 + $0x1c] sm:%s111] %v134
              $region37: #{temporal_conv_layer_nchw.10} parent=31 // loop_footer
                %s117 = sadd.s32 1, %s113
              $region38: #{temporal_conv_layer_nchw.10} parent=31 // loop_footer_branch
                %112 = sbr.rel target = $region34
              $region39: #{temporal_conv_layer_nchw.10} parent=31 // loop_exit
                _
            $region32: #{temporal_conv_layer_nchw.10} parent=23 // pred_fallthru
              _
          $region24: #{temporal_conv_layer_nchw.10} parent=19 // pred_fallthru
            _
          %172 = vnop
        $region20: #{temporal_conv_layer_nchw.10} parent=15 // pred_fallthru
          _
      $region16: #{temporal_conv_layer_nchw.10} parent=5 // pred_fallthru
        _
      %p173 = scmp.le.s32.totalorder 1, %s7
      %p174 = scmp.lt.s32.totalorder %s7, 9
      %p175 = pnand %p173, %p174
      %p176 = pneg %p175
      // Predicated region
      $region58: #{temporal_conv_layer_nchw.10} parent=5 // pred_check
        _
      $region59: #{temporal_conv_layer_nchw.10} parent=5 // pred_check_branch
        %178 = sbr.rel (%p175) target = $region61
      $region60: #{temporal_conv_layer_nchw.10} parent=5 // pred_region
        %s179 = ssub.s32 %s7, 1
        %s180 = sand.u32 %s34, 1
        %s181 = sand.u32 %s34, 1
        %s182 = smul.addr %s181, 32
        %s183 = scalar_lea.vmem [#allocation2], %s182
        // Predicated region
        $region62: #{temporal_conv_layer_nchw.10} parent=60 // pred_check
          %p184 = pneg %p47
        $region63: #{temporal_conv_layer_nchw.10} parent=60 // pred_check_branch
          %186 = sbr.rel (%p184) target = $region65
        $region64: #{temporal_conv_layer_nchw.10} parent=60 // pred_region
          _
        $region65: #{temporal_conv_layer_nchw.10} parent=60 // pred_fallthru
          _
        %s187 = sand.u32 %s34, 1
        %s188 = sand.u32 %s34, 1
        %s189 = smul.addr %s188, 32
        %s190 = scalar_lea.vmem [#allocation2], %s189
        %p191 = pneg %p47
        %p192 = pneg %p44
        %p193 = pneg %p73
        %p194 = pneg %p70
        %p195 = scmp.lt.s32.totalorder %s16, 1
        %s196 = scalar_select %p195, %s16, 1
        %s197 = smul.addr %s196, 2
        %s198 = scalar_lea.vmem %s1, %s197
        %s199 = smul.u32 2, %s17
        %p200 = scmp.lt.s32.totalorder %s16, 1
        %s201 = scalar_select %p200, %s16, 1
        %s202 = smul.addr %s201, 2
        %s203 = scalar_lea.vmem %s1, %s202
        %p204 = scmp.eq.s32.totalorder %s17, 0
        // Predicated region
        $region66: #{temporal_conv_layer_nchw.10} parent=60 // pred_check
          %p205 = pneg %p204
        $region67: #{temporal_conv_layer_nchw.10} parent=60 // pred_check_branch
          %207 = sbr.rel (%p205) target = $region69
        $region68: #{temporal_conv_layer_nchw.10} parent=60 // pred_region
          %208 = vst [vmem:[%s203] sm:$0x3] 0.0
        $region69: #{temporal_conv_layer_nchw.10} parent=60 // pred_fallthru
          _
        %v209 = vld [vmem:[%s183] sm:$0xf]
        %v210 = vld [vmem:[%s183 + $0x4] sm:$0xf]
        %v211 = vld [vmem:[%s183 + $0x8] sm:$0xf]
        %v212 = vld [vmem:[%s183 + $0xc] sm:$0xf]
        %v213 = vld [vmem:[%s183 + $0x10] sm:$0xf]
        %v214 = vld [vmem:[%s183 + $0x14] sm:$0xf]
        %v215 = vld [vmem:[%s183 + $0x18] sm:$0xf]
        %v216 = vld [vmem:[%s183 + $0x1c] sm:$0xf]
        %v217 = vunpack.c.l.bf16 %v209
        %v218 = vunpack.c.l.bf16 %v210
        %v219 = vunpack.c.l.bf16 %v211
        %v220 = vunpack.c.l.bf16 %v212
        %v221 = vunpack.c.l.bf16 %v213
        %v222 = vunpack.c.l.bf16 %v214
        %v223 = vunpack.c.l.bf16 %v215
        %v224 = vunpack.c.l.bf16 %v216
        %v225 = vadd.f32 %v217, %v218
        %v226 = vadd.f32 %v225, %v219
        %v227 = vadd.f32 %v226, %v220
        %v228 = vadd.f32 %v227, %v221
        %v229 = vadd.f32 %v228, %v222
        %v230 = vadd.f32 %v229, %v223
        %v231 = vadd.f32 %v230, %v224
        %v232 = vrot.slane %v231, 4
        %v233 = vadd.f32 %v231, %v232
        %v234 = vrot.slane %v233, 2
        %v235 = vadd.f32 %v233, %v234
        %v236 = vrot.slane %v235, 1
        %v237 = vadd.f32 %v235, %v236
        %v238 = vmul.f32 %v217, %v217
        %v239 = vmul.f32 %v218, %v218
        %v240 = vmul.f32 %v219, %v219
        %v241 = vmul.f32 %v220, %v220
        %v242 = vmul.f32 %v221, %v221
        %v243 = vmul.f32 %v222, %v222
        %v244 = vmul.f32 %v223, %v223
        %v245 = vmul.f32 %v224, %v224
        %v246 = vadd.f32 %v238, %v239
        %v247 = vadd.f32 %v246, %v240
        %v248 = vadd.f32 %v247, %v241
        %v249 = vadd.f32 %v248, %v242
        %v250 = vadd.f32 %v249, %v243
        %v251 = vadd.f32 %v250, %v244
        %v252 = vadd.f32 %v251, %v245
        %v253 = vrot.slane %v252, 4
        %v254 = vadd.f32 %v252, %v253
        %v255 = vrot.slane %v254, 2
        %v256 = vadd.f32 %v254, %v255
        %v257 = vrot.slane %v256, 1
        %v258 = vadd.f32 %v256, %v257
        %v259 = vld [vmem:[%s203] sm:$0x3]
        %vm260 = vcmask 1040384
        %v261 = vsel %vm260, %v237, %v258
        %v262 = vadd.f32 %v259, %v261
        %263 = vst [vmem:[%s203] sm:$0x3] %v262
        %p264 = scmp.lt.s32.totalorder %s16, 1
        %s265 = scalar_select %p264, %s16, 1
        %s266 = smul.addr %s265, 2
        %s267 = scalar_lea.vmem %s1, %s266
        // Predicated region
        $region70: #{temporal_conv_layer_nchw.10} parent=60 // pred_check
          %p268 = pneg %p70
        $region71: #{temporal_conv_layer_nchw.10} parent=60 // pred_check_branch
          %270 = sbr.rel (%p268) target = $region73
        $region72: #{temporal_conv_layer_nchw.10} parent=60 // pred_region
          _
        $region73: #{temporal_conv_layer_nchw.10} parent=60 // pred_fallthru
          _
      $region61: #{temporal_conv_layer_nchw.10} parent=5 // pred_fallthru
        _
      %p271 = scmp.le.s32.totalorder 2, %s7
      // Predicated region
      $region74: #{temporal_conv_layer_nchw.10} parent=5 // pred_check
        %p272 = pneg %p271
      $region75: #{temporal_conv_layer_nchw.10} parent=5 // pred_check_branch
        %274 = sbr.rel (%p272) target = $region77
      $region76: #{temporal_conv_layer_nchw.10} parent=5 // pred_region
        %s275 = ssub.s32 %s7, 2
        // Predicated region
        $region78: #{temporal_conv_layer_nchw.10} parent=76 // pred_check
          %p276 = pneg %p76
        $region79: #{temporal_conv_layer_nchw.10} parent=76 // pred_check_branch
          %278 = sbr.rel (%p276) target = $region81
        $region80: #{temporal_conv_layer_nchw.10} parent=76 // pred_region
          %p279 = scmp.lt.s32.totalorder %s18, 1
          %s280 = scalar_select %p279, %s18, 1
          %s281 = smul.addr %s280, 2
          %s282 = scalar_lea.vmem %s1, %s281
        $region81: #{temporal_conv_layer_nchw.10} parent=76 // pred_fallthru
          _
      $region77: #{temporal_conv_layer_nchw.10} parent=5 // pred_fallthru
        _
    $region6: #{temporal_conv_layer_nchw.10} parent=1 // loop_footer
      %s11 = sadd.s32 1, %s7
    $region7: #{temporal_conv_layer_nchw.10} parent=1 // loop_footer_branch
      %6 = sbr.rel target = $region3
    $region8: #{temporal_conv_layer_nchw.10} parent=1 // loop_exit
      _

// kernel: temporal_conv_layer_nchw.11
$region0: #{temporal_conv_layer_nchw.11}
  #allocation0 [shape = 'u32[]', space=smem, size = 0x4, offset = 0x4, fixed_abs, tag = 'smem constant byte address 0x4 - core index']
  #allocation1 [shape = 'u32[72,128]{1,0:T(1,128)}', space=vmem, size = 0x9000, scoped, tag = 'internal scratch']
  #allocation2 [shape = 'bf16[64,384]{1,0:T(8,128)(2,1)}', space=vmem, size = 0xc000, scoped, tag = 'scratch operand']
  %s0 = inlined_call_operand.vmem [shape: bf16[2,4,64,128], index: 0, kind: input, shape index: {}]
  %s1 = inlined_call_operand.vmem [shape: f32[2,1,128], index: 1, kind: input, shape index: {}]
  %s2 = inlined_call_operand.vmem [shape: f32[2,1,128], index: 2, kind: input, shape index: {}]
  %s3 = inlined_call_operand.vmem [shape: bf16[384,128], index: 3, kind: input, shape index: {}]
  %s4 = inlined_call_operand.vmem [shape: f32[1,128], index: 4, kind: input, shape index: {}]
  %s5 = inlined_call_operand.vmem [shape: bf16[2,4,64,128], index: 5, kind: output, shape index: {}]
  %s6 = sld [smem:[#allocation0]]
  $region131: #{temporal_conv_layer_nchw.11} parent=0
    _
  %s8 = ssub.s32 1, %s6
  %s9 = scalar_select 0, %s8, %s6
  $region1: #{temporal_conv_layer_nchw.11} parent=0
    #allocation3 [shape = 'u8[32768]{0}', space=vmem, size = 0x8000, scoped, tag = 'input window, operand 0']
    #allocation4 [shape = 'u8[32768]{0}', space=vmem, size = 0x8000, scoped, tag = 'output window, operand 0']
    loop: start=0, step=1, limit=10
    $region2: #{temporal_conv_layer_nchw.11} parent=1 // loop_pre_header
      _
    $region3: #{temporal_conv_layer_nchw.11} parent=1 // loop_header
      %s11 = sphi 0, %s15
      %p12 = scmp.ge.s32.totalorder %s11, 10
      %s18 = sphi 0, %s30
      %s19 = sphi 0, %s26
      %s20 = sphi 0, %s18
      %s21 = sphi 0, %s19
      %s22 = sphi 0, %s20
      %s23 = sphi 0, %s21
      %s35 = sphi 0, %s37
      %s38 = sphi 0, %s35
      %s39 = sphi 0, %s38
      %s55 = sphi 0, %s39
      %s61 = sphi 0, %s63
      %s64 = sphi 0, %s61
      %s65 = sphi 0, %s64
      %s81 = sphi 0, %s65
      %s87 = sphi 0, %s89
      %s90 = sphi 0, %s87
      %s91 = sphi 0, %s90
      %s107 = sphi 0, %s91
      %s111 = sphi 0, %s111
      %s113 = sphi 0, %s111
      %s114 = sphi 0, %s113
      %s128 = sphi 0, %s114
      %s132 = sphi 0, %s132
      %s134 = sphi 0, %s132
      %s135 = sphi 0, %s134
      %s149 = sphi 0, %s135
      %s157 = sphi 0, %s159
      %s160 = sphi 0, %s157
      %s161 = sphi 0, %s160
      %s177 = sphi 0, %s161
    $region4: #{temporal_conv_layer_nchw.11} parent=1 // loop_header_branch
      %14 = sbr.rel (%p12) target = $region8
    $region5: #{temporal_conv_layer_nchw.11} parent=1 // loop_body
      %s16 = ssub.s32 %s11, 1
      %s17 = ssub.s32 %s11, 2
      %s24 = sadd.s32 1, %s19
      %p25 = scmp.ge.s32.totalorder %s24, 4
      %s26 = scalar_select %p25, 0, %s24
      %s27 = sadd.s32 1, %s18
      %s28 = scalar_select %p25, %s27, %s18
      %p29 = scmp.ge.s32.totalorder %s28, 2
      %s30 = scalar_select %p29, 0, %s28
      %s31 = ssub.s32 %s18, %s30
      %s32 = ssub.s32 %s19, %s26
      %s33 = sor.u32 %s31, %s32
      %p34 = scmp.eq.s32.totalorder %s33, 0
      %s36 = sadd.s32 %s35, 1
      %s37 = scalar_select %p34, %s35, %s36
      %p40 = pneg %p34
      %p41 = scmp.eq.s32.totalorder %s11, 7
      %p42 = por %p40, %p41
      %p43 = scmp.ne.s32.totalorder %s35, %s38
      %p44 = scmp.eq.s32.totalorder %s11, 0
      %p45 = por %p43, %p44
      %p46 = scmp.ne.s32.totalorder %s35, %s38
      %p47 = scmp.eq.s32.totalorder %s16, 7
      %p48 = por %p46, %p47
      %p49 = scmp.ne.s32.totalorder %s38, %s39
      %p50 = scmp.eq.s32.totalorder %s16, 0
      %p51 = por %p49, %p50
      %p52 = scmp.ne.s32.totalorder %s38, %s39
      %p53 = scmp.eq.s32.totalorder %s17, 7
      %p54 = por %p52, %p53
      %p56 = scmp.ne.s32.totalorder %s39, %s55
      %p57 = scmp.eq.s32.totalorder %s17, 0
      %p58 = por %p56, %p57
      %s59 = ssub.s32 %s18, %s30
      %p60 = scmp.eq.s32.totalorder %s59, 0
      %s62 = sadd.s32 %s61, 1
      %s63 = scalar_select %p60, %s61, %s62
      %p66 = pneg %p60
      %p67 = scmp.eq.s32.totalorder %s11, 7
      %p68 = por %p66, %p67
      %p69 = scmp.ne.s32.totalorder %s61, %s64
      %p70 = scmp.eq.s32.totalorder %s11, 0
      %p71 = por %p69, %p70
      %p72 = scmp.ne.s32.totalorder %s61, %s64
      %p73 = scmp.eq.s32.totalorder %s16, 7
      %p74 = por %p72, %p73
      %p75 = scmp.ne.s32.totalorder %s64, %s65
      %p76 = scmp.eq.s32.totalorder %s16, 0
      %p77 = por %p75, %p76
      %p78 = scmp.ne.s32.totalorder %s64, %s65
      %p79 = scmp.eq.s32.totalorder %s17, 7
      %p80 = por %p78, %p79
      %p82 = scmp.ne.s32.totalorder %s65, %s81
      %p83 = scmp.eq.s32.totalorder %s17, 0
      %p84 = por %p82, %p83
      %s85 = ssub.s32 %s18, %s30
      %p86 = scmp.eq.s32.totalorder %s85, 0
      %s88 = sadd.s32 %s87, 1
      %s89 = scalar_select %p86, %s87, %s88
      %p92 = pneg %p86
      %p93 = scmp.eq.s32.totalorder %s11, 7
      %p94 = por %p92, %p93
      %p95 = scmp.ne.s32.totalorder %s87, %s90
      %p96 = scmp.eq.s32.totalorder %s11, 0
      %p97 = por %p95, %p96
      %p98 = scmp.ne.s32.totalorder %s87, %s90
      %p99 = scmp.eq.s32.totalorder %s16, 7
      %p100 = por %p98, %p99
      %p101 = scmp.ne.s32.totalorder %s90, %s91
      %p102 = scmp.eq.s32.totalorder %s16, 0
      %p103 = por %p101, %p102
      %p104 = scmp.ne.s32.totalorder %s90, %s91
      %p105 = scmp.eq.s32.totalorder %s17, 7
      %p106 = por %p104, %p105
      %p108 = scmp.ne.s32.totalorder %s91, %s107
      %p109 = scmp.eq.s32.totalorder %s17, 0
      %p110 = por %p108, %p109
      %s112 = sadd.s32 %s111, 1
      %p115 = scmp.eq.s32.totalorder %s11, 7
      %p116 = scmp.ne.s32.totalorder %s111, %s113
      %p117 = scmp.eq.s32.totalorder %s11, 0
      %p118 = por %p116, %p117
      %p119 = scmp.ne.s32.totalorder %s111, %s113
      %p120 = scmp.eq.s32.totalorder %s16, 7
      %p121 = por %p119, %p120
      %p122 = scmp.ne.s32.totalorder %s113, %s114
      %p123 = scmp.eq.s32.totalorder %s16, 0
      %p124 = por %p122, %p123
      %p125 = scmp.ne.s32.totalorder %s113, %s114
      %p126 = scmp.eq.s32.totalorder %s17, 7
      %p127 = por %p125, %p126
      %p129 = scmp.ne.s32.totalorder %s114, %s128
      %p130 = scmp.eq.s32.totalorder %s17, 0
      %p131 = por %p129, %p130
      %s133 = sadd.s32 %s132, 1
      %p136 = scmp.eq.s32.totalorder %s11, 7
      %p137 = scmp.ne.s32.totalorder %s132, %s134
      %p138 = scmp.eq.s32.totalorder %s11, 0
      %p139 = por %p137, %p138
      %p140 = scmp.ne.s32.totalorder %s132, %s134
      %p141 = scmp.eq.s32.totalorder %s16, 7
      %p142 = por %p140, %p141
      %p143 = scmp.ne.s32.totalorder %s134, %s135
      %p144 = scmp.eq.s32.totalorder %s16, 0
      %p145 = por %p143, %p144
      %p146 = scmp.ne.s32.totalorder %s134, %s135
      %p147 = scmp.eq.s32.totalorder %s17, 7
      %p148 = por %p146, %p147
      %p150 = scmp.ne.s32.totalorder %s135, %s149
      %p151 = scmp.eq.s32.totalorder %s17, 0
      %p152 = por %p150, %p151
      %s153 = ssub.s32 %s18, %s30
      %s154 = ssub.s32 %s19, %s26
      %s155 = sor.u32 %s153, %s154
      %p156 = scmp.eq.s32.totalorder %s155, 0
      %s158 = sadd.s32 %s157, 1
      %s159 = scalar_select %p156, %s157, %s158
      %p162 = pneg %p156
      %p163 = scmp.eq.s32.totalorder %s11, 7
      %p164 = por %p162, %p163
      %p165 = scmp.ne.s32.totalorder %s157, %s160
      %p166 = scmp.eq.s32.totalorder %s11, 0
      %p167 = por %p165, %p166
      %p168 = scmp.ne.s32.totalorder %s157, %s160
      %p169 = scmp.eq.s32.totalorder %s16, 7
      %p170 = por %p168, %p169
      %p171 = scmp.ne.s32.totalorder %s160, %s161
      %p172 = scmp.eq.s32.totalorder %s16, 0
      %p173 = por %p171, %p172
      %p174 = scmp.ne.s32.totalorder %s160, %s161
      %p175 = scmp.eq.s32.totalorder %s17, 7
      %p176 = por %p174, %p175
      %p178 = scmp.ne.s32.totalorder %s161, %s177
      %p179 = scmp.eq.s32.totalorder %s17, 0
      %p180 = por %p178, %p179
      %p181 = scmp.le.s32.totalorder 1, %s11
      %p182 = scmp.lt.s32.totalorder %s11, 9
      %p183 = pnand %p181, %p182
      %p184 = pneg %p183
      // Predicated region
      $region9: #{temporal_conv_layer_nchw.11} parent=5 // pred_check
        _
      $region10: #{temporal_conv_layer_nchw.11} parent=5 // pred_check_branch
        %186 = sbr.rel (%p183) target = $region12
      $region11: #{temporal_conv_layer_nchw.11} parent=5 // pred_region
        %s187 = ssub.s32 %s11, 1
        // Predicated region
        $region13: #{temporal_conv_layer_nchw.11} parent=11 // pred_check
          %p188 = pneg %p124
        $region14: #{temporal_conv_layer_nchw.11} parent=11 // pred_check_branch
          %190 = sbr.rel (%p188) target = $region16
        $region15: #{temporal_conv_layer_nchw.11} parent=11 // pred_region
          _
        $region16: #{temporal_conv_layer_nchw.11} parent=11 // pred_fallthru
          _
        // Predicated region
        $region17: #{temporal_conv_layer_nchw.11} parent=11 // pred_check
          %p191 = pneg %p145
        $region18: #{temporal_conv_layer_nchw.11} parent=11 // pred_check_branch
          %193 = sbr.rel (%p191) target = $region20
        $region19: #{temporal_conv_layer_nchw.11} parent=11 // pred_region
          _
        $region20: #{temporal_conv_layer_nchw.11} parent=11 // pred_fallthru
          _
      $region12: #{temporal_conv_layer_nchw.11} parent=5 // pred_fallthru
        _
      %p194 = scmp.lt.s32.totalorder %s11, 8
      // Predicated region
      $region21: #{temporal_conv_layer_nchw.11} parent=5 // pred_check
        %p195 = pneg %p194
      $region22: #{temporal_conv_layer_nchw.11} parent=5 // pred_check_branch
        %197 = sbr.rel (%p195) target = $region24
      $region23: #{temporal_conv_layer_nchw.11} parent=5 // pred_region
        // Predicated region
        $region25: #{temporal_conv_layer_nchw.11} parent=23 // pred_check
          %p198 = pneg %p45
        $region26: #{temporal_conv_layer_nchw.11} parent=23 // pred_check_branch
          %200 = sbr.rel (%p198) target = $region28
        $region27: #{temporal_conv_layer_nchw.11} parent=23 // pred_region
          %s201 = sand.u32 %s35, 1
          %s202 = sand.u32 %s35, 1
          %s203 = smul.addr %s202, 32
          %s204 = scalar_lea.vmem [#allocation3], %s203
          %s205 = smul.u32 2, %s19
          %s206 = smul.addr %s18, 32
          %s207 = sadd.s32 %s205, %s206
          %s208 = smul.addr %s207, 4
          %s209 = scalar_lea.vmem %s0, %s208
          // Predicated region
          $region29: #{temporal_conv_layer_nchw.11} parent=27 // pred_check
            _
          $region30: #{temporal_conv_layer_nchw.11} parent=27 // pred_check_branch
            %211 = sbr.rel (0) target = $region32
          $region31: #{temporal_conv_layer_nchw.11} parent=27 // pred_region
            // Predicated region
            $region33: #{temporal_conv_layer_nchw.11} parent=31 // pred_check
              _
            $region34: #{temporal_conv_layer_nchw.11} parent=31 // pred_check_branch
              %213 = sbr.rel target = $region36
            $region35: #{temporal_conv_layer_nchw.11} parent=31 // pred_region
              // Predicated region
              $region48: #{temporal_conv_layer_nchw.11} parent=35 // pred_check
                _
              $region49: #{temporal_conv_layer_nchw.11} parent=35 // pred_check_branch
                %243 = sbr.rel (0) target = $region51
              $region50: #{temporal_conv_layer_nchw.11} parent=35 // pred_region
                loop: start=0, step=1, limit=1
                $region52: #{temporal_conv_layer_nchw.11} parent=50 // loop_pre_header
                  _
                $region53: #{temporal_conv_layer_nchw.11} parent=50 // loop_header
                  %s245 = sphi 0, %s249
                  %p246 = scmp.ge.s32.totalorder %s245, 1
                  %s250 = sphi %s209, %s209
                  %s251 = sphi %s204, %s204
                $region54: #{temporal_conv_layer_nchw.11} parent=50 // loop_header_branch
                  %248 = sbr.rel (%p246) target = $region58
                $region55: #{temporal_conv_layer_nchw.11} parent=50 // loop_body
                  _
                $region56: #{temporal_conv_layer_nchw.11} parent=50 // loop_footer
                  %s249 = sadd.s32 1, %s245
                $region57: #{temporal_conv_layer_nchw.11} parent=50 // loop_footer_branch
                  %244 = sbr.rel target = $region53
                $region58: #{temporal_conv_layer_nchw.11} parent=50 // loop_exit
                  _
                %s253 = ssub.s32 16, 1
                loop: start=0, step=1, limit=1
                $region59: #{temporal_conv_layer_nchw.11} parent=50 // loop_pre_header
                  _
                $region60: #{temporal_conv_layer_nchw.11} parent=50 // loop_header
                  %s255 = sphi 0, %s259
                  %p256 = scmp.ge.s32.totalorder %s255, 1
                  %s260 = sphi %s209, %s209
                  %s261 = sphi %s204, %s204
                $region61: #{temporal_conv_layer_nchw.11} parent=50 // loop_header_branch
                  %258 = sbr.rel (%p256) target = $region65
                $region62: #{temporal_conv_layer_nchw.11} parent=50 // loop_body
                  %v262 = vld [vmem:[%s260] sm:%s253]
                  %263 = vst [vmem:[%s261] sm:%s253] %v262
                  %v264 = vld [vmem:[%s260 + $0x4] sm:%s253]
                  %265 = vst [vmem:[%s261 + $0x4] sm:%s253] %v264
                  %v266 = vld [vmem:[%s260 + $0x20] sm:%s253]
                  %267 = vst [vmem:[%s261 + $0x8] sm:%s253] %v266
                  %v268 = vld [vmem:[%s260 + $0x24] sm:%s253]
                  %269 = vst [vmem:[%s261 + $0xc] sm:%s253] %v268
                  %v270 = vld [vmem:[%s260 + $0x40] sm:%s253]
                  %271 = vst [vmem:[%s261 + $0x10] sm:%s253] %v270
                  %v272 = vld [vmem:[%s260 + $0x44] sm:%s253]
                  %273 = vst [vmem:[%s261 + $0x14] sm:%s253] %v272
                  %v274 = vld [vmem:[%s260 + $0x60] sm:%s253]
                  %275 = vst [vmem:[%s261 + $0x18] sm:%s253] %v274
                  %v276 = vld [vmem:[%s260 + $0x64] sm:%s253]
                  %277 = vst [vmem:[%s261 + $0x1c] sm:%s253] %v276
                $region63: #{temporal_conv_layer_nchw.11} parent=50 // loop_footer
                  %s259 = sadd.s32 1, %s255
                $region64: #{temporal_conv_layer_nchw.11} parent=50 // loop_footer_branch
                  %254 = sbr.rel target = $region60
                $region65: #{temporal_conv_layer_nchw.11} parent=50 // loop_exit
                  _
              $region51: #{temporal_conv_layer_nchw.11} parent=35 // pred_fallthru
                _
            $region36: #{temporal_conv_layer_nchw.11} parent=31 // pred_fallthru
              _
            // Predicated region
            $region37: #{temporal_conv_layer_nchw.11} parent=31 // pred_check
              _
            $region38: #{temporal_conv_layer_nchw.11} parent=31 // pred_check_branch
              %215 = sbr.rel (0) target = $region40
            $region39: #{temporal_conv_layer_nchw.11} parent=31 // pred_region
              %s217 = ssub.s32 16, 1
              loop: start=0, step=1, limit=1
              $region41: #{temporal_conv_layer_nchw.11} parent=39 // loop_pre_header
                _
              $region42: #{temporal_conv_layer_nchw.11} parent=39 // loop_header
                %s219 = sphi 0, %s223
                %p220 = scmp.ge.s32.totalorder %s219, 1
                %s224 = sphi %s209, %s209
                %s225 = sphi %s204, %s204
              $region43: #{temporal_conv_layer_nchw.11} parent=39 // loop_header_branch
                %222 = sbr.rel (%p220) target = $region47
              $region44: #{temporal_conv_layer_nchw.11} parent=39 // loop_body
                %v226 = vld [vmem:[%s224] sm:%s217]
                %227 = vst [vmem:[%s225] sm:%s217] %v226
                %v228 = vld [vmem:[%s224 + $0x4] sm:%s217]
                %229 = vst [vmem:[%s225 + $0x4] sm:%s217] %v228
                %v230 = vld [vmem:[%s224 + $0x20] sm:%s217]
                %231 = vst [vmem:[%s225 + $0x8] sm:%s217] %v230
                %v232 = vld [vmem:[%s224 + $0x24] sm:%s217]
                %233 = vst [vmem:[%s225 + $0xc] sm:%s217] %v232
                %v234 = vld [vmem:[%s224 + $0x40] sm:%s217]
                %235 = vst [vmem:[%s225 + $0x10] sm:%s217] %v234
                %v236 = vld [vmem:[%s224 + $0x44] sm:%s217]
                %237 = vst [vmem:[%s225 + $0x14] sm:%s217] %v236
                %v238 = vld [vmem:[%s224 + $0x60] sm:%s217]
                %239 = vst [vmem:[%s225 + $0x18] sm:%s217] %v238
                %v240 = vld [vmem:[%s224 + $0x64] sm:%s217]
                %241 = vst [vmem:[%s225 + $0x1c] sm:%s217] %v240
              $region45: #{temporal_conv_layer_nchw.11} parent=39 // loop_footer
                %s223 = sadd.s32 1, %s219
              $region46: #{temporal_conv_layer_nchw.11} parent=39 // loop_footer_branch
                %218 = sbr.rel target = $region42
              $region47: #{temporal_conv_layer_nchw.11} parent=39 // loop_exit
                _
            $region40: #{temporal_conv_layer_nchw.11} parent=31 // pred_fallthru
              _
          $region32: #{temporal_conv_layer_nchw.11} parent=27 // pred_fallthru
            _
          %278 = vnop
        $region28: #{temporal_conv_layer_nchw.11} parent=23 // pred_fallthru
          _
        // Predicated region
        $region66: #{temporal_conv_layer_nchw.11} parent=23 // pred_check
          %p279 = pneg %p71
        $region67: #{temporal_conv_layer_nchw.11} parent=23 // pred_check_branch
          %281 = sbr.rel (%p279) target = $region69
        $region68: #{temporal_conv_layer_nchw.11} parent=23 // pred_region
          %p282 = scmp.lt.s32.totalorder %s18, 1
          %s283 = scalar_select %p282, %s18, 1
          %s284 = scalar_lea.vmem %s1, %s283
        $region69: #{temporal_conv_layer_nchw.11} parent=23 // pred_fallthru
          _
        // Predicated region
        $region70: #{temporal_conv_layer_nchw.11} parent=23 // pred_check
          %p285 = pneg %p97
        $region71: #{temporal_conv_layer_nchw.11} parent=23 // pred_check_branch
          %287 = sbr.rel (%p285) target = $region73
        $region72: #{temporal_conv_layer_nchw.11} parent=23 // pred_region
          %p288 = scmp.lt.s32.totalorder %s18, 1
          %s289 = scalar_select %p288, %s18, 1
          %s290 = scalar_lea.vmem %s2, %s289
        $region73: #{temporal_conv_layer_nchw.11} parent=23 // pred_fallthru
          _
      $region24: #{temporal_conv_layer_nchw.11} parent=5 // pred_fallthru
        _
      %p291 = scmp.le.s32.totalorder 1, %s11
      %p292 = scmp.lt.s32.totalorder %s11, 9
      %p293 = pnand %p291, %p292
      %p294 = pneg %p293
      // Predicated region
      $region74: #{temporal_conv_layer_nchw.11} parent=5 // pred_check
        _
      $region75: #{temporal_conv_layer_nchw.11} parent=5 // pred_check_branch
        %296 = sbr.rel (%p293) target = $region77
      $region76: #{temporal_conv_layer_nchw.11} parent=5 // pred_region
        %s297 = ssub.s32 %s11, 1
        %s298 = sand.u32 %s38, 1
        %s299 = sand.u32 %s38, 1
        %s300 = smul.addr %s299, 32
        %s301 = scalar_lea.vmem [#allocation3], %s300
        // Predicated region
        $region78: #{temporal_conv_layer_nchw.11} parent=76 // pred_check
          %p302 = pneg %p51
        $region79: #{temporal_conv_layer_nchw.11} parent=76 // pred_check_branch
          %304 = sbr.rel (%p302) target = $region81
        $region80: #{temporal_conv_layer_nchw.11} parent=76 // pred_region
          _
        $region81: #{temporal_conv_layer_nchw.11} parent=76 // pred_fallthru
          _
        %s305 = sand.u32 %s38, 1
        %s306 = sand.u32 %s38, 1
        %s307 = smul.addr %s306, 32
        %s308 = scalar_lea.vmem [#allocation3], %s307
        %p309 = pneg %p51
        %p310 = pneg %p48
        %p311 = scmp.lt.s32.totalorder %s20, 1
        %s312 = scalar_select %p311, %s20, 1
        %s313 = scalar_lea.vmem %s1, %s312
        %p314 = pneg %p77
        %p315 = pneg %p74
        %p316 = scmp.lt.s32.totalorder %s20, 1
        %s317 = scalar_select %p316, %s20, 1
        %s318 = scalar_lea.vmem %s2, %s317
        %p319 = pneg %p103
        %p320 = pneg %p100
        %p321 = pneg %p124
        %p322 = pneg %p121
        %p323 = pneg %p145
        %p324 = pneg %p142
        %p325 = pneg %p173
        %p326 = pneg %p170
        %s327 = sand.u32 %s160, 1
        %s328 = sand.u32 %s160, 1
        %s329 = smul.addr %s328, 32
        %s330 = scalar_lea.vmem [#allocation4], %s329
        %s331 = smul.u32 2, %s21
        %p332 = scmp.lt.s32.totalorder %s20, 1
        %s333 = scalar_select %p332, %s20, 1
        %s334 = scalar_lea.vmem %s1, %s333
        %p335 = scmp.lt.s32.totalorder %s20, 1
        %s336 = scalar_select %p335, %s20, 1
        %s337 = scalar_lea.vmem %s2, %s336
        %s338 = smul.u32 2, %s21
        %v341 = vld [vmem:[%s301] sm:$0xf]
        %v342 = vld [vmem:[%s301 + $0x4] sm:$0xf]
        %v343 = vld [vmem:[%s301 + $0x8] sm:$0xf]
        %v344 = vld [vmem:[%s301 + $0xc] sm:$0xf]
        %v345 = vld [vmem:[%s301 + $0x10] sm:$0xf]
        %v346 = vld [vmem:[%s301 + $0x14] sm:$0xf]
        %v347 = vld [vmem:[%s301 + $0x18] sm:$0xf]
        %v348 = vld [vmem:[%s301 + $0x1c] sm:$0xf]
        %v349 = vunpack.c.l.bf16 %v341
        %v350 = vunpack.c.l.bf16 %v342
        %v351 = vunpack.c.l.bf16 %v343
        %v352 = vunpack.c.l.bf16 %v344
        %v353 = vunpack.c.l.bf16 %v345
        %v354 = vunpack.c.l.bf16 %v346
        %v355 = vunpack.c.l.bf16 %v347
        %v356 = vunpack.c.l.bf16 %v348
        %v357 = vld [vmem:[%s334] sm:$0x1]
        %v359 = vperm.slane %v357, 0
        %v361 = vmul.f32 %v349, %v359
        %v362 = vmul.f32 %v350, %v359
        %v363 = vmul.f32 %v351, %v359
        %v364 = vmul.f32 %v352, %v359
        %v365 = vmul.f32 %v353, %v359
        %v366 = vmul.f32 %v354, %v359
        %v367 = vmul.f32 %v355, %v359
        %v368 = vmul.f32 %v356, %v359
        %v369 = vld [vmem:[%s337] sm:$0x1]
        %v371 = vperm.slane %v369, 0
        %v373 = vadd.f32 %v361, %v371
        %v374 = vadd.f32 %v362, %v371
        %v375 = vadd.f32 %v363, %v371
        %v376 = vadd.f32 %v364, %v371
        %v377 = vadd.f32 %v365, %v371
        %v378 = vadd.f32 %v366, %v371
        %v379 = vadd.f32 %v367, %v371
        %v380 = vadd.f32 %v368, %v371
        %v381 = vpack.c.bf16 %v373, %v373
        %v382 = vpack.c.bf16 %v374, %v374
        %v383 = vpack.c.bf16 %v375, %v375
        %v384 = vpack.c.bf16 %v376, %v376
        %v385 = vpack.c.bf16 %v377, %v377
        %v386 = vpack.c.bf16 %v378, %v378
        %v387 = vpack.c.bf16 %v379, %v379
        %v388 = vpack.c.bf16 %v380, %v380
        %v389 = vxor.u32 %v381, 2147516416
        %v390 = vxor.u32 %v382, 2147516416
        %v391 = vxor.u32 %v383, 2147516416
        %v392 = vxor.u32 %v384, 2147516416
        %v393 = vxor.u32 %v385, 2147516416
        %v394 = vxor.u32 %v386, 2147516416
        %v395 = vxor.u32 %v387, 2147516416
        %v396 = vxor.u32 %v388, 2147516416
        %v397 = vunpack.c.l.bf16 %v389
        %v398 = vunpack.c.l.bf16 %v390
        %v399 = vunpack.c.l.bf16 %v391
        %v400 = vunpack.c.l.bf16 %v392
        %v401 = vunpack.c.l.bf16 %v393
        %v402 = vunpack.c.l.bf16 %v394
        %v403 = vunpack.c.l.bf16 %v395
        %v404 = vunpack.c.l.bf16 %v396
        %v405 = vmul.f32 %v397, 1.442695
        %v406 = vpow.pop %v405
        %v407 = vmul.f32 %v398, 1.442695
        %v408 = vpow.pop %v407
        %v409 = vmul.f32 %v399, 1.442695
        %v410 = vpow.pop %v409
        %v411 = vmul.f32 %v400, 1.442695
        %v412 = vpow.pop %v411
        %v413 = vmul.f32 %v401, 1.442695
        %v414 = vpow.pop %v413
        %v415 = vmul.f32 %v402, 1.442695
        %v416 = vpow.pop %v415
        %v417 = vmul.f32 %v403, 1.442695
        %v418 = vpow.pop %v417
        %v419 = vmul.f32 %v404, 1.442695
        %v420 = vpow.pop %v419
        %v421 = vpack.c.bf16 %v406, %v406
        %v422 = vpack.c.bf16 %v408, %v408
        %v423 = vpack.c.bf16 %v410, %v410
        %v424 = vpack.c.bf16 %v412, %v412
        %v425 = vpack.c.bf16 %v414, %v414
        %v426 = vpack.c.bf16 %v416, %v416
        %v427 = vpack.c.bf16 %v418, %v418
        %v428 = vpack.c.bf16 %v420, %v420
        %v429 = vunpack.c.l.bf16 %v421
        %v430 = vunpack.c.l.bf16 %v422
        %v431 = vunpack.c.l.bf16 %v423
        %v432 = vunpack.c.l.bf16 %v424
        %v433 = vunpack.c.l.bf16 %v425
        %v434 = vunpack.c.l.bf16 %v426
        %v435 = vunpack.c.l.bf16 %v427
        %v436 = vunpack.c.l.bf16 %v428
        %v437 = vadd.f32 %v429, 1.0
        %v438 = vadd.f32 %v430, 1.0
        %v439 = vadd.f32 %v431, 1.0
        %v440 = vadd.f32 %v432, 1.0
        %v441 = vadd.f32 %v433, 1.0
        %v442 = vadd.f32 %v434, 1.0
        %v443 = vadd.f32 %v435, 1.0
        %v444 = vadd.f32 %v436, 1.0
        %v445 = vpack.c.bf16 %v437, %v437
        %v446 = vpack.c.bf16 %v438, %v438
        %v447 = vpack.c.bf16 %v439, %v439
        %v448 = vpack.c.bf16 %v440, %v440
        %v449 = vpack.c.bf16 %v441, %v441
        %v450 = vpack.c.bf16 %v442, %v442
        %v451 = vpack.c.bf16 %v443, %v443
        %v452 = vpack.c.bf16 %v444, %v444
        %v453 = vunpack.c.h.bf16 1065369472
        %v454 = vunpack.c.l.bf16 1065369472
        %v455 = vunpack.c.h.bf16 %v445
        %v456 = vunpack.c.l.bf16 %v445
        %v457 = vrcp.pop %v455
        %v458 = vmul.f32 %v453, %v457
        %v459 = vrcp.pop %v456
        %v460 = vmul.f32 %v454, %v459
        %v461 = vpack.c.bf16 %v458, %v460
        %v462 = vunpack.c.h.bf16 %v446
        %v463 = vunpack.c.l.bf16 %v446
        %v464 = vrcp.pop %v462
        %v465 = vmul.f32 %v453, %v464
        %v466 = vrcp.pop %v463
        %v467 = vmul.f32 %v454, %v466
        %v468 = vpack.c.bf16 %v465, %v467
        %v469 = vunpack.c.h.bf16 %v447
        %v470 = vunpack.c.l.bf16 %v447
        %v471 = vrcp.pop %v469
        %v472 = vmul.f32 %v453, %v471
        %v473 = vrcp.pop %v470
        %v474 = vmul.f32 %v454, %v473
        %v475 = vpack.c.bf16 %v472, %v474
        %v476 = vunpack.c.h.bf16 %v448
        %v477 = vunpack.c.l.bf16 %v448
        %v478 = vrcp.pop %v476
        %v479 = vmul.f32 %v453, %v478
        %v480 = vrcp.pop %v477
        %v481 = vmul.f32 %v454, %v480
        %v482 = vpack.c.bf16 %v479, %v481
        %v483 = vunpack.c.h.bf16 %v449
        %v484 = vunpack.c.l.bf16 %v449
        %v485 = vrcp.pop %v483
        %v486 = vmul.f32 %v453, %v485
        %v487 = vrcp.pop %v484
        %v488 = vmul.f32 %v454, %v487
        %v489 = vpack.c.bf16 %v486, %v488
        %v490 = vunpack.c.h.bf16 %v450
        %v491 = vunpack.c.l.bf16 %v450
        %v492 = vrcp.pop %v490
        %v493 = vmul.f32 %v453, %v492
        %v494 = vrcp.pop %v491
        %v495 = vmul.f32 %v454, %v494
        %v496 = vpack.c.bf16 %v493, %v495
        %v497 = vunpack.c.h.bf16 %v451
        %v498 = vunpack.c.l.bf16 %v451
        %v499 = vrcp.pop %v497
        %v500 = vmul.f32 %v453, %v499
        %v501 = vrcp.pop %v498
        %v502 = vmul.f32 %v454, %v501
        %v503 = vpack.c.bf16 %v500, %v502
        %v504 = vunpack.c.h.bf16 %v452
        %v505 = vunpack.c.l.bf16 %v452
        %v506 = vrcp.pop %v504
        %v507 = vmul.f32 %v453, %v506
        %v508 = vrcp.pop %v505
        %v509 = vmul.f32 %v454, %v508
        %v510 = vpack.c.bf16 %v507, %v509
        %v511 = vunpack.c.l.bf16 %v381
        %v512 = vunpack.c.l.bf16 %v382
        %v513 = vunpack.c.l.bf16 %v383
        %v514 = vunpack.c.l.bf16 %v384
        %v515 = vunpack.c.l.bf16 %v385
        %v516 = vunpack.c.l.bf16 %v386
        %v517 = vunpack.c.l.bf16 %v387
        %v518 = vunpack.c.l.bf16 %v388
        %v519 = vunpack.c.l.bf16 %v461
        %v520 = vunpack.c.l.bf16 %v468
        %v521 = vunpack.c.l.bf16 %v475
        %v522 = vunpack.c.l.bf16 %v482
        %v523 = vunpack.c.l.bf16 %v489
        %v524 = vunpack.c.l.bf16 %v496
        %v525 = vunpack.c.l.bf16 %v503
        %v526 = vunpack.c.l.bf16 %v510
        %v527 = vmul.f32 %v511, %v519
        %v528 = vmul.f32 %v512, %v520
        %v529 = vmul.f32 %v513, %v521
        %v530 = vmul.f32 %v514, %v522
        %v531 = vmul.f32 %v515, %v523
        %v532 = vmul.f32 %v516, %v524
        %v533 = vmul.f32 %v517, %v525
        %v534 = vmul.f32 %v518, %v526
        %v535 = vpack.c.bf16 %v527, %v527
        %v536 = vpack.c.bf16 %v528, %v528
        %v537 = vpack.c.bf16 %v529, %v529
        %v538 = vpack.c.bf16 %v530, %v530
        %v539 = vpack.c.bf16 %v531, %v531
        %v540 = vpack.c.bf16 %v532, %v532
        %v541 = vpack.c.bf16 %v533, %v533
        %v542 = vpack.c.bf16 %v534, %v534
        %543 = vst [vmem:[#allocation2] sm:$0xf] 0
        %544 = vst [vmem:[#allocation2 + $0xc] sm:$0xf] 0
        %545 = vst [vmem:[#allocation2 + $0x50] sm:$0xf] 0
        %546 = vst [vmem:[#allocation2 + $0x5c] sm:$0xf] 0
        %547 = vst [vmem:[#allocation2 + $0x18] sm:$0xf] %v535
        %548 = vst [vmem:[#allocation2 + $0x24] sm:$0xf] %v536
        %549 = vst [vmem:[#allocation2 + $0x30] sm:$0xf] %v537
        %550 = vst [vmem:[#allocation2 + $0x3c] sm:$0xf] %v538
        %551 = vst [vmem:[#allocation2 + $0x48] sm:$0xf] %v539
        %552 = vst [vmem:[#allocation2 + $0x54] sm:$0xf] %v540
        %553 = vst [vmem:[#allocation2 + $0x8] sm:$0xf] %v537
        %554 = vst [vmem:[#allocation2 + $0x14] sm:$0xf] %v538
        %555 = vst [vmem:[#allocation2 + $0x20] sm:$0xf] %v539
        %556 = vst [vmem:[#allocation2 + $0x2c] sm:$0xf] %v540
        %557 = vst [vmem:[#allocation2 + $0x38] sm:$0xf] %v541
        %558 = vst [vmem:[#allocation2 + $0x44] sm:$0xf] %v542
        %559 = vst [vmem:[#allocation2 + $0x4] sm:$0xf] %v535
        %560 = vst [vmem:[#allocation2 + $0x10] sm:$0xf] %v536
        %561 = vst [vmem:[#allocation2 + $0x1c] sm:$0xf] %v537
        %562 = vst [vmem:[#allocation2 + $0x28] sm:$0xf] %v538
        %563 = vst [vmem:[#allocation2 + $0x34] sm:$0xf] %v539
        %564 = vst [vmem:[#allocation2 + $0x40] sm:$0xf] %v540
        %565 = vst [vmem:[#allocation2 + $0x4c] sm:$0xf] %v541
        %566 = vst [vmem:[#allocation2 + $0x58] sm:$0xf] %v542
        %v567 = vld [vmem:[#allocation2] sm:$0xff]
        %v568 = vld [vmem:[#allocation2 + $0x8] sm:$0xf]
        %v569 = vld [vmem:[#allocation2 + $0xc] sm:$0xff]
        %v570 = vld [vmem:[#allocation2 + $0x14] sm:$0xf]
        %v571 = vld [vmem:[#allocation2 + $0x18] sm:$0xff]
        %v572 = vld [vmem:[#allocation2 + $0x20] sm:$0xf]
        %v573 = vld [vmem:[#allocation2 + $0x24] sm:$0xff]
        %v574 = vld [vmem:[#allocation2 + $0x2c] sm:$0xf]
        %v575 = vld [vmem:[#allocation2 + $0x30] sm:$0xff]
        %v576 = vld [vmem:[#allocation2 + $0x38] sm:$0xf]
        %v577 = vld [vmem:[#allocation2 + $0x3c] sm:$0xff]
        %v578 = vld [vmem:[#allocation2 + $0x44] sm:$0xf]
        %v579 = vld [vmem:[#allocation2 + $0x48] sm:$0xff]
        %v580 = vld [vmem:[#allocation2 + $0x50] sm:$0xf]
        %v581 = vld [vmem:[#allocation2 + $0x54] sm:$0xff]
        %v582 = vld [vmem:[#allocation2 + $0x5c] sm:$0xf]
        %v583 = vld [vmem:[%s3] sm:$0xf]
        %v584 = vld [vmem:[%s3 + $0x4] sm:$0xf]
        %v585 = vld [vmem:[%s3 + $0x8] sm:$0xf]
        %v586 = vld [vmem:[%s3 + $0xc] sm:$0xf]
        %v587 = vld [vmem:[%s3 + $0x10] sm:$0xf]
        %v588 = vld [vmem:[%s3 + $0x14] sm:$0xf]
        %v589 = vld [vmem:[%s3 + $0x18] sm:$0xf]
        %v590 = vld [vmem:[%s3 + $0x1c] sm:$0xf]
        %v591 = vld [vmem:[%s3 + $0x20] sm:$0xf]
        %v592 = vld [vmem:[%s3 + $0x24] sm:$0xf]
        %v593 = vld [vmem:[%s3 + $0x28] sm:$0xf]
        %v594 = vld [vmem:[%s3 + $0x2c] sm:$0xf]
        %v595 = vld [vmem:[%s3 + $0x30] sm:$0xf]
        %v596 = vld [vmem:[%s3 + $0x34] sm:$0xf]
        %v597 = vld [vmem:[%s3 + $0x38] sm:$0xf]
        %v598 = vld [vmem:[%s3 + $0x3c] sm:$0xf]
        %v599 = vld [vmem:[%s3 + $0x40] sm:$0xf]
        %v600 = vld [vmem:[%s3 + $0x44] sm:$0xf]
        %v601 = vld [vmem:[%s3 + $0x48] sm:$0xf]
        %v602 = vld [vmem:[%s3 + $0x4c] sm:$0xf]
        %v603 = vld [vmem:[%s3 + $0x50] sm:$0xf]
        %v604 = vld [vmem:[%s3 + $0x54] sm:$0xf]
        %v605 = vld [vmem:[%s3 + $0x58] sm:$0xf]
        %v606 = vld [vmem:[%s3 + $0x5c] sm:$0xf]
        %v607 = vld [vmem:[%s3 + $0x60] sm:$0xf]
        %v608 = vld [vmem:[%s3 + $0x64] sm:$0xf]
        %v609 = vld [vmem:[%s3 + $0x68] sm:$0xf]
        %v610 = vld [vmem:[%s3 + $0x6c] sm:$0xf]
        %v611 = vld [vmem:[%s3 + $0x70] sm:$0xf]
        %v612 = vld [vmem:[%s3 + $0x74] sm:$0xf]
        %v613 = vld [vmem:[%s3 + $0x78] sm:$0xf]
        %v614 = vld [vmem:[%s3 + $0x7c] sm:$0xf]
        %v615 = vld [vmem:[%s3 + $0x80] sm:$0xf]
        %v616 = vld [vmem:[%s3 + $0x84] sm:$0xf]
        %v617 = vld [vmem:[%s3 + $0x88] sm:$0xf]
        %v618 = vld [vmem:[%s3 + $0x8c] sm:$0xf]
        %v619 = vld [vmem:[%s3 + $0x90] sm:$0xf]
        %v620 = vld [vmem:[%s3 + $0x94] sm:$0xf]
        %v621 = vld [vmem:[%s3 + $0x98] sm:$0xf]
        %v622 = vld [vmem:[%s3 + $0x9c] sm:$0xf]
        %v623 = vld [vmem:[%s3 + $0xa0] sm:$0xf]
        %v624 = vld [vmem:[%s3 + $0xa4] sm:$0xf]
        %v625 = vld [vmem:[%s3 + $0xa8] sm:$0xf]
        %v626 = vld [vmem:[%s3 + $0xac] sm:$0xf]
        %v627 = vld [vmem:[%s3 + $0xb0] sm:$0xf]
        %v628 = vld [vmem:[%s3 + $0xb4] sm:$0xf]
        %v629 = vld [vmem:[%s3 + $0xb8] sm:$0xf]
        %v630 = vld [vmem:[%s3 + $0xbc] sm:$0xf]
        %v631 = vld [vmem:[%s4] sm:$0x1]
        %v633 = vperm.slane %v631, 0
        %v651 = vunpack.c.l.b16 %v567
        %v652 = vunpack.c.h.b16 %v567
        %v653 = vunpack.c.l.b16 %v568
        %v654 = vunpack.c.l.b16 %v569
        %v655 = vunpack.c.h.b16 %v569
        %v656 = vunpack.c.l.b16 %v570
        %v657 = vunpack.c.l.b16 %v571
        %v658 = vunpack.c.h.b16 %v571
        %v659 = vunpack.c.l.b16 %v572
        %v660 = vunpack.c.l.b16 %v573
        %v661 = vunpack.c.h.b16 %v573
        %v662 = vunpack.c.l.b16 %v574
        %v663 = vunpack.c.l.b16 %v575
        %v664 = vunpack.c.h.b16 %v575
        %v665 = vunpack.c.l.b16 %v576
        %v666 = vunpack.c.l.b16 %v577
        %v667 = vunpack.c.h.b16 %v577
        %v668 = vunpack.c.l.b16 %v578
        %v669 = vunpack.c.l.b16 %v579
        %v670 = vunpack.c.h.b16 %v579
        %v671 = vunpack.c.l.b16 %v580
        %v672 = vunpack.c.l.b16 %v581
        %v673 = vunpack.c.h.b16 %v581
        %v674 = vunpack.c.l.b16 %v582
        %v675 = vpack.c.b16 %v654, %v651
        %v676 = vpack.c.b16 %v655, %v652
        %v677 = vpack.c.b16 %v656, %v653
        %v678 = vpack.c.b16 %v660, %v657
        %v679 = vpack.c.b16 %v661, %v658
        %v680 = vpack.c.b16 %v662, %v659
        %v681 = vpack.c.b16 %v666, %v663
        %v682 = vpack.c.b16 %v667, %v664
        %v683 = vpack.c.b16 %v668, %v665
        %v684 = vpack.c.b16 %v672, %v669
        %v685 = vpack.c.b16 %v673, %v670
        %v686 = vpack.c.b16 %v674, %v671
        %v747 = vunpack.c.l.b16 %v583
        %v748 = vunpack.c.l.b16 %v584
        %v749 = vunpack.c.l.b16 %v585
        %v750 = vunpack.c.l.b16 %v586
        %v751 = vunpack.c.l.b16 %v587
        %v752 = vunpack.c.l.b16 %v588
        %v753 = vunpack.c.l.b16 %v589
        %v754 = vunpack.c.l.b16 %v590
        %v755 = vunpack.c.l.b16 %v591
        %v756 = vunpack.c.l.b16 %v592
        %v757 = vunpack.c.l.b16 %v593
        %v758 = vunpack.c.l.b16 %v594
        %v759 = vunpack.c.l.b16 %v595
        %v760 = vunpack.c.l.b16 %v596
        %v761 = vunpack.c.l.b16 %v597
        %v762 = vunpack.c.l.b16 %v598
        %v763 = vunpack.c.l.b16 %v599
        %v764 = vunpack.c.l.b16 %v600
        %v765 = vunpack.c.l.b16 %v601
        %v766 = vunpack.c.l.b16 %v602
        %v767 = vunpack.c.l.b16 %v603
        %v768 = vunpack.c.l.b16 %v604
        %v769 = vunpack.c.l.b16 %v605
        %v770 = vunpack.c.l.b16 %v606
        %v771 = vunpack.c.l.b16 %v607
        %v772 = vunpack.c.l.b16 %v608
        %v773 = vunpack.c.l.b16 %v609
        %v774 = vunpack.c.l.b16 %v610
        %v775 = vunpack.c.l.b16 %v611
        %v776 = vunpack.c.l.b16 %v612
        %v777 = vunpack.c.l.b16 %v613
        %v778 = vunpack.c.l.b16 %v614
        %v779 = vunpack.c.l.b16 %v615
        %v780 = vunpack.c.l.b16 %v616
        %v781 = vunpack.c.l.b16 %v617
        %v782 = vunpack.c.l.b16 %v618
        %v783 = vunpack.c.l.b16 %v619
        %v784 = vunpack.c.l.b16 %v620
        %v785 = vunpack.c.l.b16 %v621
        %v786 = vunpack.c.l.b16 %v622
        %v787 = vunpack.c.l.b16 %v623
        %v788 = vunpack.c.l.b16 %v624
        %v789 = vunpack.c.l.b16 %v625
        %v790 = vunpack.c.l.b16 %v626
        %v791 = vunpack.c.l.b16 %v627
        %v792 = vunpack.c.l.b16 %v628
        %v793 = vunpack.c.l.b16 %v629
        %v794 = vunpack.c.l.b16 %v630
        %v795 = vpack.c.b16 %v748, %v747
        %v796 = vpack.c.b16 %v750, %v749
        %v797 = vpack.c.b16 %v752, %v751
        %v798 = vpack.c.b16 %v754, %v753
        %v799 = vpack.c.b16 %v756, %v755
        %v800 = vpack.c.b16 %v758, %v757
        %v801 = vpack.c.b16 %v760, %v759
        %v802 = vpack.c.b16 %v762, %v761
        %v803 = vpack.c.b16 %v764, %v763
        %v804 = vpack.c.b16 %v766, %v765
        %v805 = vpack.c.b16 %v768, %v767
        %v806 = vpack.c.b16 %v770, %v769
        %v807 = vpack.c.b16 %v772, %v771
        %v808 = vpack.c.b16 %v774, %v773
        %v809 = vpack.c.b16 %v776, %v775
        %v810 = vpack.c.b16 %v778, %v777
        %v811 = vpack.c.b16 %v780, %v779
        %v812 = vpack.c.b16 %v782, %v781
        %v813 = vpack.c.b16 %v784, %v783
        %v814 = vpack.c.b16 %v786, %v785
        %v815 = vpack.c.b16 %v788, %v787
        %v816 = vpack.c.b16 %v790, %v789
        %v817 = vpack.c.b16 %v792, %v791
        %v818 = vpack.c.b16 %v794, %v793
        %843 = vmatpush.bf16.msra.mxu0 %v802
        %844 = vmatpush.bf16.msra.mxu0 %v801
        %845 = vmatpush.bf16.msra.mxu0 %v800
        %846 = vmatpush.bf16.msra.mxu0 %v799
        %847 = vmatpush.bf16.msra.mxu0 %v798
        %848 = vmatpush.bf16.msra.mxu0 %v797
        %849 = vmatpush.bf16.msra.mxu0 %v796
        %850 = vmatpush.bf16.msra.mxu0 %v795
        %851 = vmatmul.bf16.gmra.mxu0 %v675
        %v852 = vpop.f32.mrf.mxu0
        %v853 = vadd.f32 %v633, %v852
        %v854 = vpop.f32.mrf.mxu0
        %v855 = vadd.f32 %v633, %v854
        %856 = vmatmul.bf16.gmra.mxu0 %v678
        %v857 = vpop.f32.mrf.mxu0
        %v858 = vadd.f32 %v633, %v857
        %v859 = vpop.f32.mrf.mxu0
        %v860 = vadd.f32 %v633, %v859
        %861 = vmatmul.bf16.gmra.mxu0 %v681
        %v862 = vpop.f32.mrf.mxu0
        %v863 = vadd.f32 %v633, %v862
        %v864 = vpop.f32.mrf.mxu0
        %v865 = vadd.f32 %v633, %v864
        %866 = vmatmul.bf16.gmra.mxu0 %v684
        %v867 = vpop.f32.mrf.mxu0
        %v868 = vadd.f32 %v633, %v867
        %v869 = vpop.f32.mrf.mxu0
        %v870 = vadd.f32 %v633, %v869
        %871 = vdwg.mxu0
        %872 = vmatpush.bf16.msra.mxu0 %v810
        %873 = vmatpush.bf16.msra.mxu0 %v809
        %874 = vmatpush.bf16.msra.mxu0 %v808
        %875 = vmatpush.bf16.msra.mxu0 %v807
        %876 = vmatpush.bf16.msra.mxu0 %v806
        %877 = vmatpush.bf16.msra.mxu0 %v805
        %878 = vmatpush.bf16.msra.mxu0 %v804
        %879 = vmatpush.bf16.msra.mxu0 %v803
        %880 = vmatmul.bf16.gmra.mxu0 %v676
        %v881 = vpop.f32.mrf.mxu0
        %v882 = vadd.f32 %v853, %v881
        %v883 = vpop.f32.mrf.mxu0
        %v884 = vadd.f32 %v855, %v883
        %885 = vmatmul.bf16.gmra.mxu0 %v679
        %v886 = vpop.f32.mrf.mxu0
        %v887 = vadd.f32 %v858, %v886
        %v888 = vpop.f32.mrf.mxu0
        %v889 = vadd.f32 %v860, %v888
        %890 = vmatmul.bf16.gmra.mxu0 %v682
        %v891 = vpop.f32.mrf.mxu0
        %v892 = vadd.f32 %v863, %v891
        %v893 = vpop.f32.mrf.mxu0
        %v894 = vadd.f32 %v865, %v893
        %895 = vmatmul.bf16.gmra.mxu0 %v685
        %v896 = vpop.f32.mrf.mxu0
        %v897 = vadd.f32 %v868, %v896
        %v898 = vpop.f32.mrf.mxu0
        %v899 = vadd.f32 %v870, %v898
        %900 = vdwg.mxu0
        %901 = vmatpush.bf16.msra.mxu0 %v818
        %902 = vmatpush.bf16.msra.mxu0 %v817
        %903 = vmatpush.bf16.msra.mxu0 %v816
        %904 = vmatpush.bf16.msra.mxu0 %v815
        %905 = vmatpush.bf16.msra.mxu0 %v814
        %906 = vmatpush.bf16.msra.mxu0 %v813
        %907 = vmatpush.bf16.msra.mxu0 %v812
        %908 = vmatpush.bf16.msra.mxu0 %v811
        %909 = vmatmul.bf16.gmra.mxu0 %v677
        %v910 = vpop.f32.mrf.mxu0
        %v911 = vadd.f32 %v882, %v910
        %v912 = vpop.f32.mrf.mxu0
        %v913 = vadd.f32 %v884, %v912
        %914 = vmatmul.bf16.gmra.mxu0 %v680
        %v915 = vpop.f32.mrf.mxu0
        %v916 = vadd.f32 %v887, %v915
        %v917 = vpop.f32.mrf.mxu0
        %v918 = vadd.f32 %v889, %v917
        %919 = vmatmul.bf16.gmra.mxu0 %v683
        %v920 = vpop.f32.mrf.mxu0
        %v921 = vadd.f32 %v892, %v920
        %v922 = vpop.f32.mrf.mxu0
        %v923 = vadd.f32 %v894, %v922
        %924 = vmatmul.bf16.gmra.mxu0 %v686
        %v925 = vpop.f32.mrf.mxu0
        %v926 = vadd.f32 %v897, %v925
        %v927 = vpop.f32.mrf.mxu0
        %v928 = vadd.f32 %v899, %v927
        %929 = vdwg.mxu0
        %v930 = vpack.c.bf16 %v911, %v911
        %v931 = vpack.c.bf16 %v913, %v913
        %v932 = vpack.c.bf16 %v916, %v916
        %v933 = vpack.c.bf16 %v918, %v918
        %v934 = vpack.c.bf16 %v921, %v921
        %v935 = vpack.c.bf16 %v923, %v923
        %v936 = vpack.c.bf16 %v926, %v926
        %v937 = vpack.c.bf16 %v928, %v928
        %938 = vst [vmem:[%s330] sm:$0xf] %v930
        %939 = vst [vmem:[%s330 + $0x4] sm:$0xf] %v931
        %940 = vst [vmem:[%s330 + $0x8] sm:$0xf] %v932
        %941 = vst [vmem:[%s330 + $0xc] sm:$0xf] %v933
        %942 = vst [vmem:[%s330 + $0x10] sm:$0xf] %v934
        %943 = vst [vmem:[%s330 + $0x14] sm:$0xf] %v935
        %944 = vst [vmem:[%s330 + $0x18] sm:$0xf] %v936
        %945 = vst [vmem:[%s330 + $0x1c] sm:$0xf] %v937
        %s946 = sand.u32 %s160, 1
        %s947 = sand.u32 %s160, 1
        %s948 = smul.addr %s947, 32
        %s949 = scalar_lea.vmem [#allocation4], %s948
        // Predicated region
        $region82: #{temporal_conv_layer_nchw.11} parent=76 // pred_check
          %p950 = pneg %p170
        $region83: #{temporal_conv_layer_nchw.11} parent=76 // pred_check_branch
          %952 = sbr.rel (%p950) target = $region85
        $region84: #{temporal_conv_layer_nchw.11} parent=76 // pred_region
          %s953 = smul.u32 2, %s21
          %s954 = smul.addr %s20, 32
          %s955 = sadd.s32 %s953, %s954
          %s956 = smul.addr %s955, 4
          %s957 = scalar_lea.vmem %s5, %s956
          // Predicated region
          $region86: #{temporal_conv_layer_nchw.11} parent=84 // pred_check
            _
          $region87: #{temporal_conv_layer_nchw.11} parent=84 // pred_check_branch
            %959 = sbr.rel (0) target = $region89
          $region88: #{temporal_conv_layer_nchw.11} parent=84 // pred_region
            // Predicated region
            $region90: #{temporal_conv_layer_nchw.11} parent=88 // pred_check
              _
            $region91: #{temporal_conv_layer_nchw.11} parent=88 // pred_check_branch
              %961 = sbr.rel target = $region93
            $region92: #{temporal_conv_layer_nchw.11} parent=88 // pred_region
              // Predicated region
              $region105: #{temporal_conv_layer_nchw.11} parent=92 // pred_check
                _
              $region106: #{temporal_conv_layer_nchw.11} parent=92 // pred_check_branch
                %991 = sbr.rel (0) target = $region108
              $region107: #{temporal_conv_layer_nchw.11} parent=92 // pred_region
                loop: start=0, step=1, limit=1
                $region109: #{temporal_conv_layer_nchw.11} parent=107 // loop_pre_header
                  _
                $region110: #{temporal_conv_layer_nchw.11} parent=107 // loop_header
                  %s993 = sphi 0, %s997
                  %p994 = scmp.ge.s32.totalorder %s993, 1
                  %s998 = sphi %s949, %s949
                  %s999 = sphi %s957, %s957
                $region111: #{temporal_conv_layer_nchw.11} parent=107 // loop_header_branch
                  %996 = sbr.rel (%p994) target = $region115
                $region112: #{temporal_conv_layer_nchw.11} parent=107 // loop_body
                  _
                $region113: #{temporal_conv_layer_nchw.11} parent=107 // loop_footer
                  %s997 = sadd.s32 1, %s993
                $region114: #{temporal_conv_layer_nchw.11} parent=107 // loop_footer_branch
                  %992 = sbr.rel target = $region110
                $region115: #{temporal_conv_layer_nchw.11} parent=107 // loop_exit
                  _
                %s1001 = ssub.s32 16, 1
                loop: start=0, step=1, limit=1
                $region116: #{temporal_conv_layer_nchw.11} parent=107 // loop_pre_header
                  _
                $region117: #{temporal_conv_layer_nchw.11} parent=107 // loop_header
                  %s1003 = sphi 0, %s1007
                  %p1004 = scmp.ge.s32.totalorder %s1003, 1
                  %s1008 = sphi %s949, %s949
                  %s1009 = sphi %s957, %s957
                $region118: #{temporal_conv_layer_nchw.11} parent=107 // loop_header_branch
                  %1006 = sbr.rel (%p1004) target = $region122
                $region119: #{temporal_conv_layer_nchw.11} parent=107 // loop_body
                  %v1010 = vld [vmem:[%s1008] sm:%s1001]
                  %1011 = vst [vmem:[%s1009] sm:%s1001] %v1010
                  %v1012 = vld [vmem:[%s1008 + $0x4] sm:%s1001]
                  %1013 = vst [vmem:[%s1009 + $0x4] sm:%s1001] %v1012
                  %v1014 = vld [vmem:[%s1008 + $0x8] sm:%s1001]
                  %1015 = vst [vmem:[%s1009 + $0x20] sm:%s1001] %v1014
                  %v1016 = vld [vmem:[%s1008 + $0xc] sm:%s1001]
                  %1017 = vst [vmem:[%s1009 + $0x24] sm:%s1001] %v1016
                  %v1018 = vld [vmem:[%s1008 + $0x10] sm:%s1001]
                  %1019 = vst [vmem:[%s1009 + $0x40] sm:%s1001] %v1018
                  %v1020 = vld [vmem:[%s1008 + $0x14] sm:%s1001]
                  %1021 = vst [vmem:[%s1009 + $0x44] sm:%s1001] %v1020
                  %v1022 = vld [vmem:[%s1008 + $0x18] sm:%s1001]
                  %1023 = vst [vmem:[%s1009 + $0x60] sm:%s1001] %v1022
                  %v1024 = vld [vmem:[%s1008 + $0x1c] sm:%s1001]
                  %1025 = vst [vmem:[%s1009 + $0x64] sm:%s1001] %v1024
                $region120: #{temporal_conv_layer_nchw.11} parent=107 // loop_footer
                  %s1007 = sadd.s32 1, %s1003
                $region121: #{temporal_conv_layer_nchw.11} parent=107 // loop_footer_branch
                  %1002 = sbr.rel target = $region117
                $region122: #{temporal_conv_layer_nchw.11} parent=107 // loop_exit
                  _
              $region108: #{temporal_conv_layer_nchw.11} parent=92 // pred_fallthru
                _
            $region93: #{temporal_conv_layer_nchw.11} parent=88 // pred_fallthru
              _
            // Predicated region
            $region94: #{temporal_conv_layer_nchw.11} parent=88 // pred_check
              _
            $region95: #{temporal_conv_layer_nchw.11} parent=88 // pred_check_branch
              %963 = sbr.rel (0) target = $region97
            $region96: #{temporal_conv_layer_nchw.11} parent=88 // pred_region
              %s965 = ssub.s32 16, 1
              loop: start=0, step=1, limit=1
              $region98: #{temporal_conv_layer_nchw.11} parent=96 // loop_pre_header
                _
              $region99: #{temporal_conv_layer_nchw.11} parent=96 // loop_header
                %s967 = sphi 0, %s971
                %p968 = scmp.ge.s32.totalorder %s967, 1
                %s972 = sphi %s949, %s949
                %s973 = sphi %s957, %s957
              $region100: #{temporal_conv_layer_nchw.11} parent=96 // loop_header_branch
                %970 = sbr.rel (%p968) target = $region104
              $region101: #{temporal_conv_layer_nchw.11} parent=96 // loop_body
                %v974 = vld [vmem:[%s972] sm:%s965]
                %975 = vst [vmem:[%s973] sm:%s965] %v974
                %v976 = vld [vmem:[%s972 + $0x4] sm:%s965]
                %977 = vst [vmem:[%s973 + $0x4] sm:%s965] %v976
                %v978 = vld [vmem:[%s972 + $0x8] sm:%s965]
                %979 = vst [vmem:[%s973 + $0x20] sm:%s965] %v978
                %v980 = vld [vmem:[%s972 + $0xc] sm:%s965]
                %981 = vst [vmem:[%s973 + $0x24] sm:%s965] %v980
                %v982 = vld [vmem:[%s972 + $0x10] sm:%s965]
                %983 = vst [vmem:[%s973 + $0x40] sm:%s965] %v982
                %v984 = vld [vmem:[%s972 + $0x14] sm:%s965]
                %985 = vst [vmem:[%s973 + $0x44] sm:%s965] %v984
                %v986 = vld [vmem:[%s972 + $0x18] sm:%s965]
                %987 = vst [vmem:[%s973 + $0x60] sm:%s965] %v986
                %v988 = vld [vmem:[%s972 + $0x1c] sm:%s965]
                %989 = vst [vmem:[%s973 + $0x64] sm:%s965] %v988
              $region102: #{temporal_conv_layer_nchw.11} parent=96 // loop_footer
                %s971 = sadd.s32 1, %s967
              $region103: #{temporal_conv_layer_nchw.11} parent=96 // loop_footer_branch
                %966 = sbr.rel target = $region99
              $region104: #{temporal_conv_layer_nchw.11} parent=96 // loop_exit
                _
            $region97: #{temporal_conv_layer_nchw.11} parent=88 // pred_fallthru
              _
          $region89: #{temporal_conv_layer_nchw.11} parent=84 // pred_fallthru
            _
          %1026 = vnop
        $region85: #{temporal_conv_layer_nchw.11} parent=76 // pred_fallthru
          _
      $region77: #{temporal_conv_layer_nchw.11} parent=5 // pred_fallthru
        _
      %p1027 = scmp.le.s32.totalorder 2, %s11
      // Predicated region
      $region123: #{temporal_conv_layer_nchw.11} parent=5 // pred_check
        %p1028 = pneg %p1027
      $region124: #{temporal_conv_layer_nchw.11} parent=5 // pred_check_branch
        %1030 = sbr.rel (%p1028) target = $region126
      $region125: #{temporal_conv_layer_nchw.11} parent=5 // pred_region
        %s1031 = ssub.s32 %s11, 2
        // Predicated region
        $region127: #{temporal_conv_layer_nchw.11} parent=125 // pred_check
          %p1032 = pneg %p176
        $region128: #{temporal_conv_layer_nchw.11} parent=125 // pred_check_branch
          %1034 = sbr.rel (%p1032) target = $region130
        $region129: #{temporal_conv_layer_nchw.11} parent=125 // pred_region
          %s1035 = sand.u32 %s161, 1
          %s1036 = sand.u32 %s161, 1
          %s1037 = smul.addr %s1036, 32
          %s1038 = scalar_lea.vmem [#allocation4], %s1037
        $region130: #{temporal_conv_layer_nchw.11} parent=125 // pred_fallthru
          _
      $region126: #{temporal_conv_layer_nchw.11} parent=5 // pred_fallthru
        _
    $region6: #{temporal_conv_layer_nchw.11} parent=1 // loop_footer
      %s15 = sadd.s32 1, %s11
    $region7: #{temporal_conv_layer_nchw.11} parent=1 // loop_footer_branch
      %10 = sbr.rel target = $region3
    $region8: #{temporal_conv_layer_nchw.11} parent=1 // loop_exit
      _

// kernel: temporal_conv_layer_nchw.9
$region0: #{temporal_conv_layer_nchw.9}
  #allocation0 [shape = 'u32[]', space=smem, size = 0x4, offset = 0x4, fixed_abs, tag = 'smem constant byte address 0x4 - core index']
  #allocation1 [shape = 'u32[72,128]{1,0:T(1,128)}', space=vmem, size = 0x9000, scoped, tag = 'internal scratch']
  #allocation2 [shape = 'bf16[64,384]{1,0:T(8,128)(2,1)}', space=vmem, size = 0xc000, scoped, tag = 'scratch operand']
  %s0 = inlined_call_operand.vmem [shape: f32[2,4,64,128], index: 0, kind: input, shape index: {}]
  %s1 = inlined_call_operand.vmem [shape: f32[2,1,128], index: 1, kind: input, shape index: {}]
  %s2 = inlined_call_operand.vmem [shape: f32[2,1,128], index: 2, kind: input, shape index: {}]
  %s3 = inlined_call_operand.hbm [shape: bf16[384,128], index: 3, kind: input, shape index: {}]
  %s4 = inlined_call_operand.vmem [shape: f32[1,128], index: 4, kind: input, shape index: {}]
  %s5 = inlined_call_operand.vmem [shape: bf16[2,4,64,128], index: 5, kind: output, shape index: {}]
  %s6 = sld [smem:[#allocation0]]
  $region132: #{temporal_conv_layer_nchw.9} parent=0
    _
  %s8 = ssub.s32 1, %s6
  %s9 = scalar_select 0, %s8, %s6
  $region1: #{temporal_conv_layer_nchw.9} parent=0
    #allocation3 [shape = 'u8[65536]{0}', space=vmem, size = 0x10000, scoped, tag = 'input window, operand 0']
    #allocation4 [shape = 'u8[98304]{0}', space=vmem, size = 0x18000, scoped, tag = 'input window, operand 3, single buffered']
    #allocation5 [shape = 's32[2]{0}', space=sflag, size = 0x8, scoped, tag = 'scoped memory for temporal_conv_layer_nchw.9']
    #allocation6 [shape = 'u8[32768]{0}', space=vmem, size = 0x8000, scoped, tag = 'output window, operand 0']
    %10 = vsyncpa [#allocation5], 0
    loop: start=0, step=1, limit=10
    $region2: #{temporal_conv_layer_nchw.9} parent=1 // loop_pre_header
      _
    $region3: #{temporal_conv_layer_nchw.9} parent=1 // loop_header
      %s12 = sphi 0, %s16
      %p13 = scmp.ge.s32.totalorder %s12, 10
      %s19 = sphi 0, %s31
      %s20 = sphi 0, %s27
      %s21 = sphi 0, %s19
      %s22 = sphi 0, %s20
      %s23 = sphi 0, %s21
      %s24 = sphi 0, %s22
      %s36 = sphi 0, %s38
      %s39 = sphi 0, %s36
      %s40 = sphi 0, %s39
      %s56 = sphi 0, %s40
      %s62 = sphi 0, %s64
      %s65 = sphi 0, %s62
      %s66 = sphi 0, %s65
      %s82 = sphi 0, %s66
      %s88 = sphi 0, %s90
      %s91 = sphi 0, %s88
      %s92 = sphi 0, %s91
      %s108 = sphi 0, %s92
      %s112 = sphi 0, %s112
      %s114 = sphi 0, %s112
      %s115 = sphi 0, %s114
      %s129 = sphi 0, %s115
      %s133 = sphi 0, %s133
      %s135 = sphi 0, %s133
      %s136 = sphi 0, %s135
      %s150 = sphi 0, %s136
      %s158 = sphi 0, %s160
      %s161 = sphi 0, %s158
      %s162 = sphi 0, %s161
      %s178 = sphi 0, %s162
    $region4: #{temporal_conv_layer_nchw.9} parent=1 // loop_header_branch
      %15 = sbr.rel (%p13) target = $region8
    $region5: #{temporal_conv_layer_nchw.9} parent=1 // loop_body
      %s17 = ssub.s32 %s12, 1
      %s18 = ssub.s32 %s12, 2
      %s25 = sadd.s32 1, %s20
      %p26 = scmp.ge.s32.totalorder %s25, 4
      %s27 = scalar_select %p26, 0, %s25
      %s28 = sadd.s32 1, %s19
      %s29 = scalar_select %p26, %s28, %s19
      %p30 = scmp.ge.s32.totalorder %s29, 2
      %s31 = scalar_select %p30, 0, %s29
      %s32 = ssub.s32 %s19, %s31
      %s33 = ssub.s32 %s20, %s27
      %s34 = sor.u32 %s32, %s33
      %p35 = scmp.eq.s32.totalorder %s34, 0
      %s37 = sadd.s32 %s36, 1
      %s38 = scalar_select %p35, %s36, %s37
      %p41 = pneg %p35
      %p42 = scmp.eq.s32.totalorder %s12, 7
      %p43 = por %p41, %p42
      %p44 = scmp.ne.s32.totalorder %s36, %s39
      %p45 = scmp.eq.s32.totalorder %s12, 0
      %p46 = por %p44, %p45
      %p47 = scmp.ne.s32.totalorder %s36, %s39
      %p48 = scmp.eq.s32.totalorder %s17, 7
      %p49 = por %p47, %p48
      %p50 = scmp.ne.s32.totalorder %s39, %s40
      %p51 = scmp.eq.s32.totalorder %s17, 0
      %p52 = por %p50, %p51
      %p53 = scmp.ne.s32.totalorder %s39, %s40
      %p54 = scmp.eq.s32.totalorder %s18, 7
      %p55 = por %p53, %p54
      %p57 = scmp.ne.s32.totalorder %s40, %s56
      %p58 = scmp.eq.s32.totalorder %s18, 0
      %p59 = por %p57, %p58
      %s60 = ssub.s32 %s19, %s31
      %p61 = scmp.eq.s32.totalorder %s60, 0
      %s63 = sadd.s32 %s62, 1
      %s64 = scalar_select %p61, %s62, %s63
      %p67 = pneg %p61
      %p68 = scmp.eq.s32.totalorder %s12, 7
      %p69 = por %p67, %p68
      %p70 = scmp.ne.s32.totalorder %s62, %s65
      %p71 = scmp.eq.s32.totalorder %s12, 0
      %p72 = por %p70, %p71
      %p73 = scmp.ne.s32.totalorder %s62, %s65
      %p74 = scmp.eq.s32.totalorder %s17, 7
      %p75 = por %p73, %p74
      %p76 = scmp.ne.s32.totalorder %s65, %s66
      %p77 = scmp.eq.s32.totalorder %s17, 0
      %p78 = por %p76, %p77
      %p79 = scmp.ne.s32.totalorder %s65, %s66
      %p80 = scmp.eq.s32.totalorder %s18, 7
      %p81 = por %p79, %p80
      %p83 = scmp.ne.s32.totalorder %s66, %s82
      %p84 = scmp.eq.s32.totalorder %s18, 0
      %p85 = por %p83, %p84
      %s86 = ssub.s32 %s19, %s31
      %p87 = scmp.eq.s32.totalorder %s86, 0
      %s89 = sadd.s32 %s88, 1
      %s90 = scalar_select %p87, %s88, %s89
      %p93 = pneg %p87
      %p94 = scmp.eq.s32.totalorder %s12, 7
      %p95 = por %p93, %p94
      %p96 = scmp.ne.s32.totalorder %s88, %s91
      %p97 = scmp.eq.s32.totalorder %s12, 0
      %p98 = por %p96, %p97
      %p99 = scmp.ne.s32.totalorder %s88, %s91
      %p100 = scmp.eq.s32.totalorder %s17, 7
      %p101 = por %p99, %p100
      %p102 = scmp.ne.s32.totalorder %s91, %s92
      %p103 = scmp.eq.s32.totalorder %s17, 0
      %p104 = por %p102, %p103
      %p105 = scmp.ne.s32.totalorder %s91, %s92
      %p106 = scmp.eq.s32.totalorder %s18, 7
      %p107 = por %p105, %p106
      %p109 = scmp.ne.s32.totalorder %s92, %s108
      %p110 = scmp.eq.s32.totalorder %s18, 0
      %p111 = por %p109, %p110
      %s113 = sadd.s32 %s112, 1
      %p116 = scmp.eq.s32.totalorder %s12, 7
      %p117 = scmp.ne.s32.totalorder %s112, %s114
      %p118 = scmp.eq.s32.totalorder %s12, 0
      %p119 = por %p117, %p118
      %p120 = scmp.ne.s32.totalorder %s112, %s114
      %p121 = scmp.eq.s32.totalorder %s17, 7
      %p122 = por %p120, %p121
      %p123 = scmp.ne.s32.totalorder %s114, %s115
      %p124 = scmp.eq.s32.totalorder %s17, 0
      %p125 = por %p123, %p124
      %p126 = scmp.ne.s32.totalorder %s114, %s115
      %p127 = scmp.eq.s32.totalorder %s18, 7
      %p128 = por %p126, %p127
      %p130 = scmp.ne.s32.totalorder %s115, %s129
      %p131 = scmp.eq.s32.totalorder %s18, 0
      %p132 = por %p130, %p131
      %s134 = sadd.s32 %s133, 1
      %p137 = scmp.eq.s32.totalorder %s12, 7
      %p138 = scmp.ne.s32.totalorder %s133, %s135
      %p139 = scmp.eq.s32.totalorder %s12, 0
      %p140 = por %p138, %p139
      %p141 = scmp.ne.s32.totalorder %s133, %s135
      %p142 = scmp.eq.s32.totalorder %s17, 7
      %p143 = por %p141, %p142
      %p144 = scmp.ne.s32.totalorder %s135, %s136
      %p145 = scmp.eq.s32.totalorder %s17, 0
      %p146 = por %p144, %p145
      %p147 = scmp.ne.s32.totalorder %s135, %s136
      %p148 = scmp.eq.s32.totalorder %s18, 7
      %p149 = por %p147, %p148
      %p151 = scmp.ne.s32.totalorder %s136, %s150
      %p152 = scmp.eq.s32.totalorder %s18, 0
      %p153 = por %p151, %p152
      %s154 = ssub.s32 %s19, %s31
      %s155 = ssub.s32 %s20, %s27
      %s156 = sor.u32 %s154, %s155
      %p157 = scmp.eq.s32.totalorder %s156, 0
      %s159 = sadd.s32 %s158, 1
      %s160 = scalar_select %p157, %s158, %s159
      %p163 = pneg %p157
      %p164 = scmp.eq.s32.totalorder %s12, 7
      %p165 = por %p163, %p164
      %p166 = scmp.ne.s32.totalorder %s158, %s161
      %p167 = scmp.eq.s32.totalorder %s12, 0
      %p168 = por %p166, %p167
      %p169 = scmp.ne.s32.totalorder %s158, %s161
      %p170 = scmp.eq.s32.totalorder %s17, 7
      %p171 = por %p169, %p170
      %p172 = scmp.ne.s32.totalorder %s161, %s162
      %p173 = scmp.eq.s32.totalorder %s17, 0
      %p174 = por %p172, %p173
      %p175 = scmp.ne.s32.totalorder %s161, %s162
      %p176 = scmp.eq.s32.totalorder %s18, 7
      %p177 = por %p175, %p176
      %p179 = scmp.ne.s32.totalorder %s162, %s178
      %p180 = scmp.eq.s32.totalorder %s18, 0
      %p181 = por %p179, %p180
      %p182 = scmp.le.s32.totalorder 1, %s12
      %p183 = scmp.lt.s32.totalorder %s12, 9
      %p184 = pnand %p182, %p183
      %p185 = pneg %p184
      // Predicated region
      $region9: #{temporal_conv_layer_nchw.9} parent=5 // pred_check
        _
      $region10: #{temporal_conv_layer_nchw.9} parent=5 // pred_check_branch
        %187 = sbr.rel (%p184) target = $region12
      $region11: #{temporal_conv_layer_nchw.9} parent=5 // pred_region
        %s188 = ssub.s32 %s12, 1
        // Predicated region
        $region13: #{temporal_conv_layer_nchw.9} parent=11 // pred_check
          %p189 = pneg %p125
        $region14: #{temporal_conv_layer_nchw.9} parent=11 // pred_check_branch
          %191 = sbr.rel (%p189) target = $region16
        $region15: #{temporal_conv_layer_nchw.9} parent=11 // pred_region
          %193 = vsyncadd [#allocation5], 0
          %s194 = sshll.u32 %s3, 4
          %s195 = int_to_ptr.hbm [resolvable:$true] %s194
          %s196 = sshll.u32 [#allocation4], 4
          %s197 = int_to_ptr.vmem [resolvable:$true] %s196
          %202 = dma.hbm_to_vmem [thread:$0]  %s195, 3072, %s197, [#allocation5], 64, 64, 4
        $region16: #{temporal_conv_layer_nchw.9} parent=11 // pred_fallthru
          _
        // Predicated region
        $region17: #{temporal_conv_layer_nchw.9} parent=11 // pred_check
          %p203 = pneg %p146
        $region18: #{temporal_conv_layer_nchw.9} parent=11 // pred_check_branch
          %205 = sbr.rel (%p203) target = $region20
        $region19: #{temporal_conv_layer_nchw.9} parent=11 // pred_region
          _
        $region20: #{temporal_conv_layer_nchw.9} parent=11 // pred_fallthru
          _
      $region12: #{temporal_conv_layer_nchw.9} parent=5 // pred_fallthru
        _
      %p206 = scmp.lt.s32.totalorder %s12, 8
      // Predicated region
      $region21: #{temporal_conv_layer_nchw.9} parent=5 // pred_check
        %p207 = pneg %p206
      $region22: #{temporal_conv_layer_nchw.9} parent=5 // pred_check_branch
        %209 = sbr.rel (%p207) target = $region24
      $region23: #{temporal_conv_layer_nchw.9} parent=5 // pred_region
        // Predicated region
        $region25: #{temporal_conv_layer_nchw.9} parent=23 // pred_check
          %p210 = pneg %p46
        $region26: #{temporal_conv_layer_nchw.9} parent=23 // pred_check_branch
          %212 = sbr.rel (%p210) target = $region28
        $region27: #{temporal_conv_layer_nchw.9} parent=23 // pred_region
          %s213 = sand.u32 %s36, 1
          %s214 = sand.u32 %s36, 1
          %s215 = smul.addr %s214, 64
          %s216 = scalar_lea.vmem [#allocation3], %s215
          %s217 = smul.u32 2, %s20
          %s218 = smul.addr %s19, 32
          %s219 = sadd.s32 %s217, %s218
          %s220 = smul.addr %s219, 8
          %s221 = scalar_lea.vmem %s0, %s220
          // Predicated region
          $region29: #{temporal_conv_layer_nchw.9} parent=27 // pred_check
            _
          $region30: #{temporal_conv_layer_nchw.9} parent=27 // pred_check_branch
            %223 = sbr.rel (0) target = $region32
          $region31: #{temporal_conv_layer_nchw.9} parent=27 // pred_region
            // Predicated region
            $region33: #{temporal_conv_layer_nchw.9} parent=31 // pred_check
              _
            $region34: #{temporal_conv_layer_nchw.9} parent=31 // pred_check_branch
              %225 = sbr.rel (0) target = $region36
            $region35: #{temporal_conv_layer_nchw.9} parent=31 // pred_region
              // Predicated region
              $region48: #{temporal_conv_layer_nchw.9} parent=35 // pred_check
                _
              $region49: #{temporal_conv_layer_nchw.9} parent=35 // pred_check_branch
                %255 = sbr.rel (0) target = $region51
              $region50: #{temporal_conv_layer_nchw.9} parent=35 // pred_region
                loop: start=0, step=1, limit=1
                $region52: #{temporal_conv_layer_nchw.9} parent=50 // loop_pre_header
                  _
                $region53: #{temporal_conv_layer_nchw.9} parent=50 // loop_header
                  %s257 = sphi 0, %s261
                  %p258 = scmp.ge.s32.totalorder %s257, 1
                  %s262 = sphi %s221, %s221
                  %s263 = sphi %s216, %s216
                $region54: #{temporal_conv_layer_nchw.9} parent=50 // loop_header_branch
                  %260 = sbr.rel (%p258) target = $region58
                $region55: #{temporal_conv_layer_nchw.9} parent=50 // loop_body
                  %v264 = vld [vmem:[%s262] sm:$0xff]
                  %265 = vst [vmem:[%s263] sm:$0xff] %v264
                  %v266 = vld [vmem:[%s262 + $0x8] sm:$0xff]
                  %267 = vst [vmem:[%s263 + $0x8] sm:$0xff] %v266
                  %v268 = vld [vmem:[%s262 + $0x40] sm:$0xff]
                  %269 = vst [vmem:[%s263 + $0x10] sm:$0xff] %v268
                  %v270 = vld [vmem:[%s262 + $0x48] sm:$0xff]
                  %271 = vst [vmem:[%s263 + $0x18] sm:$0xff] %v270
                  %v272 = vld [vmem:[%s262 + $0x80] sm:$0xff]
                  %273 = vst [vmem:[%s263 + $0x20] sm:$0xff] %v272
                  %v274 = vld [vmem:[%s262 + $0x88] sm:$0xff]
                  %275 = vst [vmem:[%s263 + $0x28] sm:$0xff] %v274
                  %v276 = vld [vmem:[%s262 + $0xc0] sm:$0xff]
                  %277 = vst [vmem:[%s263 + $0x30] sm:$0xff] %v276
                  %v278 = vld [vmem:[%s262 + $0xc8] sm:$0xff]
                  %279 = vst [vmem:[%s263 + $0x38] sm:$0xff] %v278
                $region56: #{temporal_conv_layer_nchw.9} parent=50 // loop_footer
                  %s261 = sadd.s32 1, %s257
                $region57: #{temporal_conv_layer_nchw.9} parent=50 // loop_footer_branch
                  %256 = sbr.rel target = $region53
                $region58: #{temporal_conv_layer_nchw.9} parent=50 // loop_exit
                  _
              $region51: #{temporal_conv_layer_nchw.9} parent=35 // pred_fallthru
                _
              // Predicated region
              $region59: #{temporal_conv_layer_nchw.9} parent=35 // pred_check
                _
              $region60: #{temporal_conv_layer_nchw.9} parent=35 // pred_check_branch
                %281 = sbr.rel target = $region62
              $region61: #{temporal_conv_layer_nchw.9} parent=35 // pred_region
                _
              $region62: #{temporal_conv_layer_nchw.9} parent=35 // pred_fallthru
                _
            $region36: #{temporal_conv_layer_nchw.9} parent=31 // pred_fallthru
              _
            // Predicated region
            $region37: #{temporal_conv_layer_nchw.9} parent=31 // pred_check
              _
            $region38: #{temporal_conv_layer_nchw.9} parent=31 // pred_check_branch
              %227 = sbr.rel target = $region40
            $region39: #{temporal_conv_layer_nchw.9} parent=31 // pred_region
              %s229 = ssub.s32 256, 1
              loop: start=0, step=1, limit=1
              $region41: #{temporal_conv_layer_nchw.9} parent=39 // loop_pre_header
                _
              $region42: #{temporal_conv_layer_nchw.9} parent=39 // loop_header
                %s231 = sphi 0, %s235
                %p232 = scmp.ge.s32.totalorder %s231, 1
                %s236 = sphi %s221, %s221
                %s237 = sphi %s216, %s216
              $region43: #{temporal_conv_layer_nchw.9} parent=39 // loop_header_branch
                %234 = sbr.rel (%p232) target = $region47
              $region44: #{temporal_conv_layer_nchw.9} parent=39 // loop_body
                %v238 = vld [vmem:[%s236] sm:%s229]
                %239 = vst [vmem:[%s237] sm:%s229] %v238
                %v240 = vld [vmem:[%s236 + $0x8] sm:%s229]
                %241 = vst [vmem:[%s237 + $0x8] sm:%s229] %v240
                %v242 = vld [vmem:[%s236 + $0x40] sm:%s229]
                %243 = vst [vmem:[%s237 + $0x10] sm:%s229] %v242
                %v244 = vld [vmem:[%s236 + $0x48] sm:%s229]
                %245 = vst [vmem:[%s237 + $0x18] sm:%s229] %v244
                %v246 = vld [vmem:[%s236 + $0x80] sm:%s229]
                %247 = vst [vmem:[%s237 + $0x20] sm:%s229] %v246
                %v248 = vld [vmem:[%s236 + $0x88] sm:%s229]
                %249 = vst [vmem:[%s237 + $0x28] sm:%s229] %v248
                %v250 = vld [vmem:[%s236 + $0xc0] sm:%s229]
                %251 = vst [vmem:[%s237 + $0x30] sm:%s229] %v250
                %v252 = vld [vmem:[%s236 + $0xc8] sm:%s229]
                %253 = vst [vmem:[%s237 + $0x38] sm:%s229] %v252
              $region45: #{temporal_conv_layer_nchw.9} parent=39 // loop_footer
                %s235 = sadd.s32 1, %s231
              $region46: #{temporal_conv_layer_nchw.9} parent=39 // loop_footer_branch
                %230 = sbr.rel target = $region42
              $region47: #{temporal_conv_layer_nchw.9} parent=39 // loop_exit
                _
            $region40: #{temporal_conv_layer_nchw.9} parent=31 // pred_fallthru
              _
          $region32: #{temporal_conv_layer_nchw.9} parent=27 // pred_fallthru
            _
          %282 = vnop
        $region28: #{temporal_conv_layer_nchw.9} parent=23 // pred_fallthru
          _
        // Predicated region
        $region63: #{temporal_conv_layer_nchw.9} parent=23 // pred_check
          %p283 = pneg %p72
        $region64: #{temporal_conv_layer_nchw.9} parent=23 // pred_check_branch
          %285 = sbr.rel (%p283) target = $region66
        $region65: #{temporal_conv_layer_nchw.9} parent=23 // pred_region
          %p286 = scmp.lt.s32.totalorder %s19, 1
          %s287 = scalar_select %p286, %s19, 1
          %s288 = scalar_lea.vmem %s1, %s287
        $region66: #{temporal_conv_layer_nchw.9} parent=23 // pred_fallthru
          _
        // Predicated region
        $region67: #{temporal_conv_layer_nchw.9} parent=23 // pred_check
          %p289 = pneg %p98
        $region68: #{temporal_conv_layer_nchw.9} parent=23 // pred_check_branch
          %291 = sbr.rel (%p289) target = $region70
        $region69: #{temporal_conv_layer_nchw.9} parent=23 // pred_region
          %p292 = scmp.lt.s32.totalorder %s19, 1
          %s293 = scalar_select %p292, %s19, 1
          %s294 = scalar_lea.vmem %s2, %s293
        $region70: #{temporal_conv_layer_nchw.9} parent=23 // pred_fallthru
          _
      $region24: #{temporal_conv_layer_nchw.9} parent=5 // pred_fallthru
        _
      %p295 = scmp.le.s32.totalorder 1, %s12
      %p296 = scmp.lt.s32.totalorder %s12, 9
      %p297 = pnand %p295, %p296
      %p298 = pneg %p297
      // Predicated region
      $region71: #{temporal_conv_layer_nchw.9} parent=5 // pred_check
        _
      $region72: #{temporal_conv_layer_nchw.9} parent=5 // pred_check_branch
        %300 = sbr.rel (%p297) target = $region74
      $region73: #{temporal_conv_layer_nchw.9} parent=5 // pred_region
        %s301 = ssub.s32 %s12, 1
        %s302 = sand.u32 %s39, 1
        %s303 = sand.u32 %s39, 1
        %s304 = smul.addr %s303, 64
        %s305 = scalar_lea.vmem [#allocation3], %s304
        // Predicated region
        $region75: #{temporal_conv_layer_nchw.9} parent=73 // pred_check
          %p306 = pneg %p52
        $region76: #{temporal_conv_layer_nchw.9} parent=73 // pred_check_branch
          %308 = sbr.rel (%p306) target = $region78
        $region77: #{temporal_conv_layer_nchw.9} parent=73 // pred_region
          _
        $region78: #{temporal_conv_layer_nchw.9} parent=73 // pred_fallthru
          _
        // Predicated region
        $region79: #{temporal_conv_layer_nchw.9} parent=73 // pred_check
          %p309 = pneg %p125
        $region80: #{temporal_conv_layer_nchw.9} parent=73 // pred_check_branch
          %311 = sbr.rel (%p309) target = $region82
        $region81: #{temporal_conv_layer_nchw.9} parent=73 // pred_region
          %313 = dma.done [#allocation5], 3072
        $region82: #{temporal_conv_layer_nchw.9} parent=73 // pred_fallthru
          _
        %s314 = sand.u32 %s39, 1
        %s315 = sand.u32 %s39, 1
        %s316 = smul.addr %s315, 64
        %s317 = scalar_lea.vmem [#allocation3], %s316
        %p318 = pneg %p52
        %p319 = pneg %p49
        %p320 = scmp.lt.s32.totalorder %s21, 1
        %s321 = scalar_select %p320, %s21, 1
        %s322 = scalar_lea.vmem %s1, %s321
        %p323 = pneg %p78
        %p324 = pneg %p75
        %p325 = scmp.lt.s32.totalorder %s21, 1
        %s326 = scalar_select %p325, %s21, 1
        %s327 = scalar_lea.vmem %s2, %s326
        %p328 = pneg %p104
        %p329 = pneg %p101
        %p330 = pneg %p125
        %p331 = pneg %p122
        %p332 = pneg %p146
        %p333 = pneg %p143
        %p334 = pneg %p174
        %p335 = pneg %p171
        %s336 = sand.u32 %s161, 1
        %s337 = sand.u32 %s161, 1
        %s338 = smul.addr %s337, 32
        %s339 = scalar_lea.vmem [#allocation6], %s338
        %s340 = smul.u32 2, %s22
        %p341 = scmp.lt.s32.totalorder %s21, 1
        %s342 = scalar_select %p341, %s21, 1
        %s343 = scalar_lea.vmem %s1, %s342
        %p344 = scmp.lt.s32.totalorder %s21, 1
        %s345 = scalar_select %p344, %s21, 1
        %s346 = scalar_lea.vmem %s2, %s345
        %s347 = smul.u32 2, %s22
        %v350 = vld [vmem:[%s305] sm:$0xff]
        %v351 = vld [vmem:[%s305 + $0x8] sm:$0xff]
        %v352 = vld [vmem:[%s305 + $0x10] sm:$0xff]
        %v353 = vld [vmem:[%s305 + $0x18] sm:$0xff]
        %v354 = vld [vmem:[%s305 + $0x20] sm:$0xff]
        %v355 = vld [vmem:[%s305 + $0x28] sm:$0xff]
        %v356 = vld [vmem:[%s305 + $0x30] sm:$0xff]
        %v357 = vld [vmem:[%s305 + $0x38] sm:$0xff]
        %v358 = vld [vmem:[%s343] sm:$0x1]
        %v360 = vperm.slane %v358, 0
        %v362 = vmul.f32 %v350, %v360
        %v363 = vmul.f32 %v351, %v360
        %v364 = vmul.f32 %v352, %v360
        %v365 = vmul.f32 %v353, %v360
        %v366 = vmul.f32 %v354, %v360
        %v367 = vmul.f32 %v355, %v360
        %v368 = vmul.f32 %v356, %v360
        %v369 = vmul.f32 %v357, %v360
        %v370 = vld [vmem:[%s346] sm:$0x1]
        %v372 = vperm.slane %v370, 0
        %v374 = vadd.f32 %v362, %v372
        %v375 = vadd.f32 %v363, %v372
        %v376 = vadd.f32 %v364, %v372
        %v377 = vadd.f32 %v365, %v372
        %v378 = vadd.f32 %v366, %v372
        %v379 = vadd.f32 %v367, %v372
        %v380 = vadd.f32 %v368, %v372
        %v381 = vadd.f32 %v369, %v372
        %v382 = vpack.c.bf16 %v374, %v374
        %v383 = vpack.c.bf16 %v375, %v375
        %v384 = vpack.c.bf16 %v376, %v376
        %v385 = vpack.c.bf16 %v377, %v377
        %v386 = vpack.c.bf16 %v378, %v378
        %v387 = vpack.c.bf16 %v379, %v379
        %v388 = vpack.c.bf16 %v380, %v380
        %v389 = vpack.c.bf16 %v381, %v381
        %v390 = vxor.u32 %v382, 2147516416
        %v391 = vxor.u32 %v383, 2147516416
        %v392 = vxor.u32 %v384, 2147516416
        %v393 = vxor.u32 %v385, 2147516416
        %v394 = vxor.u32 %v386, 2147516416
        %v395 = vxor.u32 %v387, 2147516416
        %v396 = vxor.u32 %v388, 2147516416
        %v397 = vxor.u32 %v389, 2147516416
        %v398 = vunpack.c.l.bf16 %v390
        %v399 = vunpack.c.l.bf16 %v391
        %v400 = vunpack.c.l.bf16 %v392
        %v401 = vunpack.c.l.bf16 %v393
        %v402 = vunpack.c.l.bf16 %v394
        %v403 = vunpack.c.l.bf16 %v395
        %v404 = vunpack.c.l.bf16 %v396
        %v405 = vunpack.c.l.bf16 %v397
        %v406 = vmul.f32 %v398, 1.442695
        %v407 = vpow.pop %v406
        %v408 = vmul.f32 %v399, 1.442695
        %v409 = vpow.pop %v408
        %v410 = vmul.f32 %v400, 1.442695
        %v411 = vpow.pop %v410
        %v412 = vmul.f32 %v401, 1.442695
        %v413 = vpow.pop %v412
        %v414 = vmul.f32 %v402, 1.442695
        %v415 = vpow.pop %v414
        %v416 = vmul.f32 %v403, 1.442695
        %v417 = vpow.pop %v416
        %v418 = vmul.f32 %v404, 1.442695
        %v419 = vpow.pop %v418
        %v420 = vmul.f32 %v405, 1.442695
        %v421 = vpow.pop %v420
        %v422 = vpack.c.bf16 %v407, %v407
        %v423 = vpack.c.bf16 %v409, %v409
        %v424 = vpack.c.bf16 %v411, %v411
        %v425 = vpack.c.bf16 %v413, %v413
        %v426 = vpack.c.bf16 %v415, %v415
        %v427 = vpack.c.bf16 %v417, %v417
        %v428 = vpack.c.bf16 %v419, %v419
        %v429 = vpack.c.bf16 %v421, %v421
        %v430 = vunpack.c.l.bf16 %v422
        %v431 = vunpack.c.l.bf16 %v423
        %v432 = vunpack.c.l.bf16 %v424
        %v433 = vunpack.c.l.bf16 %v425
        %v434 = vunpack.c.l.bf16 %v426
        %v435 = vunpack.c.l.bf16 %v427
        %v436 = vunpack.c.l.bf16 %v428
        %v437 = vunpack.c.l.bf16 %v429
        %v438 = vadd.f32 %v430, 1.0
        %v439 = vadd.f32 %v431, 1.0
        %v440 = vadd.f32 %v432, 1.0
        %v441 = vadd.f32 %v433, 1.0
        %v442 = vadd.f32 %v434, 1.0
        %v443 = vadd.f32 %v435, 1.0
        %v444 = vadd.f32 %v436, 1.0
        %v445 = vadd.f32 %v437, 1.0
        %v446 = vpack.c.bf16 %v438, %v438
        %v447 = vpack.c.bf16 %v439, %v439
        %v448 = vpack.c.bf16 %v440, %v440
        %v449 = vpack.c.bf16 %v441, %v441
        %v450 = vpack.c.bf16 %v442, %v442
        %v451 = vpack.c.bf16 %v443, %v443
        %v452 = vpack.c.bf16 %v444, %v444
        %v453 = vpack.c.bf16 %v445, %v445
        %v454 = vunpack.c.h.bf16 1065369472
        %v455 = vunpack.c.l.bf16 1065369472
        %v456 = vunpack.c.h.bf16 %v446
        %v457 = vunpack.c.l.bf16 %v446
        %v458 = vrcp.pop %v456
        %v459 = vmul.f32 %v454, %v458
        %v460 = vrcp.pop %v457
        %v461 = vmul.f32 %v455, %v460
        %v462 = vpack.c.bf16 %v459, %v461
        %v463 = vunpack.c.h.bf16 %v447
        %v464 = vunpack.c.l.bf16 %v447
        %v465 = vrcp.pop %v463
        %v466 = vmul.f32 %v454, %v465
        %v467 = vrcp.pop %v464
        %v468 = vmul.f32 %v455, %v467
        %v469 = vpack.c.bf16 %v466, %v468
        %v470 = vunpack.c.h.bf16 %v448
        %v471 = vunpack.c.l.bf16 %v448
        %v472 = vrcp.pop %v470
        %v473 = vmul.f32 %v454, %v472
        %v474 = vrcp.pop %v471
        %v475 = vmul.f32 %v455, %v474
        %v476 = vpack.c.bf16 %v473, %v475
        %v477 = vunpack.c.h.bf16 %v449
        %v478 = vunpack.c.l.bf16 %v449
        %v479 = vrcp.pop %v477
        %v480 = vmul.f32 %v454, %v479
        %v481 = vrcp.pop %v478
        %v482 = vmul.f32 %v455, %v481
        %v483 = vpack.c.bf16 %v480, %v482
        %v484 = vunpack.c.h.bf16 %v450
        %v485 = vunpack.c.l.bf16 %v450
        %v486 = vrcp.pop %v484
        %v487 = vmul.f32 %v454, %v486
        %v488 = vrcp.pop %v485
        %v489 = vmul.f32 %v455, %v488
        %v490 = vpack.c.bf16 %v487, %v489
        %v491 = vunpack.c.h.bf16 %v451
        %v492 = vunpack.c.l.bf16 %v451
        %v493 = vrcp.pop %v491
        %v494 = vmul.f32 %v454, %v493
        %v495 = vrcp.pop %v492
        %v496 = vmul.f32 %v455, %v495
        %v497 = vpack.c.bf16 %v494, %v496
        %v498 = vunpack.c.h.bf16 %v452
        %v499 = vunpack.c.l.bf16 %v452
        %v500 = vrcp.pop %v498
        %v501 = vmul.f32 %v454, %v500
        %v502 = vrcp.pop %v499
        %v503 = vmul.f32 %v455, %v502
        %v504 = vpack.c.bf16 %v501, %v503
        %v505 = vunpack.c.h.bf16 %v453
        %v506 = vunpack.c.l.bf16 %v453
        %v507 = vrcp.pop %v505
        %v508 = vmul.f32 %v454, %v507
        %v509 = vrcp.pop %v506
        %v510 = vmul.f32 %v455, %v509
        %v511 = vpack.c.bf16 %v508, %v510
        %v512 = vunpack.c.l.bf16 %v382
        %v513 = vunpack.c.l.bf16 %v383
        %v514 = vunpack.c.l.bf16 %v384
        %v515 = vunpack.c.l.bf16 %v385
        %v516 = vunpack.c.l.bf16 %v386
        %v517 = vunpack.c.l.bf16 %v387
        %v518 = vunpack.c.l.bf16 %v388
        %v519 = vunpack.c.l.bf16 %v389
        %v520 = vunpack.c.l.bf16 %v462
        %v521 = vunpack.c.l.bf16 %v469
        %v522 = vunpack.c.l.bf16 %v476
        %v523 = vunpack.c.l.bf16 %v483
        %v524 = vunpack.c.l.bf16 %v490
        %v525 = vunpack.c.l.bf16 %v497
        %v526 = vunpack.c.l.bf16 %v504
        %v527 = vunpack.c.l.bf16 %v511
        %v528 = vmul.f32 %v512, %v520
        %v529 = vmul.f32 %v513, %v521
        %v530 = vmul.f32 %v514, %v522
        %v531 = vmul.f32 %v515, %v523
        %v532 = vmul.f32 %v516, %v524
        %v533 = vmul.f32 %v517, %v525
        %v534 = vmul.f32 %v518, %v526
        %v535 = vmul.f32 %v519, %v527
        %v536 = vpack.c.bf16 %v528, %v528
        %v537 = vpack.c.bf16 %v529, %v529
        %v538 = vpack.c.bf16 %v530, %v530
        %v539 = vpack.c.bf16 %v531, %v531
        %v540 = vpack.c.bf16 %v532, %v532
        %v541 = vpack.c.bf16 %v533, %v533
        %v542 = vpack.c.bf16 %v534, %v534
        %v543 = vpack.c.bf16 %v535, %v535
        %544 = vst [vmem:[#allocation2] sm:$0xf] 0
        %545 = vst [vmem:[#allocation2 + $0xc] sm:$0xf] 0
        %546 = vst [vmem:[#allocation2 + $0x50] sm:$0xf] 0
        %547 = vst [vmem:[#allocation2 + $0x5c] sm:$0xf] 0
        %548 = vst [vmem:[#allocation2 + $0x18] sm:$0xf] %v536
        %549 = vst [vmem:[#allocation2 + $0x24] sm:$0xf] %v537
        %550 = vst [vmem:[#allocation2 + $0x30] sm:$0xf] %v538
        %551 = vst [vmem:[#allocation2 + $0x3c] sm:$0xf] %v539
        %552 = vst [vmem:[#allocation2 + $0x48] sm:$0xf] %v540
        %553 = vst [vmem:[#allocation2 + $0x54] sm:$0xf] %v541
        %554 = vst [vmem:[#allocation2 + $0x8] sm:$0xf] %v538
        %555 = vst [vmem:[#allocation2 + $0x14] sm:$0xf] %v539
        %556 = vst [vmem:[#allocation2 + $0x20] sm:$0xf] %v540
        %557 = vst [vmem:[#allocation2 + $0x2c] sm:$0xf] %v541
        %558 = vst [vmem:[#allocation2 + $0x38] sm:$0xf] %v542
        %559 = vst [vmem:[#allocation2 + $0x44] sm:$0xf] %v543
        %560 = vst [vmem:[#allocation2 + $0x4] sm:$0xf] %v536
        %561 = vst [vmem:[#allocation2 + $0x10] sm:$0xf] %v537
        %562 = vst [vmem:[#allocation2 + $0x1c] sm:$0xf] %v538
        %563 = vst [vmem:[#allocation2 + $0x28] sm:$0xf] %v539
        %564 = vst [vmem:[#allocation2 + $0x34] sm:$0xf] %v540
        %565 = vst [vmem:[#allocation2 + $0x40] sm:$0xf] %v541
        %566 = vst [vmem:[#allocation2 + $0x4c] sm:$0xf] %v542
        %567 = vst [vmem:[#allocation2 + $0x58] sm:$0xf] %v543
        %v568 = vld [vmem:[#allocation2] sm:$0xff]
        %v569 = vld [vmem:[#allocation2 + $0x8] sm:$0xf]
        %v570 = vld [vmem:[#allocation2 + $0xc] sm:$0xff]
        %v571 = vld [vmem:[#allocation2 + $0x14] sm:$0xf]
        %v572 = vld [vmem:[#allocation2 + $0x18] sm:$0xff]
        %v573 = vld [vmem:[#allocation2 + $0x20] sm:$0xf]
        %v574 = vld [vmem:[#allocation2 + $0x24] sm:$0xff]
        %v575 = vld [vmem:[#allocation2 + $0x2c] sm:$0xf]
        %v576 = vld [vmem:[#allocation2 + $0x30] sm:$0xff]
        %v577 = vld [vmem:[#allocation2 + $0x38] sm:$0xf]
        %v578 = vld [vmem:[#allocation2 + $0x3c] sm:$0xff]
        %v579 = vld [vmem:[#allocation2 + $0x44] sm:$0xf]
        %v580 = vld [vmem:[#allocation2 + $0x48] sm:$0xff]
        %v581 = vld [vmem:[#allocation2 + $0x50] sm:$0xf]
        %v582 = vld [vmem:[#allocation2 + $0x54] sm:$0xff]
        %v583 = vld [vmem:[#allocation2 + $0x5c] sm:$0xf]
        %v584 = vld [vmem:[#allocation4] sm:$0xf]
        %v585 = vld [vmem:[#allocation4 + $0x4] sm:$0xf]
        %v586 = vld [vmem:[#allocation4 + $0x8] sm:$0xf]
        %v587 = vld [vmem:[#allocation4 + $0xc] sm:$0xf]
        %v588 = vld [vmem:[#allocation4 + $0x10] sm:$0xf]
        %v589 = vld [vmem:[#allocation4 + $0x14] sm:$0xf]
        %v590 = vld [vmem:[#allocation4 + $0x18] sm:$0xf]
        %v591 = vld [vmem:[#allocation4 + $0x1c] sm:$0xf]
        %v592 = vld [vmem:[#allocation4 + $0x20] sm:$0xf]
        %v593 = vld [vmem:[#allocation4 + $0x24] sm:$0xf]
        %v594 = vld [vmem:[#allocation4 + $0x28] sm:$0xf]
        %v595 = vld [vmem:[#allocation4 + $0x2c] sm:$0xf]
        %v596 = vld [vmem:[#allocation4 + $0x30] sm:$0xf]
        %v597 = vld [vmem:[#allocation4 + $0x34] sm:$0xf]
        %v598 = vld [vmem:[#allocation4 + $0x38] sm:$0xf]
        %v599 = vld [vmem:[#allocation4 + $0x3c] sm:$0xf]
        %v600 = vld [vmem:[#allocation4 + $0x40] sm:$0xf]
        %v601 = vld [vmem:[#allocation4 + $0x44] sm:$0xf]
        %v602 = vld [vmem:[#allocation4 + $0x48] sm:$0xf]
        %v603 = vld [vmem:[#allocation4 + $0x4c] sm:$0xf]
        %v604 = vld [vmem:[#allocation4 + $0x50] sm:$0xf]
        %v605 = vld [vmem:[#allocation4 + $0x54] sm:$0xf]
        %v606 = vld [vmem:[#allocation4 + $0x58] sm:$0xf]
        %v607 = vld [vmem:[#allocation4 + $0x5c] sm:$0xf]
        %v608 = vld [vmem:[#allocation4 + $0x60] sm:$0xf]
        %v609 = vld [vmem:[#allocation4 + $0x64] sm:$0xf]
        %v610 = vld [vmem:[#allocation4 + $0x68] sm:$0xf]
        %v611 = vld [vmem:[#allocation4 + $0x6c] sm:$0xf]
        %v612 = vld [vmem:[#allocation4 + $0x70] sm:$0xf]
        %v613 = vld [vmem:[#allocation4 + $0x74] sm:$0xf]
        %v614 = vld [vmem:[#allocation4 + $0x78] sm:$0xf]
        %v615 = vld [vmem:[#allocation4 + $0x7c] sm:$0xf]
        %v616 = vld [vmem:[#allocation4 + $0x80] sm:$0xf]
        %v617 = vld [vmem:[#allocation4 + $0x84] sm:$0xf]
        %v618 = vld [vmem:[#allocation4 + $0x88] sm:$0xf]
        %v619 = vld [vmem:[#allocation4 + $0x8c] sm:$0xf]
        %v620 = vld [vmem:[#allocation4 + $0x90] sm:$0xf]
        %v621 = vld [vmem:[#allocation4 + $0x94] sm:$0xf]
        %v622 = vld [vmem:[#allocation4 + $0x98] sm:$0xf]
        %v623 = vld [vmem:[#allocation4 + $0x9c] sm:$0xf]
        %v624 = vld [vmem:[#allocation4 + $0xa0] sm:$0xf]
        %v625 = vld [vmem:[#allocation4 + $0xa4] sm:$0xf]
        %v626 = vld [vmem:[#allocation4 + $0xa8] sm:$0xf]
        %v627 = vld [vmem:[#allocation4 + $0xac] sm:$0xf]
        %v628 = vld [vmem:[#allocation4 + $0xb0] sm:$0xf]
        %v629 = vld [vmem:[#allocation4 + $0xb4] sm:$0xf]
        %v630 = vld [vmem:[#allocation4 + $0xb8] sm:$0xf]
        %v631 = vld [vmem:[#allocation4 + $0xbc] sm:$0xf]
        %v632 = vld [vmem:[%s4] sm:$0x1]
        %v634 = vperm.slane %v632, 0
        %v652 = vunpack.c.l.b16 %v568
        %v653 = vunpack.c.h.b16 %v568
        %v654 = vunpack.c.l.b16 %v569
        %v655 = vunpack.c.l.b16 %v570
        %v656 = vunpack.c.h.b16 %v570
        %v657 = vunpack.c.l.b16 %v571
        %v658 = vunpack.c.l.b16 %v572
        %v659 = vunpack.c.h.b16 %v572
        %v660 = vunpack.c.l.b16 %v573
        %v661 = vunpack.c.l.b16 %v574
        %v662 = vunpack.c.h.b16 %v574
        %v663 = vunpack.c.l.b16 %v575
        %v664 = vunpack.c.l.b16 %v576
        %v665 = vunpack.c.h.b16 %v576
        %v666 = vunpack.c.l.b16 %v577
        %v667 = vunpack.c.l.b16 %v578
        %v668 = vunpack.c.h.b16 %v578
        %v669 = vunpack.c.l.b16 %v579
        %v670 = vunpack.c.l.b16 %v580
        %v671 = vunpack.c.h.b16 %v580
        %v672 = vunpack.c.l.b16 %v581
        %v673 = vunpack.c.l.b16 %v582
        %v674 = vunpack.c.h.b16 %v582
        %v675 = vunpack.c.l.b16 %v583
        %v676 = vpack.c.b16 %v655, %v652
        %v677 = vpack.c.b16 %v656, %v653
        %v678 = vpack.c.b16 %v657, %v654
        %v679 = vpack.c.b16 %v661, %v658
        %v680 = vpack.c.b16 %v662, %v659
        %v681 = vpack.c.b16 %v663, %v660
        %v682 = vpack.c.b16 %v667, %v664
        %v683 = vpack.c.b16 %v668, %v665
        %v684 = vpack.c.b16 %v669, %v666
        %v685 = vpack.c.b16 %v673, %v670
        %v686 = vpack.c.b16 %v674, %v671
        %v687 = vpack.c.b16 %v675, %v672
        %v748 = vunpack.c.l.b16 %v584
        %v749 = vunpack.c.l.b16 %v585
        %v750 = vunpack.c.l.b16 %v586
        %v751 = vunpack.c.l.b16 %v587
        %v752 = vunpack.c.l.b16 %v588
        %v753 = vunpack.c.l.b16 %v589
        %v754 = vunpack.c.l.b16 %v590
        %v755 = vunpack.c.l.b16 %v591
        %v756 = vunpack.c.l.b16 %v592
        %v757 = vunpack.c.l.b16 %v593
        %v758 = vunpack.c.l.b16 %v594
        %v759 = vunpack.c.l.b16 %v595
        %v760 = vunpack.c.l.b16 %v596
        %v761 = vunpack.c.l.b16 %v597
        %v762 = vunpack.c.l.b16 %v598
        %v763 = vunpack.c.l.b16 %v599
        %v764 = vunpack.c.l.b16 %v600
        %v765 = vunpack.c.l.b16 %v601
        %v766 = vunpack.c.l.b16 %v602
        %v767 = vunpack.c.l.b16 %v603
        %v768 = vunpack.c.l.b16 %v604
        %v769 = vunpack.c.l.b16 %v605
        %v770 = vunpack.c.l.b16 %v606
        %v771 = vunpack.c.l.b16 %v607
        %v772 = vunpack.c.l.b16 %v608
        %v773 = vunpack.c.l.b16 %v609
        %v774 = vunpack.c.l.b16 %v610
        %v775 = vunpack.c.l.b16 %v611
        %v776 = vunpack.c.l.b16 %v612
        %v777 = vunpack.c.l.b16 %v613
        %v778 = vunpack.c.l.b16 %v614
        %v779 = vunpack.c.l.b16 %v615
        %v780 = vunpack.c.l.b16 %v616
        %v781 = vunpack.c.l.b16 %v617
        %v782 = vunpack.c.l.b16 %v618
        %v783 = vunpack.c.l.b16 %v619
        %v784 = vunpack.c.l.b16 %v620
        %v785 = vunpack.c.l.b16 %v621
        %v786 = vunpack.c.l.b16 %v622
        %v787 = vunpack.c.l.b16 %v623
        %v788 = vunpack.c.l.b16 %v624
        %v789 = vunpack.c.l.b16 %v625
        %v790 = vunpack.c.l.b16 %v626
        %v791 = vunpack.c.l.b16 %v627
        %v792 = vunpack.c.l.b16 %v628
        %v793 = vunpack.c.l.b16 %v629
        %v794 = vunpack.c.l.b16 %v630
        %v795 = vunpack.c.l.b16 %v631
        %v796 = vpack.c.b16 %v749, %v748
        %v797 = vpack.c.b16 %v751, %v750
        %v798 = vpack.c.b16 %v753, %v752
        %v799 = vpack.c.b16 %v755, %v754
        %v800 = vpack.c.b16 %v757, %v756
        %v801 = vpack.c.b16 %v759, %v758
        %v802 = vpack.c.b16 %v761, %v760
        %v803 = vpack.c.b16 %v763, %v762
        %v804 = vpack.c.b16 %v765, %v764
        %v805 = vpack.c.b16 %v767, %v766
        %v806 = vpack.c.b16 %v769, %v768
        %v807 = vpack.c.b16 %v771, %v770
        %v808 = vpack.c.b16 %v773, %v772
        %v809 = vpack.c.b16 %v775, %v774
        %v810 = vpack.c.b16 %v777, %v776
        %v811 = vpack.c.b16 %v779, %v778
        %v812 = vpack.c.b16 %v781, %v780
        %v813 = vpack.c.b16 %v783, %v782
        %v814 = vpack.c.b16 %v785, %v784
        %v815 = vpack.c.b16 %v787, %v786
        %v816 = vpack.c.b16 %v789, %v788
        %v817 = vpack.c.b16 %v791, %v790
        %v818 = vpack.c.b16 %v793, %v792
        %v819 = vpack.c.b16 %v795, %v794
        %844 = vmatpush.bf16.msra.mxu0 %v803
        %845 = vmatpush.bf16.msra.mxu0 %v802
        %846 = vmatpush.bf16.msra.mxu0 %v801
        %847 = vmatpush.bf16.msra.mxu0 %v800
        %848 = vmatpush.bf16.msra.mxu0 %v799
        %849 = vmatpush.bf16.msra.mxu0 %v798
        %850 = vmatpush.bf16.msra.mxu0 %v797
        %851 = vmatpush.bf16.msra.mxu0 %v796
        %852 = vmatmul.bf16.gmra.mxu0 %v676
        %v853 = vpop.f32.mrf.mxu0
        %v854 = vadd.f32 %v634, %v853
        %v855 = vpop.f32.mrf.mxu0
        %v856 = vadd.f32 %v634, %v855
        %857 = vmatmul.bf16.gmra.mxu0 %v679
        %v858 = vpop.f32.mrf.mxu0
        %v859 = vadd.f32 %v634, %v858
        %v860 = vpop.f32.mrf.mxu0
        %v861 = vadd.f32 %v634, %v860
        %862 = vmatmul.bf16.gmra.mxu0 %v682
        %v863 = vpop.f32.mrf.mxu0
        %v864 = vadd.f32 %v634, %v863
        %v865 = vpop.f32.mrf.mxu0
        %v866 = vadd.f32 %v634, %v865
        %867 = vmatmul.bf16.gmra.mxu0 %v685
        %v868 = vpop.f32.mrf.mxu0
        %v869 = vadd.f32 %v634, %v868
        %v870 = vpop.f32.mrf.mxu0
        %v871 = vadd.f32 %v634, %v870
        %872 = vdwg.mxu0
        %873 = vmatpush.bf16.msra.mxu0 %v811
        %874 = vmatpush.bf16.msra.mxu0 %v810
        %875 = vmatpush.bf16.msra.mxu0 %v809
        %876 = vmatpush.bf16.msra.mxu0 %v808
        %877 = vmatpush.bf16.msra.mxu0 %v807
        %878 = vmatpush.bf16.msra.mxu0 %v806
        %879 = vmatpush.bf16.msra.mxu0 %v805
        %880 = vmatpush.bf16.msra.mxu0 %v804
        %881 = vmatmul.bf16.gmra.mxu0 %v677
        %v882 = vpop.f32.mrf.mxu0
        %v883 = vadd.f32 %v854, %v882
        %v884 = vpop.f32.mrf.mxu0
        %v885 = vadd.f32 %v856, %v884
        %886 = vmatmul.bf16.gmra.mxu0 %v680
        %v887 = vpop.f32.mrf.mxu0
        %v888 = vadd.f32 %v859, %v887
        %v889 = vpop.f32.mrf.mxu0
        %v890 = vadd.f32 %v861, %v889
        %891 = vmatmul.bf16.gmra.mxu0 %v683
        %v892 = vpop.f32.mrf.mxu0
        %v893 = vadd.f32 %v864, %v892
        %v894 = vpop.f32.mrf.mxu0
        %v895 = vadd.f32 %v866, %v894
        %896 = vmatmul.bf16.gmra.mxu0 %v686
        %v897 = vpop.f32.mrf.mxu0
        %v898 = vadd.f32 %v869, %v897
        %v899 = vpop.f32.mrf.mxu0
        %v900 = vadd.f32 %v871, %v899
        %901 = vdwg.mxu0
        %902 = vmatpush.bf16.msra.mxu0 %v819
        %903 = vmatpush.bf16.msra.mxu0 %v818
        %904 = vmatpush.bf16.msra.mxu0 %v817
        %905 = vmatpush.bf16.msra.mxu0 %v816
        %906 = vmatpush.bf16.msra.mxu0 %v815
        %907 = vmatpush.bf16.msra.mxu0 %v814
        %908 = vmatpush.bf16.msra.mxu0 %v813
        %909 = vmatpush.bf16.msra.mxu0 %v812
        %910 = vmatmul.bf16.gmra.mxu0 %v678
        %v911 = vpop.f32.mrf.mxu0
        %v912 = vadd.f32 %v883, %v911
        %v913 = vpop.f32.mrf.mxu0
        %v914 = vadd.f32 %v885, %v913
        %915 = vmatmul.bf16.gmra.mxu0 %v681
        %v916 = vpop.f32.mrf.mxu0
        %v917 = vadd.f32 %v888, %v916
        %v918 = vpop.f32.mrf.mxu0
        %v919 = vadd.f32 %v890, %v918
        %920 = vmatmul.bf16.gmra.mxu0 %v684
        %v921 = vpop.f32.mrf.mxu0
        %v922 = vadd.f32 %v893, %v921
        %v923 = vpop.f32.mrf.mxu0
        %v924 = vadd.f32 %v895, %v923
        %925 = vmatmul.bf16.gmra.mxu0 %v687
        %v926 = vpop.f32.mrf.mxu0
        %v927 = vadd.f32 %v898, %v926
        %v928 = vpop.f32.mrf.mxu0
        %v929 = vadd.f32 %v900, %v928
        %930 = vdwg.mxu0
        %v931 = vpack.c.bf16 %v912, %v912
        %v932 = vpack.c.bf16 %v914, %v914
        %v933 = vpack.c.bf16 %v917, %v917
        %v934 = vpack.c.bf16 %v919, %v919
        %v935 = vpack.c.bf16 %v922, %v922
        %v936 = vpack.c.bf16 %v924, %v924
        %v937 = vpack.c.bf16 %v927, %v927
        %v938 = vpack.c.bf16 %v929, %v929
        %939 = vst [vmem:[%s339] sm:$0xf] %v931
        %940 = vst [vmem:[%s339 + $0x4] sm:$0xf] %v932
        %941 = vst [vmem:[%s339 + $0x8] sm:$0xf] %v933
        %942 = vst [vmem:[%s339 + $0xc] sm:$0xf] %v934
        %943 = vst [vmem:[%s339 + $0x10] sm:$0xf] %v935
        %944 = vst [vmem:[%s339 + $0x14] sm:$0xf] %v936
        %945 = vst [vmem:[%s339 + $0x18] sm:$0xf] %v937
        %946 = vst [vmem:[%s339 + $0x1c] sm:$0xf] %v938
        %s947 = sand.u32 %s161, 1
        %s948 = sand.u32 %s161, 1
        %s949 = smul.addr %s948, 32
        %s950 = scalar_lea.vmem [#allocation6], %s949
        // Predicated region
        $region83: #{temporal_conv_layer_nchw.9} parent=73 // pred_check
          %p951 = pneg %p171
        $region84: #{temporal_conv_layer_nchw.9} parent=73 // pred_check_branch
          %953 = sbr.rel (%p951) target = $region86
        $region85: #{temporal_conv_layer_nchw.9} parent=73 // pred_region
          %s954 = smul.u32 2, %s22
          %s955 = smul.addr %s21, 32
          %s956 = sadd.s32 %s954, %s955
          %s957 = smul.addr %s956, 4
          %s958 = scalar_lea.vmem %s5, %s957
          // Predicated region
          $region87: #{temporal_conv_layer_nchw.9} parent=85 // pred_check
            _
          $region88: #{temporal_conv_layer_nchw.9} parent=85 // pred_check_branch
            %960 = sbr.rel (0) target = $region90
          $region89: #{temporal_conv_layer_nchw.9} parent=85 // pred_region
            // Predicated region
            $region91: #{temporal_conv_layer_nchw.9} parent=89 // pred_check
              _
            $region92: #{temporal_conv_layer_nchw.9} parent=89 // pred_check_branch
              %962 = sbr.rel target = $region94
            $region93: #{temporal_conv_layer_nchw.9} parent=89 // pred_region
              // Predicated region
              $region106: #{temporal_conv_layer_nchw.9} parent=93 // pred_check
                _
              $region107: #{temporal_conv_layer_nchw.9} parent=93 // pred_check_branch
                %992 = sbr.rel (0) target = $region109
              $region108: #{temporal_conv_layer_nchw.9} parent=93 // pred_region
                loop: start=0, step=1, limit=1
                $region110: #{temporal_conv_layer_nchw.9} parent=108 // loop_pre_header
                  _
                $region111: #{temporal_conv_layer_nchw.9} parent=108 // loop_header
                  %s994 = sphi 0, %s998
                  %p995 = scmp.ge.s32.totalorder %s994, 1
                  %s999 = sphi %s950, %s950
                  %s1000 = sphi %s958, %s958
                $region112: #{temporal_conv_layer_nchw.9} parent=108 // loop_header_branch
                  %997 = sbr.rel (%p995) target = $region116
                $region113: #{temporal_conv_layer_nchw.9} parent=108 // loop_body
                  _
                $region114: #{temporal_conv_layer_nchw.9} parent=108 // loop_footer
                  %s998 = sadd.s32 1, %s994
                $region115: #{temporal_conv_layer_nchw.9} parent=108 // loop_footer_branch
                  %993 = sbr.rel target = $region111
                $region116: #{temporal_conv_layer_nchw.9} parent=108 // loop_exit
                  _
                %s1002 = ssub.s32 16, 1
                loop: start=0, step=1, limit=1
                $region117: #{temporal_conv_layer_nchw.9} parent=108 // loop_pre_header
                  _
                $region118: #{temporal_conv_layer_nchw.9} parent=108 // loop_header
                  %s1004 = sphi 0, %s1008
                  %p1005 = scmp.ge.s32.totalorder %s1004, 1
                  %s1009 = sphi %s950, %s950
                  %s1010 = sphi %s958, %s958
                $region119: #{temporal_conv_layer_nchw.9} parent=108 // loop_header_branch
                  %1007 = sbr.rel (%p1005) target = $region123
                $region120: #{temporal_conv_layer_nchw.9} parent=108 // loop_body
                  %v1011 = vld [vmem:[%s1009] sm:%s1002]
                  %1012 = vst [vmem:[%s1010] sm:%s1002] %v1011
                  %v1013 = vld [vmem:[%s1009 + $0x4] sm:%s1002]
                  %1014 = vst [vmem:[%s1010 + $0x4] sm:%s1002] %v1013
                  %v1015 = vld [vmem:[%s1009 + $0x8] sm:%s1002]
                  %1016 = vst [vmem:[%s1010 + $0x20] sm:%s1002] %v1015
                  %v1017 = vld [vmem:[%s1009 + $0xc] sm:%s1002]
                  %1018 = vst [vmem:[%s1010 + $0x24] sm:%s1002] %v1017
                  %v1019 = vld [vmem:[%s1009 + $0x10] sm:%s1002]
                  %1020 = vst [vmem:[%s1010 + $0x40] sm:%s1002] %v1019
                  %v1021 = vld [vmem:[%s1009 + $0x14] sm:%s1002]
                  %1022 = vst [vmem:[%s1010 + $0x44] sm:%s1002] %v1021
                  %v1023 = vld [vmem:[%s1009 + $0x18] sm:%s1002]
                  %1024 = vst [vmem:[%s1010 + $0x60] sm:%s1002] %v1023
                  %v1025 = vld [vmem:[%s1009 + $0x1c] sm:%s1002]
                  %1026 = vst [vmem:[%s1010 + $0x64] sm:%s1002] %v1025
                $region121: #{temporal_conv_layer_nchw.9} parent=108 // loop_footer
                  %s1008 = sadd.s32 1, %s1004
                $region122: #{temporal_conv_layer_nchw.9} parent=108 // loop_footer_branch
                  %1003 = sbr.rel target = $region118
                $region123: #{temporal_conv_layer_nchw.9} parent=108 // loop_exit
                  _
              $region109: #{temporal_conv_layer_nchw.9} parent=93 // pred_fallthru
                _
            $region94: #{temporal_conv_layer_nchw.9} parent=89 // pred_fallthru
              _
            // Predicated region
            $region95: #{temporal_conv_layer_nchw.9} parent=89 // pred_check
              _
            $region96: #{temporal_conv_layer_nchw.9} parent=89 // pred_check_branch
              %964 = sbr.rel (0) target = $region98
            $region97: #{temporal_conv_layer_nchw.9} parent=89 // pred_region
              %s966 = ssub.s32 16, 1
              loop: start=0, step=1, limit=1
              $region99: #{temporal_conv_layer_nchw.9} parent=97 // loop_pre_header
                _
              $region100: #{temporal_conv_layer_nchw.9} parent=97 // loop_header
                %s968 = sphi 0, %s972
                %p969 = scmp.ge.s32.totalorder %s968, 1
                %s973 = sphi %s950, %s950
                %s974 = sphi %s958, %s958
              $region101: #{temporal_conv_layer_nchw.9} parent=97 // loop_header_branch
                %971 = sbr.rel (%p969) target = $region105
              $region102: #{temporal_conv_layer_nchw.9} parent=97 // loop_body
                %v975 = vld [vmem:[%s973] sm:%s966]
                %976 = vst [vmem:[%s974] sm:%s966] %v975
                %v977 = vld [vmem:[%s973 + $0x4] sm:%s966]
                %978 = vst [vmem:[%s974 + $0x4] sm:%s966] %v977
                %v979 = vld [vmem:[%s973 + $0x8] sm:%s966]
                %980 = vst [vmem:[%s974 + $0x20] sm:%s966] %v979
                %v981 = vld [vmem:[%s973 + $0xc] sm:%s966]
                %982 = vst [vmem:[%s974 + $0x24] sm:%s966] %v981
                %v983 = vld [vmem:[%s973 + $0x10] sm:%s966]
                %984 = vst [vmem:[%s974 + $0x40] sm:%s966] %v983
                %v985 = vld [vmem:[%s973 + $0x14] sm:%s966]
                %986 = vst [vmem:[%s974 + $0x44] sm:%s966] %v985
                %v987 = vld [vmem:[%s973 + $0x18] sm:%s966]
                %988 = vst [vmem:[%s974 + $0x60] sm:%s966] %v987
                %v989 = vld [vmem:[%s973 + $0x1c] sm:%s966]
                %990 = vst [vmem:[%s974 + $0x64] sm:%s966] %v989
              $region103: #{temporal_conv_layer_nchw.9} parent=97 // loop_footer
                %s972 = sadd.s32 1, %s968
              $region104: #{temporal_conv_layer_nchw.9} parent=97 // loop_footer_branch
                %967 = sbr.rel target = $region100
              $region105: #{temporal_conv_layer_nchw.9} parent=97 // loop_exit
                _
            $region98: #{temporal_conv_layer_nchw.9} parent=89 // pred_fallthru
              _
          $region90: #{temporal_conv_layer_nchw.9} parent=85 // pred_fallthru
            _
          %1027 = vnop
        $region86: #{temporal_conv_layer_nchw.9} parent=73 // pred_fallthru
          _
      $region74: #{temporal_conv_layer_nchw.9} parent=5 // pred_fallthru
        _
      %p1028 = scmp.le.s32.totalorder 2, %s12
      // Predicated region
      $region124: #{temporal_conv_layer_nchw.9} parent=5 // pred_check
        %p1029 = pneg %p1028
      $region125: #{temporal_conv_layer_nchw.9} parent=5 // pred_check_branch
        %1031 = sbr.rel (%p1029) target = $region127
      $region126: #{temporal_conv_layer_nchw.9} parent=5 // pred_region
        %s1032 = ssub.s32 %s12, 2
        // Predicated region
        $region128: #{temporal_conv_layer_nchw.9} parent=126 // pred_check
          %p1033 = pneg %p177
        $region129: #{temporal_conv_layer_nchw.9} parent=126 // pred_check_branch
          %1035 = sbr.rel (%p1033) target = $region131
        $region130: #{temporal_conv_layer_nchw.9} parent=126 // pred_region
          %s1036 = sand.u32 %s162, 1
          %s1037 = sand.u32 %s162, 1
          %s1038 = smul.addr %s1037, 32
          %s1039 = scalar_lea.vmem [#allocation6], %s1038
        $region131: #{temporal_conv_layer_nchw.9} parent=126 // pred_fallthru
          _
      $region127: #{temporal_conv_layer_nchw.9} parent=5 // pred_fallthru
        _
    $region6: #{temporal_conv_layer_nchw.9} parent=1 // loop_footer
      %s16 = sadd.s32 1, %s12
    $region7: #{temporal_conv_layer_nchw.9} parent=1 // loop_footer_branch
      %11 = sbr.rel target = $region3
    $region8: #{temporal_conv_layer_nchw.9} parent=1 // loop_exit
      _
    %1040 = vsyncpa [#allocation5], 1
    %s1041 = scalar_lea.sflag [#allocation5], 1
    %1042 = vsyncpa %s1041, 1

// kernel: temporal_conv_layer_nchw.15
$region0: #{temporal_conv_layer_nchw.15}
  #allocation0 [shape = 'u32[]', space=smem, size = 0x4, offset = 0x4, fixed_abs, tag = 'smem constant byte address 0x4 - core index']
  #allocation1 [shape = 'u32[72,128]{1,0:T(1,128)}', space=vmem, size = 0x9000, scoped, tag = 'internal scratch']
  #allocation2 [shape = 'bf16[64,384]{1,0:T(8,128)(2,1)}', space=vmem, size = 0xc000, scoped, tag = 'scratch operand']
  #allocation7 [shape = 's32[]', space=sflag, size = 0x4, offset = 0, fixed_abs, tag = 'sflag constant byte address 0x0 - dummy sync flag']
  %s0 = inlined_call_operand.vmem [shape: bf16[2,4,64,128], index: 0, kind: input, shape index: {}]
  %s1 = inlined_call_operand.vmem [shape: f32[2,1,128], index: 1, kind: input, shape index: {}]
  %s2 = inlined_call_operand.vmem [shape: f32[2,1,128], index: 2, kind: input, shape index: {}]
  %s3 = inlined_call_operand.vmem [shape: bf16[384,128], index: 3, kind: input, shape index: {}]
  %s4 = inlined_call_operand.vmem [shape: f32[1,128], index: 4, kind: input, shape index: {}]
  %s5 = inlined_call_operand.vmem [shape: f32[2,4,64,128], index: 5, kind: input, shape index: {}]
  %s6 = inlined_call_operand.hbm [shape: f32[2,4,64,128], index: 6, kind: output, shape index: {}]
  %s7 = sld [smem:[#allocation0]]
  $region136: #{temporal_conv_layer_nchw.15} parent=0
    _
  %s9 = ssub.s32 1, %s7
  %s10 = scalar_select 0, %s9, %s7
  $region1: #{temporal_conv_layer_nchw.15} parent=0
    #allocation3 [shape = 'u8[32768]{0}', space=vmem, size = 0x8000, scoped, tag = 'input window, operand 0']
    #allocation4 [shape = 'u8[65536]{0}', space=vmem, size = 0x10000, scoped, tag = 'input window, operand 5']
    #allocation5 [shape = 'u8[65536]{0}', space=vmem, size = 0x10000, scoped, tag = 'output window, operand 0']
    #allocation6 [shape = 's32[2]{0}', space=sflag, size = 0x8, scoped, tag = 'scoped memory for temporal_conv_layer_nchw.15']
    %11 = vsyncpa [#allocation6], 0
    %s12 = scalar_lea.sflag [#allocation6], 1
    %13 = vsyncpa %s12, 0
    loop: start=0, step=1, limit=10
    $region2: #{temporal_conv_layer_nchw.15} parent=1 // loop_pre_header
      _
    $region3: #{temporal_conv_layer_nchw.15} parent=1 // loop_header
      %s15 = sphi 0, %s19
      %p16 = scmp.ge.s32.totalorder %s15, 10
      %s22 = sphi 0, %s34
      %s23 = sphi 0, %s30
      %s24 = sphi 0, %s22
      %s25 = sphi 0, %s23
      %s26 = sphi 0, %s24
      %s27 = sphi 0, %s25
      %s39 = sphi 0, %s41
      %s42 = sphi 0, %s39
      %s43 = sphi 0, %s42
      %s59 = sphi 0, %s43
      %s65 = sphi 0, %s67
      %s68 = sphi 0, %s65
      %s69 = sphi 0, %s68
      %s85 = sphi 0, %s69
      %s91 = sphi 0, %s93
      %s94 = sphi 0, %s91
      %s95 = sphi 0, %s94
      %s111 = sphi 0, %s95
      %s115 = sphi 0, %s115
      %s117 = sphi 0, %s115
      %s118 = sphi 0, %s117
      %s132 = sphi 0, %s118
      %s136 = sphi 0, %s136
      %s138 = sphi 0, %s136
      %s139 = sphi 0, %s138
      %s153 = sphi 0, %s139
      %s161 = sphi 0, %s163
      %s164 = sphi 0, %s161
      %s165 = sphi 0, %s164
      %s181 = sphi 0, %s165
      %s189 = sphi 0, %s191
      %s192 = sphi 0, %s189
      %s193 = sphi 0, %s192
      %s209 = sphi 0, %s193
    $region4: #{temporal_conv_layer_nchw.15} parent=1 // loop_header_branch
      %18 = sbr.rel (%p16) target = $region8
    $region5: #{temporal_conv_layer_nchw.15} parent=1 // loop_body
      %s20 = ssub.s32 %s15, 1
      %s21 = ssub.s32 %s15, 2
      %s28 = sadd.s32 1, %s23
      %p29 = scmp.ge.s32.totalorder %s28, 4
      %s30 = scalar_select %p29, 0, %s28
      %s31 = sadd.s32 1, %s22
      %s32 = scalar_select %p29, %s31, %s22
      %p33 = scmp.ge.s32.totalorder %s32, 2
      %s34 = scalar_select %p33, 0, %s32
      %s35 = ssub.s32 %s22, %s34
      %s36 = ssub.s32 %s23, %s30
      %s37 = sor.u32 %s35, %s36
      %p38 = scmp.eq.s32.totalorder %s37, 0
      %s40 = sadd.s32 %s39, 1
      %s41 = scalar_select %p38, %s39, %s40
      %p44 = pneg %p38
      %p45 = scmp.eq.s32.totalorder %s15, 7
      %p46 = por %p44, %p45
      %p47 = scmp.ne.s32.totalorder %s39, %s42
      %p48 = scmp.eq.s32.totalorder %s15, 0
      %p49 = por %p47, %p48
      %p50 = scmp.ne.s32.totalorder %s39, %s42
      %p51 = scmp.eq.s32.totalorder %s20, 7
      %p52 = por %p50, %p51
      %p53 = scmp.ne.s32.totalorder %s42, %s43
      %p54 = scmp.eq.s32.totalorder %s20, 0
      %p55 = por %p53, %p54
      %p56 = scmp.ne.s32.totalorder %s42, %s43
      %p57 = scmp.eq.s32.totalorder %s21, 7
      %p58 = por %p56, %p57
      %p60 = scmp.ne.s32.totalorder %s43, %s59
      %p61 = scmp.eq.s32.totalorder %s21, 0
      %p62 = por %p60, %p61
      %s63 = ssub.s32 %s22, %s34
      %p64 = scmp.eq.s32.totalorder %s63, 0
      %s66 = sadd.s32 %s65, 1
      %s67 = scalar_select %p64, %s65, %s66
      %p70 = pneg %p64
      %p71 = scmp.eq.s32.totalorder %s15, 7
      %p72 = por %p70, %p71
      %p73 = scmp.ne.s32.totalorder %s65, %s68
      %p74 = scmp.eq.s32.totalorder %s15, 0
      %p75 = por %p73, %p74
      %p76 = scmp.ne.s32.totalorder %s65, %s68
      %p77 = scmp.eq.s32.totalorder %s20, 7
      %p78 = por %p76, %p77
      %p79 = scmp.ne.s32.totalorder %s68, %s69
      %p80 = scmp.eq.s32.totalorder %s20, 0
      %p81 = por %p79, %p80
      %p82 = scmp.ne.s32.totalorder %s68, %s69
      %p83 = scmp.eq.s32.totalorder %s21, 7
      %p84 = por %p82, %p83
      %p86 = scmp.ne.s32.totalorder %s69, %s85
      %p87 = scmp.eq.s32.totalorder %s21, 0
      %p88 = por %p86, %p87
      %s89 = ssub.s32 %s22, %s34
      %p90 = scmp.eq.s32.totalorder %s89, 0
      %s92 = sadd.s32 %s91, 1
      %s93 = scalar_select %p90, %s91, %s92
      %p96 = pneg %p90
      %p97 = scmp.eq.s32.totalorder %s15, 7
      %p98 = por %p96, %p97
      %p99 = scmp.ne.s32.totalorder %s91, %s94
      %p100 = scmp.eq.s32.totalorder %s15, 0
      %p101 = por %p99, %p100
      %p102 = scmp.ne.s32.totalorder %s91, %s94
      %p103 = scmp.eq.s32.totalorder %s20, 7
      %p104 = por %p102, %p103
      %p105 = scmp.ne.s32.totalorder %s94, %s95
      %p106 = scmp.eq.s32.totalorder %s20, 0
      %p107 = por %p105, %p106
      %p108 = scmp.ne.s32.totalorder %s94, %s95
      %p109 = scmp.eq.s32.totalorder %s21, 7
      %p110 = por %p108, %p109
      %p112 = scmp.ne.s32.totalorder %s95, %s111
      %p113 = scmp.eq.s32.totalorder %s21, 0
      %p114 = por %p112, %p113
      %s116 = sadd.s32 %s115, 1
      %p119 = scmp.eq.s32.totalorder %s15, 7
      %p120 = scmp.ne.s32.totalorder %s115, %s117
      %p121 = scmp.eq.s32.totalorder %s15, 0
      %p122 = por %p120, %p121
      %p123 = scmp.ne.s32.totalorder %s115, %s117
      %p124 = scmp.eq.s32.totalorder %s20, 7
      %p125 = por %p123, %p124
      %p126 = scmp.ne.s32.totalorder %s117, %s118
      %p127 = scmp.eq.s32.totalorder %s20, 0
      %p128 = por %p126, %p127
      %p129 = scmp.ne.s32.totalorder %s117, %s118
      %p130 = scmp.eq.s32.totalorder %s21, 7
      %p131 = por %p129, %p130
      %p133 = scmp.ne.s32.totalorder %s118, %s132
      %p134 = scmp.eq.s32.totalorder %s21, 0
      %p135 = por %p133, %p134
      %s137 = sadd.s32 %s136, 1
      %p140 = scmp.eq.s32.totalorder %s15, 7
      %p141 = scmp.ne.s32.totalorder %s136, %s138
      %p142 = scmp.eq.s32.totalorder %s15, 0
      %p143 = por %p141, %p142
      %p144 = scmp.ne.s32.totalorder %s136, %s138
      %p145 = scmp.eq.s32.totalorder %s20, 7
      %p146 = por %p144, %p145
      %p147 = scmp.ne.s32.totalorder %s138, %s139
      %p148 = scmp.eq.s32.totalorder %s20, 0
      %p149 = por %p147, %p148
      %p150 = scmp.ne.s32.totalorder %s138, %s139
      %p151 = scmp.eq.s32.totalorder %s21, 7
      %p152 = por %p150, %p151
      %p154 = scmp.ne.s32.totalorder %s139, %s153
      %p155 = scmp.eq.s32.totalorder %s21, 0
      %p156 = por %p154, %p155
      %s157 = ssub.s32 %s22, %s34
      %s158 = ssub.s32 %s23, %s30
      %s159 = sor.u32 %s157, %s158
      %p160 = scmp.eq.s32.totalorder %s159, 0
      %s162 = sadd.s32 %s161, 1
      %s163 = scalar_select %p160, %s161, %s162
      %p166 = pneg %p160
      %p167 = scmp.eq.s32.totalorder %s15, 7
      %p168 = por %p166, %p167
      %p169 = scmp.ne.s32.totalorder %s161, %s164
      %p170 = scmp.eq.s32.totalorder %s15, 0
      %p171 = por %p169, %p170
      %p172 = scmp.ne.s32.totalorder %s161, %s164
      %p173 = scmp.eq.s32.totalorder %s20, 7
      %p174 = por %p172, %p173
      %p175 = scmp.ne.s32.totalorder %s164, %s165
      %p176 = scmp.eq.s32.totalorder %s20, 0
      %p177 = por %p175, %p176
      %p178 = scmp.ne.s32.totalorder %s164, %s165
      %p179 = scmp.eq.s32.totalorder %s21, 7
      %p180 = por %p178, %p179
      %p182 = scmp.ne.s32.totalorder %s165, %s181
      %p183 = scmp.eq.s32.totalorder %s21, 0
      %p184 = por %p182, %p183
      %s185 = ssub.s32 %s22, %s34
      %s186 = ssub.s32 %s23, %s30
      %s187 = sor.u32 %s185, %s186
      %p188 = scmp.eq.s32.totalorder %s187, 0
      %s190 = sadd.s32 %s189, 1
      %s191 = scalar_select %p188, %s189, %s190
      %p194 = pneg %p188
      %p195 = scmp.eq.s32.totalorder %s15, 7
      %p196 = por %p194, %p195
      %p197 = scmp.ne.s32.totalorder %s189, %s192
      %p198 = scmp.eq.s32.totalorder %s15, 0
      %p199 = por %p197, %p198
      %p200 = scmp.ne.s32.totalorder %s189, %s192
      %p201 = scmp.eq.s32.totalorder %s20, 7
      %p202 = por %p200, %p201
      %p203 = scmp.ne.s32.totalorder %s192, %s193
      %p204 = scmp.eq.s32.totalorder %s20, 0
      %p205 = por %p203, %p204
      %p206 = scmp.ne.s32.totalorder %s192, %s193
      %p207 = scmp.eq.s32.totalorder %s21, 7
      %p208 = por %p206, %p207
      %p210 = scmp.ne.s32.totalorder %s193, %s209
      %p211 = scmp.eq.s32.totalorder %s21, 0
      %p212 = por %p210, %p211
      %p213 = scmp.le.s32.totalorder 1, %s15
      %p214 = scmp.lt.s32.totalorder %s15, 9
      %p215 = pnand %p213, %p214
      %p216 = pneg %p215
      // Predicated region
      $region9: #{temporal_conv_layer_nchw.15} parent=5 // pred_check
        _
      $region10: #{temporal_conv_layer_nchw.15} parent=5 // pred_check_branch
        %218 = sbr.rel (%p215) target = $region12
      $region11: #{temporal_conv_layer_nchw.15} parent=5 // pred_region
        %s219 = ssub.s32 %s15, 1
        // Predicated region
        $region13: #{temporal_conv_layer_nchw.15} parent=11 // pred_check
          %p220 = pneg %p128
        $region14: #{temporal_conv_layer_nchw.15} parent=11 // pred_check_branch
          %222 = sbr.rel (%p220) target = $region16
        $region15: #{temporal_conv_layer_nchw.15} parent=11 // pred_region
          _
        $region16: #{temporal_conv_layer_nchw.15} parent=11 // pred_fallthru
          _
        // Predicated region
        $region17: #{temporal_conv_layer_nchw.15} parent=11 // pred_check
          %p223 = pneg %p149
        $region18: #{temporal_conv_layer_nchw.15} parent=11 // pred_check_branch
          %225 = sbr.rel (%p223) target = $region20
        $region19: #{temporal_conv_layer_nchw.15} parent=11 // pred_region
          _
        $region20: #{temporal_conv_layer_nchw.15} parent=11 // pred_fallthru
          _
      $region12: #{temporal_conv_layer_nchw.15} parent=5 // pred_fallthru
        _
      %p226 = scmp.lt.s32.totalorder %s15, 8
      // Predicated region
      $region21: #{temporal_conv_layer_nchw.15} parent=5 // pred_check
        %p227 = pneg %p226
      $region22: #{temporal_conv_layer_nchw.15} parent=5 // pred_check_branch
        %229 = sbr.rel (%p227) target = $region24
      $region23: #{temporal_conv_layer_nchw.15} parent=5 // pred_region
        // Predicated region
        $region25: #{temporal_conv_layer_nchw.15} parent=23 // pred_check
          %p230 = pneg %p49
        $region26: #{temporal_conv_layer_nchw.15} parent=23 // pred_check_branch
          %232 = sbr.rel (%p230) target = $region28
        $region27: #{temporal_conv_layer_nchw.15} parent=23 // pred_region
          %s233 = sand.u32 %s39, 1
          %s234 = sand.u32 %s39, 1
          %s235 = smul.addr %s234, 32
          %s236 = scalar_lea.vmem [#allocation3], %s235
          %s237 = smul.u32 2, %s23
          %s238 = smul.addr %s22, 32
          %s239 = sadd.s32 %s237, %s238
          %s240 = smul.addr %s239, 4
          %s241 = scalar_lea.vmem %s0, %s240
          // Predicated region
          $region29: #{temporal_conv_layer_nchw.15} parent=27 // pred_check
            _
          $region30: #{temporal_conv_layer_nchw.15} parent=27 // pred_check_branch
            %243 = sbr.rel (0) target = $region32
          $region31: #{temporal_conv_layer_nchw.15} parent=27 // pred_region
            // Predicated region
            $region33: #{temporal_conv_layer_nchw.15} parent=31 // pred_check
              _
            $region34: #{temporal_conv_layer_nchw.15} parent=31 // pred_check_branch
              %245 = sbr.rel target = $region36
            $region35: #{temporal_conv_layer_nchw.15} parent=31 // pred_region
              // Predicated region
              $region48: #{temporal_conv_layer_nchw.15} parent=35 // pred_check
                _
              $region49: #{temporal_conv_layer_nchw.15} parent=35 // pred_check_branch
                %275 = sbr.rel (0) target = $region51
              $region50: #{temporal_conv_layer_nchw.15} parent=35 // pred_region
                loop: start=0, step=1, limit=1
                $region52: #{temporal_conv_layer_nchw.15} parent=50 // loop_pre_header
                  _
                $region53: #{temporal_conv_layer_nchw.15} parent=50 // loop_header
                  %s277 = sphi 0, %s281
                  %p278 = scmp.ge.s32.totalorder %s277, 1
                  %s282 = sphi %s241, %s241
                  %s283 = sphi %s236, %s236
                $region54: #{temporal_conv_layer_nchw.15} parent=50 // loop_header_branch
                  %280 = sbr.rel (%p278) target = $region58
                $region55: #{temporal_conv_layer_nchw.15} parent=50 // loop_body
                  _
                $region56: #{temporal_conv_layer_nchw.15} parent=50 // loop_footer
                  %s281 = sadd.s32 1, %s277
                $region57: #{temporal_conv_layer_nchw.15} parent=50 // loop_footer_branch
                  %276 = sbr.rel target = $region53
                $region58: #{temporal_conv_layer_nchw.15} parent=50 // loop_exit
                  _
                %s285 = ssub.s32 16, 1
                loop: start=0, step=1, limit=1
                $region59: #{temporal_conv_layer_nchw.15} parent=50 // loop_pre_header
                  _
                $region60: #{temporal_conv_layer_nchw.15} parent=50 // loop_header
                  %s287 = sphi 0, %s291
                  %p288 = scmp.ge.s32.totalorder %s287, 1
                  %s292 = sphi %s241, %s241
                  %s293 = sphi %s236, %s236
                $region61: #{temporal_conv_layer_nchw.15} parent=50 // loop_header_branch
                  %290 = sbr.rel (%p288) target = $region65
                $region62: #{temporal_conv_layer_nchw.15} parent=50 // loop_body
                  %v294 = vld [vmem:[%s292] sm:%s285]
                  %295 = vst [vmem:[%s293] sm:%s285] %v294
                  %v296 = vld [vmem:[%s292 + $0x4] sm:%s285]
                  %297 = vst [vmem:[%s293 + $0x4] sm:%s285] %v296
                  %v298 = vld [vmem:[%s292 + $0x20] sm:%s285]
                  %299 = vst [vmem:[%s293 + $0x8] sm:%s285] %v298
                  %v300 = vld [vmem:[%s292 + $0x24] sm:%s285]
                  %301 = vst [vmem:[%s293 + $0xc] sm:%s285] %v300
                  %v302 = vld [vmem:[%s292 + $0x40] sm:%s285]
                  %303 = vst [vmem:[%s293 + $0x10] sm:%s285] %v302
                  %v304 = vld [vmem:[%s292 + $0x44] sm:%s285]
                  %305 = vst [vmem:[%s293 + $0x14] sm:%s285] %v304
                  %v306 = vld [vmem:[%s292 + $0x60] sm:%s285]
                  %307 = vst [vmem:[%s293 + $0x18] sm:%s285] %v306
                  %v308 = vld [vmem:[%s292 + $0x64] sm:%s285]
                  %309 = vst [vmem:[%s293 + $0x1c] sm:%s285] %v308
                $region63: #{temporal_conv_layer_nchw.15} parent=50 // loop_footer
                  %s291 = sadd.s32 1, %s287
                $region64: #{temporal_conv_layer_nchw.15} parent=50 // loop_footer_branch
                  %286 = sbr.rel target = $region60
                $region65: #{temporal_conv_layer_nchw.15} parent=50 // loop_exit
                  _
              $region51: #{temporal_conv_layer_nchw.15} parent=35 // pred_fallthru
                _
            $region36: #{temporal_conv_layer_nchw.15} parent=31 // pred_fallthru
              _
            // Predicated region
            $region37: #{temporal_conv_layer_nchw.15} parent=31 // pred_check
              _
            $region38: #{temporal_conv_layer_nchw.15} parent=31 // pred_check_branch
              %247 = sbr.rel (0) target = $region40
            $region39: #{temporal_conv_layer_nchw.15} parent=31 // pred_region
              %s249 = ssub.s32 16, 1
              loop: start=0, step=1, limit=1
              $region41: #{temporal_conv_layer_nchw.15} parent=39 // loop_pre_header
                _
              $region42: #{temporal_conv_layer_nchw.15} parent=39 // loop_header
                %s251 = sphi 0, %s255
                %p252 = scmp.ge.s32.totalorder %s251, 1
                %s256 = sphi %s241, %s241
                %s257 = sphi %s236, %s236
              $region43: #{temporal_conv_layer_nchw.15} parent=39 // loop_header_branch
                %254 = sbr.rel (%p252) target = $region47
              $region44: #{temporal_conv_layer_nchw.15} parent=39 // loop_body
                %v258 = vld [vmem:[%s256] sm:%s249]
                %259 = vst [vmem:[%s257] sm:%s249] %v258
                %v260 = vld [vmem:[%s256 + $0x4] sm:%s249]
                %261 = vst [vmem:[%s257 + $0x4] sm:%s249] %v260
                %v262 = vld [vmem:[%s256 + $0x20] sm:%s249]
                %263 = vst [vmem:[%s257 + $0x8] sm:%s249] %v262
                %v264 = vld [vmem:[%s256 + $0x24] sm:%s249]
                %265 = vst [vmem:[%s257 + $0xc] sm:%s249] %v264
                %v266 = vld [vmem:[%s256 + $0x40] sm:%s249]
                %267 = vst [vmem:[%s257 + $0x10] sm:%s249] %v266
                %v268 = vld [vmem:[%s256 + $0x44] sm:%s249]
                %269 = vst [vmem:[%s257 + $0x14] sm:%s249] %v268
                %v270 = vld [vmem:[%s256 + $0x60] sm:%s249]
                %271 = vst [vmem:[%s257 + $0x18] sm:%s249] %v270
                %v272 = vld [vmem:[%s256 + $0x64] sm:%s249]
                %273 = vst [vmem:[%s257 + $0x1c] sm:%s249] %v272
              $region45: #{temporal_conv_layer_nchw.15} parent=39 // loop_footer
                %s255 = sadd.s32 1, %s251
              $region46: #{temporal_conv_layer_nchw.15} parent=39 // loop_footer_branch
                %250 = sbr.rel target = $region42
              $region47: #{temporal_conv_layer_nchw.15} parent=39 // loop_exit
                _
            $region40: #{temporal_conv_layer_nchw.15} parent=31 // pred_fallthru
              _
          $region32: #{temporal_conv_layer_nchw.15} parent=27 // pred_fallthru
            _
          %310 = vnop
        $region28: #{temporal_conv_layer_nchw.15} parent=23 // pred_fallthru
          _
        // Predicated region
        $region66: #{temporal_conv_layer_nchw.15} parent=23 // pred_check
          %p311 = pneg %p75
        $region67: #{temporal_conv_layer_nchw.15} parent=23 // pred_check_branch
          %313 = sbr.rel (%p311) target = $region69
        $region68: #{temporal_conv_layer_nchw.15} parent=23 // pred_region
          %p314 = scmp.lt.s32.totalorder %s22, 1
          %s315 = scalar_select %p314, %s22, 1
          %s316 = scalar_lea.vmem %s1, %s315
        $region69: #{temporal_conv_layer_nchw.15} parent=23 // pred_fallthru
          _
        // Predicated region
        $region70: #{temporal_conv_layer_nchw.15} parent=23 // pred_check
          %p317 = pneg %p101
        $region71: #{temporal_conv_layer_nchw.15} parent=23 // pred_check_branch
          %319 = sbr.rel (%p317) target = $region73
        $region72: #{temporal_conv_layer_nchw.15} parent=23 // pred_region
          %p320 = scmp.lt.s32.totalorder %s22, 1
          %s321 = scalar_select %p320, %s22, 1
          %s322 = scalar_lea.vmem %s2, %s321
        $region73: #{temporal_conv_layer_nchw.15} parent=23 // pred_fallthru
          _
        // Predicated region
        $region74: #{temporal_conv_layer_nchw.15} parent=23 // pred_check
          %p323 = pneg %p171
        $region75: #{temporal_conv_layer_nchw.15} parent=23 // pred_check_branch
          %325 = sbr.rel (%p323) target = $region77
        $region76: #{temporal_conv_layer_nchw.15} parent=23 // pred_region
          %s326 = sand.u32 %s161, 1
          %s327 = sand.u32 %s161, 1
          %s328 = smul.addr %s327, 64
          %s329 = scalar_lea.vmem [#allocation4], %s328
          %s330 = smul.u32 2, %s23
          %s331 = smul.addr %s22, 32
          %s332 = sadd.s32 %s330, %s331
          %s333 = smul.addr %s332, 8
          %s334 = scalar_lea.vmem %s5, %s333
          // Predicated region
          $region78: #{temporal_conv_layer_nchw.15} parent=76 // pred_check
            _
          $region79: #{temporal_conv_layer_nchw.15} parent=76 // pred_check_branch
            %336 = sbr.rel (0) target = $region81
          $region80: #{temporal_conv_layer_nchw.15} parent=76 // pred_region
            // Predicated region
            $region82: #{temporal_conv_layer_nchw.15} parent=80 // pred_check
              _
            $region83: #{temporal_conv_layer_nchw.15} parent=80 // pred_check_branch
              %338 = sbr.rel (0) target = $region85
            $region84: #{temporal_conv_layer_nchw.15} parent=80 // pred_region
              // Predicated region
              $region97: #{temporal_conv_layer_nchw.15} parent=84 // pred_check
                _
              $region98: #{temporal_conv_layer_nchw.15} parent=84 // pred_check_branch
                %368 = sbr.rel (0) target = $region100
              $region99: #{temporal_conv_layer_nchw.15} parent=84 // pred_region
                loop: start=0, step=1, limit=1
                $region101: #{temporal_conv_layer_nchw.15} parent=99 // loop_pre_header
                  _
                $region102: #{temporal_conv_layer_nchw.15} parent=99 // loop_header
                  %s370 = sphi 0, %s374
                  %p371 = scmp.ge.s32.totalorder %s370, 1
                  %s375 = sphi %s334, %s334
                  %s376 = sphi %s329, %s329
                $region103: #{temporal_conv_layer_nchw.15} parent=99 // loop_header_branch
                  %373 = sbr.rel (%p371) target = $region107
                $region104: #{temporal_conv_layer_nchw.15} parent=99 // loop_body
                  %v377 = vld [vmem:[%s375] sm:$0xff]
                  %378 = vst [vmem:[%s376] sm:$0xff] %v377
                  %v379 = vld [vmem:[%s375 + $0x8] sm:$0xff]
                  %380 = vst [vmem:[%s376 + $0x8] sm:$0xff] %v379
                  %v381 = vld [vmem:[%s375 + $0x40] sm:$0xff]
                  %382 = vst [vmem:[%s376 + $0x10] sm:$0xff] %v381
                  %v383 = vld [vmem:[%s375 + $0x48] sm:$0xff]
                  %384 = vst [vmem:[%s376 + $0x18] sm:$0xff] %v383
                  %v385 = vld [vmem:[%s375 + $0x80] sm:$0xff]
                  %386 = vst [vmem:[%s376 + $0x20] sm:$0xff] %v385
                  %v387 = vld [vmem:[%s375 + $0x88] sm:$0xff]
                  %388 = vst [vmem:[%s376 + $0x28] sm:$0xff] %v387
                  %v389 = vld [vmem:[%s375 + $0xc0] sm:$0xff]
                  %390 = vst [vmem:[%s376 + $0x30] sm:$0xff] %v389
                  %v391 = vld [vmem:[%s375 + $0xc8] sm:$0xff]
                  %392 = vst [vmem:[%s376 + $0x38] sm:$0xff] %v391
                $region105: #{temporal_conv_layer_nchw.15} parent=99 // loop_footer
                  %s374 = sadd.s32 1, %s370
                $region106: #{temporal_conv_layer_nchw.15} parent=99 // loop_footer_branch
                  %369 = sbr.rel target = $region102
                $region107: #{temporal_conv_layer_nchw.15} parent=99 // loop_exit
                  _
              $region100: #{temporal_conv_layer_nchw.15} parent=84 // pred_fallthru
                _
              // Predicated region
              $region108: #{temporal_conv_layer_nchw.15} parent=84 // pred_check
                _
              $region109: #{temporal_conv_layer_nchw.15} parent=84 // pred_check_branch
                %394 = sbr.rel target = $region111
              $region110: #{temporal_conv_layer_nchw.15} parent=84 // pred_region
                _
              $region111: #{temporal_conv_layer_nchw.15} parent=84 // pred_fallthru
                _
            $region85: #{temporal_conv_layer_nchw.15} parent=80 // pred_fallthru
              _
            // Predicated region
            $region86: #{temporal_conv_layer_nchw.15} parent=80 // pred_check
              _
            $region87: #{temporal_conv_layer_nchw.15} parent=80 // pred_check_branch
              %340 = sbr.rel target = $region89
            $region88: #{temporal_conv_layer_nchw.15} parent=80 // pred_region
              %s342 = ssub.s32 256, 1
              loop: start=0, step=1, limit=1
              $region90: #{temporal_conv_layer_nchw.15} parent=88 // loop_pre_header
                _
              $region91: #{temporal_conv_layer_nchw.15} parent=88 // loop_header
                %s344 = sphi 0, %s348
                %p345 = scmp.ge.s32.totalorder %s344, 1
                %s349 = sphi %s334, %s334
                %s350 = sphi %s329, %s329
              $region92: #{temporal_conv_layer_nchw.15} parent=88 // loop_header_branch
                %347 = sbr.rel (%p345) target = $region96
              $region93: #{temporal_conv_layer_nchw.15} parent=88 // loop_body
                %v351 = vld [vmem:[%s349] sm:%s342]
                %352 = vst [vmem:[%s350] sm:%s342] %v351
                %v353 = vld [vmem:[%s349 + $0x8] sm:%s342]
                %354 = vst [vmem:[%s350 + $0x8] sm:%s342] %v353
                %v355 = vld [vmem:[%s349 + $0x40] sm:%s342]
                %356 = vst [vmem:[%s350 + $0x10] sm:%s342] %v355
                %v357 = vld [vmem:[%s349 + $0x48] sm:%s342]
                %358 = vst [vmem:[%s350 + $0x18] sm:%s342] %v357
                %v359 = vld [vmem:[%s349 + $0x80] sm:%s342]
                %360 = vst [vmem:[%s350 + $0x20] sm:%s342] %v359
                %v361 = vld [vmem:[%s349 + $0x88] sm:%s342]
                %362 = vst [vmem:[%s350 + $0x28] sm:%s342] %v361
                %v363 = vld [vmem:[%s349 + $0xc0] sm:%s342]
                %364 = vst [vmem:[%s350 + $0x30] sm:%s342] %v363
                %v365 = vld [vmem:[%s349 + $0xc8] sm:%s342]
                %366 = vst [vmem:[%s350 + $0x38] sm:%s342] %v365
              $region94: #{temporal_conv_layer_nchw.15} parent=88 // loop_footer
                %s348 = sadd.s32 1, %s344
              $region95: #{temporal_conv_layer_nchw.15} parent=88 // loop_footer_branch
                %343 = sbr.rel target = $region91
              $region96: #{temporal_conv_layer_nchw.15} parent=88 // loop_exit
                _
            $region89: #{temporal_conv_layer_nchw.15} parent=80 // pred_fallthru
              _
          $region81: #{temporal_conv_layer_nchw.15} parent=76 // pred_fallthru
            _
          %395 = vnop
        $region77: #{temporal_conv_layer_nchw.15} parent=23 // pred_fallthru
          _
      $region24: #{temporal_conv_layer_nchw.15} parent=5 // pred_fallthru
        _
      %p396 = scmp.le.s32.totalorder 1, %s15
      %p397 = scmp.lt.s32.totalorder %s15, 9
      %p398 = pnand %p396, %p397
      %p399 = pneg %p398
      // Predicated region
      $region112: #{temporal_conv_layer_nchw.15} parent=5 // pred_check
        _
      $region113: #{temporal_conv_layer_nchw.15} parent=5 // pred_check_branch
        %401 = sbr.rel (%p398) target = $region115
      $region114: #{temporal_conv_layer_nchw.15} parent=5 // pred_region
        %s402 = ssub.s32 %s15, 1
        %s403 = sand.u32 %s42, 1
        %s404 = sand.u32 %s42, 1
        %s405 = smul.addr %s404, 32
        %s406 = scalar_lea.vmem [#allocation3], %s405
        // Predicated region
        $region116: #{temporal_conv_layer_nchw.15} parent=114 // pred_check
          %p407 = pneg %p55
        $region117: #{temporal_conv_layer_nchw.15} parent=114 // pred_check_branch
          %409 = sbr.rel (%p407) target = $region119
        $region118: #{temporal_conv_layer_nchw.15} parent=114 // pred_region
          _
        $region119: #{temporal_conv_layer_nchw.15} parent=114 // pred_fallthru
          _
        %s410 = sand.u32 %s164, 1
        %s411 = sand.u32 %s164, 1
        %s412 = smul.addr %s411, 64
        %s413 = scalar_lea.vmem [#allocation4], %s412
        // Predicated region
        $region120: #{temporal_conv_layer_nchw.15} parent=114 // pred_check
          %p414 = pneg %p177
        $region121: #{temporal_conv_layer_nchw.15} parent=114 // pred_check_branch
          %416 = sbr.rel (%p414) target = $region123
        $region122: #{temporal_conv_layer_nchw.15} parent=114 // pred_region
          _
        $region123: #{temporal_conv_layer_nchw.15} parent=114 // pred_fallthru
          _
        %s417 = sand.u32 %s42, 1
        %s418 = sand.u32 %s42, 1
        %s419 = smul.addr %s418, 32
        %s420 = scalar_lea.vmem [#allocation3], %s419
        %p421 = pneg %p55
        %p422 = pneg %p52
        %p423 = scmp.lt.s32.totalorder %s24, 1
        %s424 = scalar_select %p423, %s24, 1
        %s425 = scalar_lea.vmem %s1, %s424
        %p426 = pneg %p81
        %p427 = pneg %p78
        %p428 = scmp.lt.s32.totalorder %s24, 1
        %s429 = scalar_select %p428, %s24, 1
        %s430 = scalar_lea.vmem %s2, %s429
        %p431 = pneg %p107
        %p432 = pneg %p104
        %p433 = pneg %p128
        %p434 = pneg %p125
        %p435 = pneg %p149
        %p436 = pneg %p146
        %s437 = sand.u32 %s164, 1
        %s438 = sand.u32 %s164, 1
        %s439 = smul.addr %s438, 64
        %s440 = scalar_lea.vmem [#allocation4], %s439
        %p441 = pneg %p177
        %p442 = pneg %p174
        %p443 = pneg %p205
        %p444 = pneg %p202
        %s445 = sand.u32 %s192, 1
        %s446 = scalar_lea.sflag [#allocation6], %s445
        %s447 = sand.u32 %s192, 1
        %s448 = smul.addr %s447, 64
        %s449 = scalar_lea.vmem [#allocation5], %s448
        %s450 = smul.u32 2, %s25
        %p451 = scmp.lt.s32.totalorder %s24, 1
        %s452 = scalar_select %p451, %s24, 1
        %s453 = scalar_lea.vmem %s1, %s452
        %p454 = scmp.lt.s32.totalorder %s24, 1
        %s455 = scalar_select %p454, %s24, 1
        %s456 = scalar_lea.vmem %s2, %s455
        %s457 = smul.u32 2, %s25
        %s458 = smul.u32 2, %s25
        %v461 = vld [vmem:[%s406] sm:$0xf]
        %v462 = vld [vmem:[%s406 + $0x4] sm:$0xf]
        %v463 = vld [vmem:[%s406 + $0x8] sm:$0xf]
        %v464 = vld [vmem:[%s406 + $0xc] sm:$0xf]
        %v465 = vld [vmem:[%s406 + $0x10] sm:$0xf]
        %v466 = vld [vmem:[%s406 + $0x14] sm:$0xf]
        %v467 = vld [vmem:[%s406 + $0x18] sm:$0xf]
        %v468 = vld [vmem:[%s406 + $0x1c] sm:$0xf]
        %v469 = vunpack.c.l.bf16 %v461
        %v470 = vunpack.c.l.bf16 %v462
        %v471 = vunpack.c.l.bf16 %v463
        %v472 = vunpack.c.l.bf16 %v464
        %v473 = vunpack.c.l.bf16 %v465
        %v474 = vunpack.c.l.bf16 %v466
        %v475 = vunpack.c.l.bf16 %v467
        %v476 = vunpack.c.l.bf16 %v468
        %v477 = vld [vmem:[%s453] sm:$0x1]
        %v479 = vperm.slane %v477, 0
        %v481 = vmul.f32 %v469, %v479
        %v482 = vmul.f32 %v470, %v479
        %v483 = vmul.f32 %v471, %v479
        %v484 = vmul.f32 %v472, %v479
        %v485 = vmul.f32 %v473, %v479
        %v486 = vmul.f32 %v474, %v479
        %v487 = vmul.f32 %v475, %v479
        %v488 = vmul.f32 %v476, %v479
        %v489 = vld [vmem:[%s456] sm:$0x1]
        %v491 = vperm.slane %v489, 0
        %v493 = vadd.f32 %v481, %v491
        %v494 = vadd.f32 %v482, %v491
        %v495 = vadd.f32 %v483, %v491
        %v496 = vadd.f32 %v484, %v491
        %v497 = vadd.f32 %v485, %v491
        %v498 = vadd.f32 %v486, %v491
        %v499 = vadd.f32 %v487, %v491
        %v500 = vadd.f32 %v488, %v491
        %v501 = vpack.c.bf16 %v493, %v493
        %v502 = vpack.c.bf16 %v494, %v494
        %v503 = vpack.c.bf16 %v495, %v495
        %v504 = vpack.c.bf16 %v496, %v496
        %v505 = vpack.c.bf16 %v497, %v497
        %v506 = vpack.c.bf16 %v498, %v498
        %v507 = vpack.c.bf16 %v499, %v499
        %v508 = vpack.c.bf16 %v500, %v500
        %v509 = vxor.u32 %v501, 2147516416
        %v510 = vxor.u32 %v502, 2147516416
        %v511 = vxor.u32 %v503, 2147516416
        %v512 = vxor.u32 %v504, 2147516416
        %v513 = vxor.u32 %v505, 2147516416
        %v514 = vxor.u32 %v506, 2147516416
        %v515 = vxor.u32 %v507, 2147516416
        %v516 = vxor.u32 %v508, 2147516416
        %v517 = vunpack.c.l.bf16 %v509
        %v518 = vunpack.c.l.bf16 %v510
        %v519 = vunpack.c.l.bf16 %v511
        %v520 = vunpack.c.l.bf16 %v512
        %v521 = vunpack.c.l.bf16 %v513
        %v522 = vunpack.c.l.bf16 %v514
        %v523 = vunpack.c.l.bf16 %v515
        %v524 = vunpack.c.l.bf16 %v516
        %v525 = vmul.f32 %v517, 1.442695
        %v526 = vpow.pop %v525
        %v527 = vmul.f32 %v518, 1.442695
        %v528 = vpow.pop %v527
        %v529 = vmul.f32 %v519, 1.442695
        %v530 = vpow.pop %v529
        %v531 = vmul.f32 %v520, 1.442695
        %v532 = vpow.pop %v531
        %v533 = vmul.f32 %v521, 1.442695
        %v534 = vpow.pop %v533
        %v535 = vmul.f32 %v522, 1.442695
        %v536 = vpow.pop %v535
        %v537 = vmul.f32 %v523, 1.442695
        %v538 = vpow.pop %v537
        %v539 = vmul.f32 %v524, 1.442695
        %v540 = vpow.pop %v539
        %v541 = vpack.c.bf16 %v526, %v526
        %v542 = vpack.c.bf16 %v528, %v528
        %v543 = vpack.c.bf16 %v530, %v530
        %v544 = vpack.c.bf16 %v532, %v532
        %v545 = vpack.c.bf16 %v534, %v534
        %v546 = vpack.c.bf16 %v536, %v536
        %v547 = vpack.c.bf16 %v538, %v538
        %v548 = vpack.c.bf16 %v540, %v540
        %v549 = vunpack.c.l.bf16 %v541
        %v550 = vunpack.c.l.bf16 %v542
        %v551 = vunpack.c.l.bf16 %v543
        %v552 = vunpack.c.l.bf16 %v544
        %v553 = vunpack.c.l.bf16 %v545
        %v554 = vunpack.c.l.bf16 %v546
        %v555 = vunpack.c.l.bf16 %v547
        %v556 = vunpack.c.l.bf16 %v548
        %v557 = vadd.f32 %v549, 1.0
        %v558 = vadd.f32 %v550, 1.0
        %v559 = vadd.f32 %v551, 1.0
        %v560 = vadd.f32 %v552, 1.0
        %v561 = vadd.f32 %v553, 1.0
        %v562 = vadd.f32 %v554, 1.0
        %v563 = vadd.f32 %v555, 1.0
        %v564 = vadd.f32 %v556, 1.0
        %v565 = vpack.c.bf16 %v557, %v557
        %v566 = vpack.c.bf16 %v558, %v558
        %v567 = vpack.c.bf16 %v559, %v559
        %v568 = vpack.c.bf16 %v560, %v560
        %v569 = vpack.c.bf16 %v561, %v561
        %v570 = vpack.c.bf16 %v562, %v562
        %v571 = vpack.c.bf16 %v563, %v563
        %v572 = vpack.c.bf16 %v564, %v564
        %v573 = vunpack.c.h.bf16 1065369472
        %v574 = vunpack.c.l.bf16 1065369472
        %v575 = vunpack.c.h.bf16 %v565
        %v576 = vunpack.c.l.bf16 %v565
        %v577 = vrcp.pop %v575
        %v578 = vmul.f32 %v573, %v577
        %v579 = vrcp.pop %v576
        %v580 = vmul.f32 %v574, %v579
        %v581 = vpack.c.bf16 %v578, %v580
        %v582 = vunpack.c.h.bf16 %v566
        %v583 = vunpack.c.l.bf16 %v566
        %v584 = vrcp.pop %v582
        %v585 = vmul.f32 %v573, %v584
        %v586 = vrcp.pop %v583
        %v587 = vmul.f32 %v574, %v586
        %v588 = vpack.c.bf16 %v585, %v587
        %v589 = vunpack.c.h.bf16 %v567
        %v590 = vunpack.c.l.bf16 %v567
        %v591 = vrcp.pop %v589
        %v592 = vmul.f32 %v573, %v591
        %v593 = vrcp.pop %v590
        %v594 = vmul.f32 %v574, %v593
        %v595 = vpack.c.bf16 %v592, %v594
        %v596 = vunpack.c.h.bf16 %v568
        %v597 = vunpack.c.l.bf16 %v568
        %v598 = vrcp.pop %v596
        %v599 = vmul.f32 %v573, %v598
        %v600 = vrcp.pop %v597
        %v601 = vmul.f32 %v574, %v600
        %v602 = vpack.c.bf16 %v599, %v601
        %v603 = vunpack.c.h.bf16 %v569
        %v604 = vunpack.c.l.bf16 %v569
        %v605 = vrcp.pop %v603
        %v606 = vmul.f32 %v573, %v605
        %v607 = vrcp.pop %v604
        %v608 = vmul.f32 %v574, %v607
        %v609 = vpack.c.bf16 %v606, %v608
        %v610 = vunpack.c.h.bf16 %v570
        %v611 = vunpack.c.l.bf16 %v570
        %v612 = vrcp.pop %v610
        %v613 = vmul.f32 %v573, %v612
        %v614 = vrcp.pop %v611
        %v615 = vmul.f32 %v574, %v614
        %v616 = vpack.c.bf16 %v613, %v615
        %v617 = vunpack.c.h.bf16 %v571
        %v618 = vunpack.c.l.bf16 %v571
        %v619 = vrcp.pop %v617
        %v620 = vmul.f32 %v573, %v619
        %v621 = vrcp.pop %v618
        %v622 = vmul.f32 %v574, %v621
        %v623 = vpack.c.bf16 %v620, %v622
        %v624 = vunpack.c.h.bf16 %v572
        %v625 = vunpack.c.l.bf16 %v572
        %v626 = vrcp.pop %v624
        %v627 = vmul.f32 %v573, %v626
        %v628 = vrcp.pop %v625
        %v629 = vmul.f32 %v574, %v628
        %v630 = vpack.c.bf16 %v627, %v629
        %v631 = vunpack.c.l.bf16 %v501
        %v632 = vunpack.c.l.bf16 %v502
        %v633 = vunpack.c.l.bf16 %v503
        %v634 = vunpack.c.l.bf16 %v504
        %v635 = vunpack.c.l.bf16 %v505
        %v636 = vunpack.c.l.bf16 %v506
        %v637 = vunpack.c.l.bf16 %v507
        %v638 = vunpack.c.l.bf16 %v508
        %v639 = vunpack.c.l.bf16 %v581
        %v640 = vunpack.c.l.bf16 %v588
        %v641 = vunpack.c.l.bf16 %v595
        %v642 = vunpack.c.l.bf16 %v602
        %v643 = vunpack.c.l.bf16 %v609
        %v644 = vunpack.c.l.bf16 %v616
        %v645 = vunpack.c.l.bf16 %v623
        %v646 = vunpack.c.l.bf16 %v630
        %v647 = vmul.f32 %v631, %v639
        %v648 = vmul.f32 %v632, %v640
        %v649 = vmul.f32 %v633, %v641
        %v650 = vmul.f32 %v634, %v642
        %v651 = vmul.f32 %v635, %v643
        %v652 = vmul.f32 %v636, %v644
        %v653 = vmul.f32 %v637, %v645
        %v654 = vmul.f32 %v638, %v646
        %v655 = vpack.c.bf16 %v647, %v647
        %v656 = vpack.c.bf16 %v648, %v648
        %v657 = vpack.c.bf16 %v649, %v649
        %v658 = vpack.c.bf16 %v650, %v650
        %v659 = vpack.c.bf16 %v651, %v651
        %v660 = vpack.c.bf16 %v652, %v652
        %v661 = vpack.c.bf16 %v653, %v653
        %v662 = vpack.c.bf16 %v654, %v654
        %663 = vst [vmem:[#allocation2] sm:$0xf] 0
        %664 = vst [vmem:[#allocation2 + $0xc] sm:$0xf] 0
        %665 = vst [vmem:[#allocation2 + $0x50] sm:$0xf] 0
        %666 = vst [vmem:[#allocation2 + $0x5c] sm:$0xf] 0
        %667 = vst [vmem:[#allocation2 + $0x18] sm:$0xf] %v655
        %668 = vst [vmem:[#allocation2 + $0x24] sm:$0xf] %v656
        %669 = vst [vmem:[#allocation2 + $0x30] sm:$0xf] %v657
        %670 = vst [vmem:[#allocation2 + $0x3c] sm:$0xf] %v658
        %671 = vst [vmem:[#allocation2 + $0x48] sm:$0xf] %v659
        %672 = vst [vmem:[#allocation2 + $0x54] sm:$0xf] %v660
        %673 = vst [vmem:[#allocation2 + $0x8] sm:$0xf] %v657
        %674 = vst [vmem:[#allocation2 + $0x14] sm:$0xf] %v658
        %675 = vst [vmem:[#allocation2 + $0x20] sm:$0xf] %v659
        %676 = vst [vmem:[#allocation2 + $0x2c] sm:$0xf] %v660
        %677 = vst [vmem:[#allocation2 + $0x38] sm:$0xf] %v661
        %678 = vst [vmem:[#allocation2 + $0x44] sm:$0xf] %v662
        %679 = vst [vmem:[#allocation2 + $0x4] sm:$0xf] %v655
        %680 = vst [vmem:[#allocation2 + $0x10] sm:$0xf] %v656
        %681 = vst [vmem:[#allocation2 + $0x1c] sm:$0xf] %v657
        %682 = vst [vmem:[#allocation2 + $0x28] sm:$0xf] %v658
        %683 = vst [vmem:[#allocation2 + $0x34] sm:$0xf] %v659
        %684 = vst [vmem:[#allocation2 + $0x40] sm:$0xf] %v660
        %685 = vst [vmem:[#allocation2 + $0x4c] sm:$0xf] %v661
        %686 = vst [vmem:[#allocation2 + $0x58] sm:$0xf] %v662
        %v687 = vld [vmem:[#allocation2] sm:$0xff]
        %v688 = vld [vmem:[#allocation2 + $0x8] sm:$0xf]
        %v689 = vld [vmem:[#allocation2 + $0xc] sm:$0xff]
        %v690 = vld [vmem:[#allocation2 + $0x14] sm:$0xf]
        %v691 = vld [vmem:[#allocation2 + $0x18] sm:$0xff]
        %v692 = vld [vmem:[#allocation2 + $0x20] sm:$0xf]
        %v693 = vld [vmem:[#allocation2 + $0x24] sm:$0xff]
        %v694 = vld [vmem:[#allocation2 + $0x2c] sm:$0xf]
        %v695 = vld [vmem:[#allocation2 + $0x30] sm:$0xff]
        %v696 = vld [vmem:[#allocation2 + $0x38] sm:$0xf]
        %v697 = vld [vmem:[#allocation2 + $0x3c] sm:$0xff]
        %v698 = vld [vmem:[#allocation2 + $0x44] sm:$0xf]
        %v699 = vld [vmem:[#allocation2 + $0x48] sm:$0xff]
        %v700 = vld [vmem:[#allocation2 + $0x50] sm:$0xf]
        %v701 = vld [vmem:[#allocation2 + $0x54] sm:$0xff]
        %v702 = vld [vmem:[#allocation2 + $0x5c] sm:$0xf]
        %v703 = vld [vmem:[%s3] sm:$0xf]
        %v704 = vld [vmem:[%s3 + $0x4] sm:$0xf]
        %v705 = vld [vmem:[%s3 + $0x8] sm:$0xf]
        %v706 = vld [vmem:[%s3 + $0xc] sm:$0xf]
        %v707 = vld [vmem:[%s3 + $0x10] sm:$0xf]
        %v708 = vld [vmem:[%s3 + $0x14] sm:$0xf]
        %v709 = vld [vmem:[%s3 + $0x18] sm:$0xf]
        %v710 = vld [vmem:[%s3 + $0x1c] sm:$0xf]
        %v711 = vld [vmem:[%s3 + $0x20] sm:$0xf]
        %v712 = vld [vmem:[%s3 + $0x24] sm:$0xf]
        %v713 = vld [vmem:[%s3 + $0x28] sm:$0xf]
        %v714 = vld [vmem:[%s3 + $0x2c] sm:$0xf]
        %v715 = vld [vmem:[%s3 + $0x30] sm:$0xf]
        %v716 = vld [vmem:[%s3 + $0x34] sm:$0xf]
        %v717 = vld [vmem:[%s3 + $0x38] sm:$0xf]
        %v718 = vld [vmem:[%s3 + $0x3c] sm:$0xf]
        %v719 = vld [vmem:[%s3 + $0x40] sm:$0xf]
        %v720 = vld [vmem:[%s3 + $0x44] sm:$0xf]
        %v721 = vld [vmem:[%s3 + $0x48] sm:$0xf]
        %v722 = vld [vmem:[%s3 + $0x4c] sm:$0xf]
        %v723 = vld [vmem:[%s3 + $0x50] sm:$0xf]
        %v724 = vld [vmem:[%s3 + $0x54] sm:$0xf]
        %v725 = vld [vmem:[%s3 + $0x58] sm:$0xf]
        %v726 = vld [vmem:[%s3 + $0x5c] sm:$0xf]
        %v727 = vld [vmem:[%s3 + $0x60] sm:$0xf]
        %v728 = vld [vmem:[%s3 + $0x64] sm:$0xf]
        %v729 = vld [vmem:[%s3 + $0x68] sm:$0xf]
        %v730 = vld [vmem:[%s3 + $0x6c] sm:$0xf]
        %v731 = vld [vmem:[%s3 + $0x70] sm:$0xf]
        %v732 = vld [vmem:[%s3 + $0x74] sm:$0xf]
        %v733 = vld [vmem:[%s3 + $0x78] sm:$0xf]
        %v734 = vld [vmem:[%s3 + $0x7c] sm:$0xf]
        %v735 = vld [vmem:[%s3 + $0x80] sm:$0xf]
        %v736 = vld [vmem:[%s3 + $0x84] sm:$0xf]
        %v737 = vld [vmem:[%s3 + $0x88] sm:$0xf]
        %v738 = vld [vmem:[%s3 + $0x8c] sm:$0xf]
        %v739 = vld [vmem:[%s3 + $0x90] sm:$0xf]
        %v740 = vld [vmem:[%s3 + $0x94] sm:$0xf]
        %v741 = vld [vmem:[%s3 + $0x98] sm:$0xf]
        %v742 = vld [vmem:[%s3 + $0x9c] sm:$0xf]
        %v743 = vld [vmem:[%s3 + $0xa0] sm:$0xf]
        %v744 = vld [vmem:[%s3 + $0xa4] sm:$0xf]
        %v745 = vld [vmem:[%s3 + $0xa8] sm:$0xf]
        %v746 = vld [vmem:[%s3 + $0xac] sm:$0xf]
        %v747 = vld [vmem:[%s3 + $0xb0] sm:$0xf]
        %v748 = vld [vmem:[%s3 + $0xb4] sm:$0xf]
        %v749 = vld [vmem:[%s3 + $0xb8] sm:$0xf]
        %v750 = vld [vmem:[%s3 + $0xbc] sm:$0xf]
        %v751 = vld [vmem:[%s4] sm:$0x1]
        %v753 = vperm.slane %v751, 0
        %v771 = vunpack.c.l.b16 %v687
        %v772 = vunpack.c.h.b16 %v687
        %v773 = vunpack.c.l.b16 %v688
        %v774 = vunpack.c.l.b16 %v689
        %v775 = vunpack.c.h.b16 %v689
        %v776 = vunpack.c.l.b16 %v690
        %v777 = vunpack.c.l.b16 %v691
        %v778 = vunpack.c.h.b16 %v691
        %v779 = vunpack.c.l.b16 %v692
        %v780 = vunpack.c.l.b16 %v693
        %v781 = vunpack.c.h.b16 %v693
        %v782 = vunpack.c.l.b16 %v694
        %v783 = vunpack.c.l.b16 %v695
        %v784 = vunpack.c.h.b16 %v695
        %v785 = vunpack.c.l.b16 %v696
        %v786 = vunpack.c.l.b16 %v697
        %v787 = vunpack.c.h.b16 %v697
        %v788 = vunpack.c.l.b16 %v698
        %v789 = vunpack.c.l.b16 %v699
        %v790 = vunpack.c.h.b16 %v699
        %v791 = vunpack.c.l.b16 %v700
        %v792 = vunpack.c.l.b16 %v701
        %v793 = vunpack.c.h.b16 %v701
        %v794 = vunpack.c.l.b16 %v702
        %v795 = vpack.c.b16 %v774, %v771
        %v796 = vpack.c.b16 %v775, %v772
        %v797 = vpack.c.b16 %v776, %v773
        %v798 = vpack.c.b16 %v780, %v777
        %v799 = vpack.c.b16 %v781, %v778
        %v800 = vpack.c.b16 %v782, %v779
        %v801 = vpack.c.b16 %v786, %v783
        %v802 = vpack.c.b16 %v787, %v784
        %v803 = vpack.c.b16 %v788, %v785
        %v804 = vpack.c.b16 %v792, %v789
        %v805 = vpack.c.b16 %v793, %v790
        %v806 = vpack.c.b16 %v794, %v791
        %v867 = vunpack.c.l.b16 %v703
        %v868 = vunpack.c.l.b16 %v704
        %v869 = vunpack.c.l.b16 %v705
        %v870 = vunpack.c.l.b16 %v706
        %v871 = vunpack.c.l.b16 %v707
        %v872 = vunpack.c.l.b16 %v708
        %v873 = vunpack.c.l.b16 %v709
        %v874 = vunpack.c.l.b16 %v710
        %v875 = vunpack.c.l.b16 %v711
        %v876 = vunpack.c.l.b16 %v712
        %v877 = vunpack.c.l.b16 %v713
        %v878 = vunpack.c.l.b16 %v714
        %v879 = vunpack.c.l.b16 %v715
        %v880 = vunpack.c.l.b16 %v716
        %v881 = vunpack.c.l.b16 %v717
        %v882 = vunpack.c.l.b16 %v718
        %v883 = vunpack.c.l.b16 %v719
        %v884 = vunpack.c.l.b16 %v720
        %v885 = vunpack.c.l.b16 %v721
        %v886 = vunpack.c.l.b16 %v722
        %v887 = vunpack.c.l.b16 %v723
        %v888 = vunpack.c.l.b16 %v724
        %v889 = vunpack.c.l.b16 %v725
        %v890 = vunpack.c.l.b16 %v726
        %v891 = vunpack.c.l.b16 %v727
        %v892 = vunpack.c.l.b16 %v728
        %v893 = vunpack.c.l.b16 %v729
        %v894 = vunpack.c.l.b16 %v730
        %v895 = vunpack.c.l.b16 %v731
        %v896 = vunpack.c.l.b16 %v732
        %v897 = vunpack.c.l.b16 %v733
        %v898 = vunpack.c.l.b16 %v734
        %v899 = vunpack.c.l.b16 %v735
        %v900 = vunpack.c.l.b16 %v736
        %v901 = vunpack.c.l.b16 %v737
        %v902 = vunpack.c.l.b16 %v738
        %v903 = vunpack.c.l.b16 %v739
        %v904 = vunpack.c.l.b16 %v740
        %v905 = vunpack.c.l.b16 %v741
        %v906 = vunpack.c.l.b16 %v742
        %v907 = vunpack.c.l.b16 %v743
        %v908 = vunpack.c.l.b16 %v744
        %v909 = vunpack.c.l.b16 %v745
        %v910 = vunpack.c.l.b16 %v746
        %v911 = vunpack.c.l.b16 %v747
        %v912 = vunpack.c.l.b16 %v748
        %v913 = vunpack.c.l.b16 %v749
        %v914 = vunpack.c.l.b16 %v750
        %v915 = vpack.c.b16 %v868, %v867
        %v916 = vpack.c.b16 %v870, %v869
        %v917 = vpack.c.b16 %v872, %v871
        %v918 = vpack.c.b16 %v874, %v873
        %v919 = vpack.c.b16 %v876, %v875
        %v920 = vpack.c.b16 %v878, %v877
        %v921 = vpack.c.b16 %v880, %v879
        %v922 = vpack.c.b16 %v882, %v881
        %v923 = vpack.c.b16 %v884, %v883
        %v924 = vpack.c.b16 %v886, %v885
        %v925 = vpack.c.b16 %v888, %v887
        %v926 = vpack.c.b16 %v890, %v889
        %v927 = vpack.c.b16 %v892, %v891
        %v928 = vpack.c.b16 %v894, %v893
        %v929 = vpack.c.b16 %v896, %v895
        %v930 = vpack.c.b16 %v898, %v897
        %v931 = vpack.c.b16 %v900, %v899
        %v932 = vpack.c.b16 %v902, %v901
        %v933 = vpack.c.b16 %v904, %v903
        %v934 = vpack.c.b16 %v906, %v905
        %v935 = vpack.c.b16 %v908, %v907
        %v936 = vpack.c.b16 %v910, %v909
        %v937 = vpack.c.b16 %v912, %v911
        %v938 = vpack.c.b16 %v914, %v913
        %963 = vmatpush.bf16.msra.mxu0 %v922
        %964 = vmatpush.bf16.msra.mxu0 %v921
        %965 = vmatpush.bf16.msra.mxu0 %v920
        %966 = vmatpush.bf16.msra.mxu0 %v919
        %967 = vmatpush.bf16.msra.mxu0 %v918
        %968 = vmatpush.bf16.msra.mxu0 %v917
        %969 = vmatpush.bf16.msra.mxu0 %v916
        %970 = vmatpush.bf16.msra.mxu0 %v915
        %971 = vmatmul.bf16.gmra.mxu0 %v795
        %v972 = vpop.f32.mrf.mxu0
        %v973 = vadd.f32 %v753, %v972
        %v974 = vpop.f32.mrf.mxu0
        %v975 = vadd.f32 %v753, %v974
        %976 = vmatmul.bf16.gmra.mxu0 %v798
        %v977 = vpop.f32.mrf.mxu0
        %v978 = vadd.f32 %v753, %v977
        %v979 = vpop.f32.mrf.mxu0
        %v980 = vadd.f32 %v753, %v979
        %981 = vmatmul.bf16.gmra.mxu0 %v801
        %v982 = vpop.f32.mrf.mxu0
        %v983 = vadd.f32 %v753, %v982
        %v984 = vpop.f32.mrf.mxu0
        %v985 = vadd.f32 %v753, %v984
        %986 = vmatmul.bf16.gmra.mxu0 %v804
        %v987 = vpop.f32.mrf.mxu0
        %v988 = vadd.f32 %v753, %v987
        %v989 = vpop.f32.mrf.mxu0
        %v990 = vadd.f32 %v753, %v989
        %991 = vdwg.mxu0
        %992 = vmatpush.bf16.msra.mxu0 %v930
        %993 = vmatpush.bf16.msra.mxu0 %v929
        %994 = vmatpush.bf16.msra.mxu0 %v928
        %995 = vmatpush.bf16.msra.mxu0 %v927
        %996 = vmatpush.bf16.msra.mxu0 %v926
        %997 = vmatpush.bf16.msra.mxu0 %v925
        %998 = vmatpush.bf16.msra.mxu0 %v924
        %999 = vmatpush.bf16.msra.mxu0 %v923
        %1000 = vmatmul.bf16.gmra.mxu0 %v796
        %v1001 = vpop.f32.mrf.mxu0
        %v1002 = vadd.f32 %v973, %v1001
        %v1003 = vpop.f32.mrf.mxu0
        %v1004 = vadd.f32 %v975, %v1003
        %1005 = vmatmul.bf16.gmra.mxu0 %v799
        %v1006 = vpop.f32.mrf.mxu0
        %v1007 = vadd.f32 %v978, %v1006
        %v1008 = vpop.f32.mrf.mxu0
        %v1009 = vadd.f32 %v980, %v1008
        %1010 = vmatmul.bf16.gmra.mxu0 %v802
        %v1011 = vpop.f32.mrf.mxu0
        %v1012 = vadd.f32 %v983, %v1011
        %v1013 = vpop.f32.mrf.mxu0
        %v1014 = vadd.f32 %v985, %v1013
        %1015 = vmatmul.bf16.gmra.mxu0 %v805
        %v1016 = vpop.f32.mrf.mxu0
        %v1017 = vadd.f32 %v988, %v1016
        %v1018 = vpop.f32.mrf.mxu0
        %v1019 = vadd.f32 %v990, %v1018
        %1020 = vdwg.mxu0
        %1021 = vmatpush.bf16.msra.mxu0 %v938
        %1022 = vmatpush.bf16.msra.mxu0 %v937
        %1023 = vmatpush.bf16.msra.mxu0 %v936
        %1024 = vmatpush.bf16.msra.mxu0 %v935
        %1025 = vmatpush.bf16.msra.mxu0 %v934
        %1026 = vmatpush.bf16.msra.mxu0 %v933
        %1027 = vmatpush.bf16.msra.mxu0 %v932
        %1028 = vmatpush.bf16.msra.mxu0 %v931
        %1029 = vmatmul.bf16.gmra.mxu0 %v797
        %v1030 = vpop.f32.mrf.mxu0
        %v1031 = vadd.f32 %v1002, %v1030
        %v1032 = vpop.f32.mrf.mxu0
        %v1033 = vadd.f32 %v1004, %v1032
        %1034 = vmatmul.bf16.gmra.mxu0 %v800
        %v1035 = vpop.f32.mrf.mxu0
        %v1036 = vadd.f32 %v1007, %v1035
        %v1037 = vpop.f32.mrf.mxu0
        %v1038 = vadd.f32 %v1009, %v1037
        %1039 = vmatmul.bf16.gmra.mxu0 %v803
        %v1040 = vpop.f32.mrf.mxu0
        %v1041 = vadd.f32 %v1012, %v1040
        %v1042 = vpop.f32.mrf.mxu0
        %v1043 = vadd.f32 %v1014, %v1042
        %1044 = vmatmul.bf16.gmra.mxu0 %v806
        %v1045 = vpop.f32.mrf.mxu0
        %v1046 = vadd.f32 %v1017, %v1045
        %v1047 = vpop.f32.mrf.mxu0
        %v1048 = vadd.f32 %v1019, %v1047
        %1049 = vdwg.mxu0
        %v1050 = vld [vmem:[%s413] sm:$0xff]
        %v1051 = vld [vmem:[%s413 + $0x8] sm:$0xff]
        %v1052 = vld [vmem:[%s413 + $0x10] sm:$0xff]
        %v1053 = vld [vmem:[%s413 + $0x18] sm:$0xff]
        %v1054 = vld [vmem:[%s413 + $0x20] sm:$0xff]
        %v1055 = vld [vmem:[%s413 + $0x28] sm:$0xff]
        %v1056 = vld [vmem:[%s413 + $0x30] sm:$0xff]
        %v1057 = vld [vmem:[%s413 + $0x38] sm:$0xff]
        %v1058 = vadd.f32 %v1031, %v1050
        %v1059 = vadd.f32 %v1033, %v1051
        %v1060 = vadd.f32 %v1036, %v1052
        %v1061 = vadd.f32 %v1038, %v1053
        %v1062 = vadd.f32 %v1041, %v1054
        %v1063 = vadd.f32 %v1043, %v1055
        %v1064 = vadd.f32 %v1046, %v1056
        %v1065 = vadd.f32 %v1048, %v1057
        %1066 = vst [vmem:[%s449] sm:$0xff] %v1058
        %1067 = vst [vmem:[%s449 + $0x8] sm:$0xff] %v1059
        %1068 = vst [vmem:[%s449 + $0x10] sm:$0xff] %v1060
        %1069 = vst [vmem:[%s449 + $0x18] sm:$0xff] %v1061
        %1070 = vst [vmem:[%s449 + $0x20] sm:$0xff] %v1062
        %1071 = vst [vmem:[%s449 + $0x28] sm:$0xff] %v1063
        %1072 = vst [vmem:[%s449 + $0x30] sm:$0xff] %v1064
        %1073 = vst [vmem:[%s449 + $0x38] sm:$0xff] %v1065
        %s1074 = sand.u32 %s192, 1
        %s1075 = scalar_lea.sflag [#allocation6], %s1074
        %s1076 = sand.u32 %s192, 1
        %s1077 = smul.addr %s1076, 64
        %s1078 = scalar_lea.vmem [#allocation5], %s1077
        // Predicated region
        $region124: #{temporal_conv_layer_nchw.15} parent=114 // pred_check
          %p1079 = pneg %p202
        $region125: #{temporal_conv_layer_nchw.15} parent=114 // pred_check_branch
          %1081 = sbr.rel (%p1079) target = $region127
        $region126: #{temporal_conv_layer_nchw.15} parent=114 // pred_region
          #allocation8 [shape = 'u32[6]{0}', space=smem, size = 0x18, scoped, tag = 'DMA stride descriptor']
          %s1082 = smul.u32 2, %s25
          %1084 = vsyncadd %s1075, 0
          %s1085 = smul.addr %s24, 32
          %s1086 = sadd.s32 %s1082, %s1085
          %s1087 = smul.addr %s1086, 8
          %s1088 = scalar_lea.hbm %s6, %s1087
          %s1090 = sshll.u32 1, 14
          %s1091 = sxor.u32 4294967295, %s1090
          %s1094 = sshll.u32 7, 18
          %s1095 = sxor.u32 4294967295, %s1094
          %s1096 = sand.u32 0, %s1095
          %s1098 = sor.u32 %s1096, 0
          %s1099 = sshll.u32 %s1078, 4
          %s1100 = int_to_ptr.vmem [resolvable:$true] %s1099
          %s1101 = sshll.u32 %s1088, 4
          %s1102 = int_to_ptr.hbm [resolvable:$true] %s1101
          %1108 = sst [smem:[#allocation8]] 256
          %s1109 = scalar_lea.smem [#allocation8], 1
          %1110 = sst [smem:[%s1109]] 1024
          %s1111 = scalar_lea.smem [#allocation8], 2
          %1112 = sst [smem:[%s1111]] 2
          %s1113 = scalar_lea.smem [#allocation8], 3
          %1114 = sst [smem:[%s1113]] 128
          %s1115 = scalar_lea.smem [#allocation8], 4
          %1116 = sst [smem:[%s1115]] 128
          %s1117 = scalar_lea.smem [#allocation8], 5
          %1118 = sst [smem:[%s1117]] 8
          %1120 = dma.general %s1100, 1024, %s1102, %s1075, [#allocation7], [#allocation8], %s1098, 0
        $region127: #{temporal_conv_layer_nchw.15} parent=114 // pred_fallthru
          _
      $region115: #{temporal_conv_layer_nchw.15} parent=5 // pred_fallthru
        _
      %p1121 = scmp.le.s32.totalorder 2, %s15
      // Predicated region
      $region128: #{temporal_conv_layer_nchw.15} parent=5 // pred_check
        %p1122 = pneg %p1121
      $region129: #{temporal_conv_layer_nchw.15} parent=5 // pred_check_branch
        %1124 = sbr.rel (%p1122) target = $region131
      $region130: #{temporal_conv_layer_nchw.15} parent=5 // pred_region
        %s1125 = ssub.s32 %s15, 2
        // Predicated region
        $region132: #{temporal_conv_layer_nchw.15} parent=130 // pred_check
          %p1126 = pneg %p208
        $region133: #{temporal_conv_layer_nchw.15} parent=130 // pred_check_branch
          %1128 = sbr.rel (%p1126) target = $region135
        $region134: #{temporal_conv_layer_nchw.15} parent=130 // pred_region
          %s1129 = sand.u32 %s193, 1
          %s1130 = scalar_lea.sflag [#allocation6], %s1129
          %s1131 = sand.u32 %s193, 1
          %s1132 = smul.addr %s1131, 64
          %s1133 = scalar_lea.vmem [#allocation5], %s1132
          %1135 = dma.done %s1130, 1024
        $region135: #{temporal_conv_layer_nchw.15} parent=130 // pred_fallthru
          _
      $region131: #{temporal_conv_layer_nchw.15} parent=5 // pred_fallthru
        _
    $region6: #{temporal_conv_layer_nchw.15} parent=1 // loop_footer
      %s19 = sadd.s32 1, %s15
    $region7: #{temporal_conv_layer_nchw.15} parent=1 // loop_footer_branch
      %14 = sbr.rel target = $region3
    $region8: #{temporal_conv_layer_nchw.15} parent=1 // loop_exit
      _
    %1136 = vsyncpa [#allocation6], 1
    %s1137 = scalar_lea.sflag [#allocation6], 1
    %1138 = vsyncpa %s1137, 1

</llo_original>
